<compile_context>
chip_gen: v6e
topology: v6e:2x2x1
jax: 0.10.0
libtpu: 0.0.40
codegen_flags: <defaults>
</compile_context>

<pallas_src>
import functools
from typing import NamedTuple

import jax
import jax.numpy as jnp
from jax.experimental import pallas as pl
from jax.experimental.pallas import tpu as pltpu

_BN_EPS = 1e-3                 # rCell: nn.BatchNorm2d(hidden_size, eps=0.001, ...)
_VMEM_LIMIT = 32 * 1024 * 1024
_TILE_CAP = 2048               # rows per tile (amortizes per-step overhead on v7x)
_MM_DTYPE = None               # set to jnp.bfloat16 on v5e (f32 accumulation is kept)


def _softplus(x):
    # Numerically stable softplus; matches F.softplus(beta=1, threshold=20)
    # to within f32 resolution.
    return jnp.maximum(x, 0.0) + jnp.log1p(jnp.exp(-jnp.abs(x)))


def _mm(a, b):
    if _MM_DTYPE is not None:
        a = a.astype(_MM_DTYPE)
        b = b.astype(_MM_DTYPE)
    return jnp.dot(a, b, preferred_element_type=jnp.float32)


# --------------------------------------------------------------------------- #
# Geometry of the lane-replicated working layout
# --------------------------------------------------------------------------- #
class _Geom(NamedTuple):
    n: int
    c: int
    h: int
    w: int
    m: int        # true row count in (M, C) channel space
    r: int        # lane replication factor
    d: int        # working lane width = r * c
    mr: int       # true row count in replicated layout
    mr_pad: int   # padded row count (multiple of n_par * tm)
    pad: int
    tm: int       # rows per tile
    n_par: int    # leading "parallel" grid extent (megacore split on v7x)
    tpp: int      # tiles per parallel slab


def _round_up(x, m):
    return ((x + m - 1) // m) * m


def _make_geom(n, c, h, w, tile_cap=_TILE_CAP):
    m = n * h * w
    # Lane replication so the working last dim is (ideally) 128.
    # NOTE: if C does not divide 128 this collapses to r=1 (d=C<128): still correct
    # but stores become masked partial-lane writes (perf cliff, flagged in review).
    r = 128 // c if (c <= 128 and 128 % c == 0) else 1
    while r > 1 and m % r != 0:
        r //= 2
    d = r * c
    mr = m // r
    tm = min(tile_cap, _round_up(mr, 8))
    n_tiles = -(-mr // tm)                 # cdiv
    n_par = 2 if n_tiles >= 2 else 1       # split reduction passes across v7x's 2 TCs
    n_tiles = _round_up(n_tiles, n_par)
    mr_pad = n_tiles * tm
    return _Geom(n=n, c=c, h=h, w=w, m=m, r=r, d=d, mr=mr, mr_pad=mr_pad,
                 pad=mr_pad - mr, tm=tm, n_par=n_par, tpp=n_tiles // n_par)


# --------------------------------------------------------------------------- #
# In-kernel helpers
# --------------------------------------------------------------------------- #
def _stats_accum(sum_ref, sq_ref, z):
    # Raw per-channel moments of z accumulated into this core's (1, 1, d) rows.
    # TODO(synk): review item 9 (sublane-partial (8, d) accumulators) not applied;
    # it needs an in-kernel (tm, d)->(tm//8, 8, d) reshape and is a ~1-3% XLU
    # micro-opt; kept the proven full-column reduce for robustness.
    sum_ref[...] += jnp.sum(z, axis=0, keepdims=True)[None]
    sq_ref[...] += jnp.sum(z * z, axis=0, keepdims=True)[None]


def _mask_rows(val, i, mr_valid):
    tm, d = val.shape
    p = pl.program_id(0)
    start = (p * pl.num_programs(1) + i) * tm
    rows = start + jax.lax.broadcasted_iota(jnp.int32, (tm, d), 0)
    return jnp.where(rows < mr_valid, val, 0.0)


# --------------------------------------------------------------------------- #
# Pass 1 (t=0 only): per-channel batch statistics of conv(excitation, w_inh)
# --------------------------------------------------------------------------- #
def _stats0_kernel(exc_ref, w_inh_ref, sum_ref, sq_ref):
    i = pl.program_id(1)

    @pl.when(i == 0)
    def _():
        sum_ref[...] = jnp.zeros_like(sum_ref)
        sq_ref[...] = jnp.zeros_like(sq_ref)

    # Padded rows of exc are zero, so they contribute nothing; no mask needed here.
    z = _mm(exc_ref[...], w_inh_ref[...])
    _stats_accum(sum_ref, sq_ref, z)


# --------------------------------------------------------------------------- #
# Pass 2: inhibitory branch (+ accumulate BN1 statistics of conv(inh_new, w_exc))
# --------------------------------------------------------------------------- #
def _inh_kernel(x_ref, inh_ref, exc_ref,
                w_iw_ref, w_iu_ref, w_inh_s_ref, w_exc_ref,
                gate_b_ref, bn0_shift_ref, alpha_ref, mu_ref,
                inh_out_ref, sum_ref, sq_ref, *, mr_valid, masked):
    i = pl.program_id(1)

    @pl.when(i == 0)
    def _():
        sum_ref[...] = jnp.zeros_like(sum_ref)
        sq_ref[...] = jnp.zeros_like(sq_ref)

    x = x_ref[...]
    inh = inh_ref[...]
    exc = exc_ref[...]

    # bn0(conv(exc, w_inh)): BN scale folded into the weight, shift added here.
    inh_intx = _mm(exc, w_inh_s_ref[...]) + bn0_shift_ref[...]
    inhibition_hat = _softplus(
        x - _softplus(inh_intx * (alpha_ref[...] * inh + mu_ref[...])))

    gate_pre = _mm(x, w_iw_ref[...]) + _mm(inh, w_iu_ref[...]) + gate_b_ref[...]
    inh_gate = jax.nn.sigmoid(gate_pre)
    inh_new = (1.0 - inh_gate) * inh + inh_gate * inhibition_hat

    if masked:
        # Zero padded rows so they neither pollute the BN1 statistics nor the
        # recurrent state carried to later timesteps.
        inh_new = _mask_rows(inh_new, i, mr_valid)

    inh_out_ref[...] = inh_new.astype(inh_out_ref.dtype)

    # Accumulate BN1 batch statistics of conv(inh_new, w_exc) for pass 3.
    _stats_accum(sum_ref, sq_ref, _mm(inh_new, w_exc_ref[...]))


# --------------------------------------------------------------------------- #
# Pass 3: excitatory branch (+ BN0 statistics of conv(exc_new, w_inh) for t+1)
# --------------------------------------------------------------------------- #
def _exc_kernel(inh_ref, exc_ref, ninh_ref,
                w_ew_ref, w_eu_ref, w_exc_s_ref, w_inh_ref,
                gate_b_ref, bn1_shift_ref, kappa_ref, gamma_ref,
                exc_out_ref, sum_ref, sq_ref, *, mr_valid, masked):
    i = pl.program_id(1)

    @pl.when(i == 0)
    def _():
        sum_ref[...] = jnp.zeros_like(sum_ref)
        sq_ref[...] = jnp.zeros_like(sq_ref)

    inh = inh_ref[...]     # ORIGINAL inhibition (gates use pre-update state)
    exc = exc_ref[...]     # ORIGINAL excitation
    ninh = ninh_ref[...]   # updated inhibition

    gate_pre = _mm(inh, w_ew_ref[...]) + _mm(exc, w_eu_ref[...]) + gate_b_ref[...]
    # TODO(synk): if EUP binds on v7x after the bandwidth fixes, replace the sigmoid
    # divide with pl.reciprocal(..., approx=True).
    exc_gate = jax.nn.sigmoid(gate_pre)

    exc_intx = _mm(ninh, w_exc_s_ref[...]) + bn1_shift_ref[...]
    excitation_hat = _softplus(exc_intx * (kappa_ref[...] * ninh + gamma_ref[...]))
    exc_new = (1.0 - exc_gate) * exc + exc_gate * excitation_hat

    if masked:
        exc_new = _mask_rows(exc_new, i, mr_valid)

    exc_out_ref[...] = exc_new.astype(exc_out_ref.dtype)

    # BN0 batch statistics of conv(exc_new, w_inh) for the NEXT timestep, computed
    # while exc_new is still in VMEM (removes the standalone stats pass for t>0).
    _stats_accum(sum_ref, sq_ref, _mm(exc_new, w_inh_ref[...]))


# --------------------------------------------------------------------------- #
# Wrapper helpers
# --------------------------------------------------------------------------- #
def _block_diag(w, r):
    """(Cin, Cout) -> (r*Cin, r*Cout) block-diagonal replica of a 1x1 conv."""
    if r == 1:
        return w
    cin, cout = w.shape
    eye = jnp.eye(r, dtype=w.dtype)
    return (eye[:, None, :, None] * w[None, :, None, :]).reshape(r * cin, r * cout)


def _tile_vec(v, r):
    """Per-channel vector (C,)/(1,C) -> (1, r*C), replica-major lanes."""
    v = jnp.reshape(v, (-1,))
    return jnp.tile(v, (r,)).reshape(1, -1)


def _bn_fold(sum_part, sq_part, g, b, m_total, r, c):
    """Combine per-core / per-replica raw moments -> per-channel BN (scale, shift)."""
    tot = jnp.sum(sum_part, axis=(0, 1)).reshape(r, c).sum(axis=0)
    tot_sq = jnp.sum(sq_part, axis=(0, 1)).reshape(r, c).sum(axis=0)
    # TODO(synk): E[x^2]-E[x]^2 in f32; adequate at current tolerances, switch to
    # mean-shifted / Kahan accumulation if tolerances tighten (review note).
    mean = tot / m_total
    var = jnp.maximum(tot_sq / m_total - mean * mean, 0.0)   # biased variance
    scale = jnp.reshape(g, (-1,)) * jax.lax.rsqrt(var + _BN_EPS)
    shift = jnp.reshape(b, (-1,)) - mean * scale
    return scale, shift


def _prepare(params, geom):
    """Build block-diagonal weights / lane-tiled vectors once per forward."""
    r = geom.r
    p = params
    return dict(
        w_inh_bd=_block_diag(p["w_inh"], r),
        w_exc_bd=_block_diag(p["w_exc"], r),
        w_iw_bd=_block_diag(p["i_w_gate_w"], r),
        w_iu_bd=_block_diag(p["i_u_gate_w"], r),
        w_ew_bd=_block_diag(p["e_w_gate_w"], r),
        w_eu_bd=_block_diag(p["e_u_gate_w"], r),
        gate_b_i=_tile_vec(jnp.reshape(p["i_w_gate_b"], (-1,))
                           + jnp.reshape(p["i_u_gate_b"], (-1,)), r),
        gate_b_e=_tile_vec(jnp.reshape(p["e_w_gate_b"], (-1,))
                           + jnp.reshape(p["e_u_gate_b"], (-1,)), r),
        alpha_t=_tile_vec(p["alpha"], r),
        mu_t=_tile_vec(p["mu"], r),
        kappa_t=_tile_vec(p["kappa"], r),
        gamma_t=_tile_vec(p["gamma"], r),
        bn0_w=p["bn0_w"], bn0_b=p["bn0_b"],
        bn1_w=p["bn1_w"], bn1_b=p["bn1_b"],
    )


def _specs(geom):
    tpp, tm, d = geom.tpp, geom.tm, geom.d
    act = pl.BlockSpec((tm, d), lambda p, i: (p * tpp + i, 0))
    wgt = pl.BlockSpec((d, d), lambda p, i: (0, 0))          # resident across the grid
    vec = pl.BlockSpec((1, d), lambda p, i: (0, 0))          # resident across the grid
    stat = pl.BlockSpec((1, 1, d), lambda p, i: (p, 0, 0))   # per-core partial rows
    return act, wgt, vec, stat


def _cparams():
    # Leading axis "parallel": megacore-shards the passes on v7x (each core owns its
    # own stat rows).  Inner M axis carries the accumulators -> "arbitrary".
    return pltpu.CompilerParams(dimension_semantics=("parallel", "arbitrary"),
                                vmem_limit_bytes=_VMEM_LIMIT)


def _act_shape(geom):
    # TODO(synk): bf16 state / intermediates (review item 6) would cut HBM bytes
    # further; kept f32 to preserve the module's numerics.
    return jax.ShapeDtypeStruct((geom.mr_pad, geom.d), jnp.float32)


def _stat_shape(geom):
    return jax.ShapeDtypeStruct((geom.n_par, 1, geom.d), jnp.float32)


# --------------------------------------------------------------------------- #
# Layout conversion (paid once per call / once per sequence)
# --------------------------------------------------------------------------- #
def _to_core(a_nchw, geom):
    x = jnp.transpose(a_nchw, (0, 2, 3, 1)).reshape(geom.m, geom.c)
    x = x.reshape(geom.mr, geom.d).astype(jnp.float32)
    if geom.pad:
        x = jnp.pad(x, ((0, geom.pad), (0, 0)))
    return x


def _from_core(a_r, geom):
    x = a_r[:geom.mr].reshape(geom.m, geom.c)
    return jnp.transpose(x.reshape(geom.n, geom.h, geom.w, geom.c), (0, 3, 1, 2))


# --------------------------------------------------------------------------- #
# Core-layout step functions
# --------------------------------------------------------------------------- #
def rcell_bn0_stats(prep, geom, exc_r):
    """Raw BN0 statistics of conv(excitation, w_inh) — only needed for t=0."""
    act, wgt, _, stat = _specs(geom)
    return pl.pallas_call(
        _stats0_kernel,
        grid=(geom.n_par, geom.tpp),
        in_specs=[act, wgt],
        out_specs=(stat, stat),
        out_shape=(_stat_shape(geom), _stat_shape(geom)),
        compiler_params=_cparams(),
    )(exc_r, prep["w_inh_bd"])


def rcell_core_step(prep, geom, x_r, inh_r, exc_r, bn0_stats):
    """One rCell step on padded core-layout state.

    Returns (inh_new_r, exc_new_r, bn0_stats_for_next_step).
    """
    masked = geom.pad > 0
    act, wgt, vec, stat = _specs(geom)
    grid = (geom.n_par, geom.tpp)
    cp = _cparams()

    # ---- BN0 fold + pass 2: inhibitory branch (+ BN1 statistics) -----------
    scale0, shift0 = _bn_fold(bn0_stats[0], bn0_stats[1],
                              prep["bn0_w"], prep["bn0_b"], geom.m, geom.r, geom.c)
    w_inh_s = prep["w_inh_bd"] * _tile_vec(scale0, geom.r)   # fold BN0 scale
    shift0_t = _tile_vec(shift0, geom.r)

    inh_new_r, sum1, sq1 = pl.pallas_call(
        functools.partial(_inh_kernel, mr_valid=geom.mr, masked=masked),
        grid=grid,
        in_specs=[act, act, act, wgt, wgt, wgt, wgt, vec, vec, vec, vec],
        out_specs=(act, stat, stat),
        out_shape=(_act_shape(geom), _stat_shape(geom), _stat_shape(geom)),
        compiler_params=cp,
    )(x_r, inh_r, exc_r,
      prep["w_iw_bd"], prep["w_iu_bd"], w_inh_s, prep["w_exc_bd"],
      prep["gate_b_i"], shift0_t, prep["alpha_t"], prep["mu_t"])

    # ---- BN1 fold + pass 3: excitatory branch (+ BN0 statistics for t+1) ---
    scale1, shift1 = _bn_fold(sum1, sq1,
                              prep["bn1_w"], prep["bn1_b"], geom.m, geom.r, geom.c)
    w_exc_s = prep["w_exc_bd"] * _tile_vec(scale1, geom.r)   # fold BN1 scale
    shift1_t = _tile_vec(shift1, geom.r)

    exc_new_r, sum0n, sq0n = pl.pallas_call(
        functools.partial(_exc_kernel, mr_valid=geom.mr, masked=masked),
        grid=grid,
        in_specs=[act, act, act, wgt, wgt, wgt, wgt, vec, vec, vec, vec],
        out_specs=(act, stat, stat),
        out_shape=(_act_shape(geom), _stat_shape(geom), _stat_shape(geom)),
        compiler_params=cp,
    )(inh_r, exc_r, inh_new_r,
      prep["w_ew_bd"], prep["w_eu_bd"], w_exc_s, prep["w_inh_bd"],
      prep["gate_b_e"], shift1_t, prep["kappa_t"], prep["gamma_t"])

    return inh_new_r, exc_new_r, (sum0n, sq0n)


# --------------------------------------------------------------------------- #
# Public NCHW wrappers (PyTorch layout convention)
# --------------------------------------------------------------------------- #
def rcell_forward(params, input_nchw, cinput_nchw, inhibition_nchw, excitation_nchw):
    """Single rCell.forward step (use_attention=False, no_inh=False).

    Returns (inhibition, excitation).  `cinput` is only consumed by the attention
    branch and is ignored here (as in the non-attention PyTorch path).
    """
    del cinput_nchw  # unused without attention
    n, c, h, w = input_nchw.shape
    geom = _make_geom(n, c, h, w)
    prep = _prepare(params, geom)

    x_r = _to_core(input_nchw, geom)
    inh_r = _to_core(inhibition_nchw, geom)
    exc_r = _to_core(excitation_nchw, geom)

    stats0 = rcell_bn0_stats(prep, geom, exc_r)
    inh_new_r, exc_new_r, _ = rcell_core_step(prep, geom, x_r, inh_r, exc_r, stats0)
    return _from_core(inh_new_r, geom), _from_core(exc_new_r, geom)


def rcell_sequence_forward(params, inputs_tnchw, inhibition_nchw, excitation_nchw):
    """Run T rCell steps keeping the recurrent state in the lane-replicated core
    layout: NCHW conversion is paid once, the standalone BN0 statistics pass runs
    only for t=0 (subsequent steps reuse the statistics emitted by pass 3)."""
    t = inputs_tnchw.shape[0]
    n, c, h, w = inputs_tnchw.shape[1:]
    geom = _make_geom(n, c, h, w)
    prep = _prepare(params, geom)

    inh_r = _to_core(inhibition_nchw, geom)
    exc_r = _to_core(excitation_nchw, geom)
    stats0 = rcell_bn0_stats(prep, geom, exc_r)
    for step in range(t):
        x_r = _to_core(inputs_tnchw[step], geom)
        inh_r, exc_r, stats0 = rcell_core_step(prep, geom, x_r, inh_r, exc_r, stats0)
    return _from_core(inh_r, geom), _from_core(exc_r, geom)


# --------------------------------------------------------------------------- #
# Synthetic parameter init mirroring rCell.__init__ shapes/values.
# Conv weights stored pre-transposed as (C_in, C_out) for the matmul form.
# --------------------------------------------------------------------------- #
def init_params(key, hidden_size, timesteps):
    C = hidden_size
    ks = jax.random.split(key, 8)

    def orthogonal(k, nn_):
        a = jax.random.normal(k, (nn_, nn_), jnp.float32)
        q, rr = jnp.linalg.qr(a)
        return q * jnp.sign(jnp.diag(rr))[None, :]

    w_inh = orthogonal(ks[0], C)
    w_exc = orthogonal(ks[1], C)
    i_w_gate_w = orthogonal(ks[2], C)
    i_u_gate_w = orthogonal(ks[3], C)
    e_w_gate_w = orthogonal(ks[4], C)
    e_u_gate_w = orthogonal(ks[5], C)

    # biases: i_w ~ U(1, timesteps-1) (the .log() in PyTorch is not in-place);
    # i_u default conv init; e_* = -i_*
    i_w_gate_b = jax.random.uniform(ks[6], (1, C), jnp.float32,
                                    1.0, float(timesteps - 1))
    bound = 1.0 / (C ** 0.5)
    i_u_gate_b = jax.random.uniform(ks[7], (1, C), jnp.float32, -bound, bound)
    e_w_gate_b = -i_w_gate_b
    e_u_gate_b = -i_u_gate_b

    return dict(
        w_inh=w_inh, w_exc=w_exc,
        i_w_gate_w=i_w_gate_w, i_w_gate_b=i_w_gate_b,
        i_u_gate_w=i_u_gate_w, i_u_gate_b=i_u_gate_b,
        e_w_gate_w=e_w_gate_w, e_w_gate_b=e_w_gate_b,
        e_u_gate_w=e_u_gate_w, e_u_gate_b=e_u_gate_b,
        alpha=jnp.ones((1, C), jnp.float32),
        mu=jnp.zeros((1, C), jnp.float32),
        gamma=jnp.zeros((1, C), jnp.float32),
        kappa=jnp.ones((1, C), jnp.float32),
        bn0_w=jnp.full((1, C), 0.1, jnp.float32), bn0_b=jnp.zeros((1, C), jnp.float32),
        bn1_w=jnp.full((1, C), 0.1, jnp.float32), bn1_b=jnp.zeros((1, C), jnp.float32),
    )


# --------------------------------------------------------------------------- #
# Pure-JAX reference (straight translation of the PyTorch forward) for checking
# --------------------------------------------------------------------------- #
def _rcell_reference(params, x_nchw, inh_nchw, exc_nchw):
    n, c, h, w = x_nchw.shape
    to_mc = lambda a: jnp.transpose(a, (0, 2, 3, 1)).reshape(-1, c).astype(jnp.float32)
    from_mc = lambda a: jnp.transpose(a.reshape(n, h, w, c), (0, 3, 1, 2))
    dot = functools.partial(jnp.dot, precision="highest")

    def bn(v, g, b):
        mean = v.mean(axis=0, keepdims=True)
        var = ((v - mean) ** 2).mean(axis=0, keepdims=True)
        return ((v - mean) * jax.lax.rsqrt(var + _BN_EPS) * g.reshape(1, -1)
                + b.reshape(1, -1))

    x, inh, exc = to_mc(x_nchw), to_mc(inh_nchw), to_mc(exc_nchw)
    p = params
    inh_intx = bn(dot(exc, p["w_inh"]), p["bn0_w"], p["bn0_b"])
    inhibition_hat = _softplus(
        x - _softplus(inh_intx * (p["alpha"] * inh + p["mu"])))
    inh_gate = jax.nn.sigmoid(dot(x, p["i_w_gate_w"]) + p["i_w_gate_b"]
                              + dot(inh, p["i_u_gate_w"]) + p["i_u_gate_b"])
    inh_new = (1.0 - inh_gate) * inh + inh_gate * inhibition_hat

    exc_gate = jax.nn.sigmoid(dot(inh, p["e_w_gate_w"]) + p["e_w_gate_b"]
                              + dot(exc, p["e_u_gate_w"]) + p["e_u_gate_b"])
    exc_intx = bn(dot(inh_new, p["w_exc"]), p["bn1_w"], p["bn1_b"])
    excitation_hat = _softplus(exc_intx * (p["kappa"] * inh_new + p["gamma"]))
    exc_new = (1.0 - exc_gate) * exc + exc_gate * excitation_hat
    return from_mc(inh_new), from_mc(exc_new)


# TODO(synk): the use_attention=True branch depends on the undefined `cf`
# complex-valued conv library (RealToComplexConvolution2D_1D etc.); only the
# default non-attention path is implemented (the PyTorch code would raise
# NameError on att_gate_decoded/new_cinput there anyway).


if __name__ == "__main__":
    key = jax.random.PRNGKey(0)
    N, C, H, W = 2, 32, 16, 16
    timesteps = 8

    pkey, dkey = jax.random.split(key)
    params = init_params(pkey, C, timesteps)

    k1, k2, k3, k4, k5 = jax.random.split(dkey, 5)
    input_ = jax.random.normal(k1, (N, C, H, W), jnp.float32)
    cinput = jax.random.normal(k2, (N, C, H, W), jnp.float32)
    inhibition = jax.random.normal(k3, (N, C, H, W), jnp.float32)
    excitation = jax.random.normal(k4, (N, C, H, W), jnp.float32)

    fwd = jax.jit(rcell_forward)

    # --- single step, small shape (single tile, no padding) -----------------
    inh_out, exc_out = fwd(params, input_, cinput, inhibition, excitation)
    jax.block_until_ready((inh_out, exc_out))
    assert inh_out.shape == (N, C, H, W) and exc_out.shape == (N, C, H, W)
    ref_inh, ref_exc = _rcell_reference(params, input_, inhibition, excitation)
    assert bool(jnp.allclose(inh_out, ref_inh, atol=2e-2, rtol=2e-2)), "inhibition mismatch (small)"
    assert bool(jnp.allclose(exc_out, ref_exc, atol=2e-2, rtol=2e-2)), "excitation mismatch (small)"

    # --- single step, larger shape: exercises multi-tile pipelining, the
    #     megacore "parallel" split of the reduction passes, and the padded /
    #     masked ragged last tile ------------------------------------------------
    Hm = Wm = 112
    km = jax.random.split(k5, 3)
    x_m = jax.random.normal(km[0], (N, C, Hm, Wm), jnp.float32)
    inh_m = jax.random.normal(km[1], (N, C, Hm, Wm), jnp.float32)
    exc_m = jax.random.normal(km[2], (N, C, Hm, Wm), jnp.float32)
    inh_out_m, exc_out_m = fwd(params, x_m, x_m, inh_m, exc_m)
    jax.block_until_ready((inh_out_m, exc_out_m))
    ref_inh_m, ref_exc_m = _rcell_reference(params, x_m, inh_m, exc_m)
    assert bool(jnp.allclose(inh_out_m, ref_inh_m, atol=2e-2, rtol=2e-2)), "inhibition mismatch (large)"
    assert bool(jnp.allclose(exc_out_m, ref_exc_m, atol=2e-2, rtol=2e-2)), "excitation mismatch (large)"

    # --- multi-timestep sequence: state stays in the core layout, NCHW
    #     conversion paid once, BN0 statistics for t>0 come from pass 3 ----------
    T = 4
    xs = jax.random.normal(k2, (T, N, C, H, W), jnp.float32)
    seq = jax.jit(rcell_sequence_forward)
    inh_seq, exc_seq = seq(params, xs, inhibition, excitation)
    jax.block_until_ready((inh_seq, exc_seq))
    r_inh, r_exc = inhibition, excitation
    for t in range(T):
        r_inh, r_exc = _rcell_reference(params, xs[t], r_inh, r_exc)
    assert bool(jnp.allclose(inh_seq, r_inh, atol=2e-2, rtol=2e-2)), "inhibition mismatch (sequence)"
    assert bool(jnp.allclose(exc_seq, r_exc, atol=2e-2, rtol=2e-2)), "excitation mismatch (sequence)"

    print("KERNEL_OK")
</pallas_src>

<mosaic_0001>
module attributes {stable_mosaic.version = 11 : i64} {
  func.func @_stats0_kernel(%arg0: i32, %arg1: i32, %arg2: memref<128x128xf32, #tpu.memory_space<vmem>>, %arg3: memref<128x128xf32, #tpu.memory_space<vmem>>, %arg4: memref<1x1x128xf32, #tpu.memory_space<vmem>>, %arg5: memref<1x1x128xf32, #tpu.memory_space<vmem>>) attributes {dimension_semantics = [#tpu.dimension_semantics<parallel>, #tpu.dimension_semantics<arbitrary>], iteration_bounds = array<i64: 1, 1>, scalar_prefetch = 0 : i64, scratch_operands = 0 : i64, tpu.core_type = #tpu.core_type<tc>, window_params = [{transform_indices = @transform_0, window_bounds = array<i64: 128, 128>}, {pipeline_mode = #tpu.pipeline_mode<synchronous>, transform_indices = @transform_1, window_bounds = array<i64: 128, 128>}, {transform_indices = @transform_2, window_bounds = array<i64: 1, 1, 128>}, {transform_indices = @transform_3, window_bounds = array<i64: 1, 1, 128>}]} {
    %c0_i32 = arith.constant 0 : i32
    %0 = arith.cmpi eq, %arg1, %c0_i32 : i32
    %1 = arith.extui %0 : i1 to i32
    %c0_i32_0 = arith.constant 0 : i32
    %2 = arith.cmpi ne, %1, %c0_i32_0 : i32
    scf.if %2 {
      %cst_18 = arith.constant 0.000000e+00 : f32
      %19 = vector.broadcast %cst_18 : f32 to vector<1x1x128xf32>
      %c0_19 = arith.constant 0 : index
      %c0_20 = arith.constant 0 : index
      %c0_21 = arith.constant 0 : index
      %20 = vector.load %arg4[%c0_19, %c0_20, %c0_21] : memref<1x1x128xf32, #tpu.memory_space<vmem>>, vector<1x1x128xf32>
      tpu.vector_store %arg4[%c0_19, %c0_20, %c0_21], %19 {strides = array<i32>} : memref<1x1x128xf32, #tpu.memory_space<vmem>>, vector<1x1x128xf32>,
      %cst_22 = arith.constant 0.000000e+00 : f32
      %21 = vector.broadcast %cst_22 : f32 to vector<1x1x128xf32>
      %c0_23 = arith.constant 0 : index
      %c0_24 = arith.constant 0 : index
      %c0_25 = arith.constant 0 : index
      %22 = vector.load %arg5[%c0_23, %c0_24, %c0_25] : memref<1x1x128xf32, #tpu.memory_space<vmem>>, vector<1x1x128xf32>
      tpu.vector_store %arg5[%c0_23, %c0_24, %c0_25], %21 {strides = array<i32>} : memref<1x1x128xf32, #tpu.memory_space<vmem>>, vector<1x1x128xf32>,
    } else {
    }
    %c0 = arith.constant 0 : index
    %c0_1 = arith.constant 0 : index
    %3 = vector.load %arg2[%c0, %c0_1] : memref<128x128xf32, #tpu.memory_space<vmem>>, vector<128x128xf32>
    %c0_2 = arith.constant 0 : index
    %c0_3 = arith.constant 0 : index
    %4 = vector.load %arg3[%c0_2, %c0_3] : memref<128x128xf32, #tpu.memory_space<vmem>>, vector<128x128xf32>
    %cst = arith.constant dense<0.000000e+00> : vector<128x128xf32>
    %5 = tpu.matmul %3, %4, %cst {dimension_numbers = #tpu.dot_dimension_numbers<[1], [0], [0], [1], [0, 0, 1, 1], [], []>} : vector<128x128xf32>, vector<128x128xf32>, vector<128x128xf32> -> vector<128x128xf32>
    %c0_4 = arith.constant 0 : index
    %c0_5 = arith.constant 0 : index
    %c0_6 = arith.constant 0 : index
    %6 = vector.load %arg4[%c0_4, %c0_5, %c0_6] : memref<1x1x128xf32, #tpu.memory_space<vmem>>, vector<1x1x128xf32>
    %cst_7 = arith.constant dense<0.000000e+00> : vector<128xf32>
    %7 = vector.multi_reduction <add>, %5, %cst_7 [0] : vector<128x128xf32> to vector<128xf32>
    %8 = vector.shape_cast %7 : vector<128xf32> to vector<1x128xf32>
    %9 = vector.shape_cast %8 : vector<1x128xf32> to vector<1x1x128xf32>
    %10 = arith.addf %6, %9 : vector<1x1x128xf32>
    %c0_8 = arith.constant 0 : index
    %c0_9 = arith.constant 0 : index
    %c0_10 = arith.constant 0 : index
    %11 = vector.load %arg4[%c0_8, %c0_9, %c0_10] : memref<1x1x128xf32, #tpu.memory_space<vmem>>, vector<1x1x128xf32>
    tpu.vector_store %arg4[%c0_8, %c0_9, %c0_10], %10 {strides = array<i32>} : memref<1x1x128xf32, #tpu.memory_space<vmem>>, vector<1x1x128xf32>,
    %c0_11 = arith.constant 0 : index
    %c0_12 = arith.constant 0 : index
    %c0_13 = arith.constant 0 : index
    %12 = vector.load %arg5[%c0_11, %c0_12, %c0_13] : memref<1x1x128xf32, #tpu.memory_space<vmem>>, vector<1x1x128xf32>
    %13 = arith.mulf %5, %5 : vector<128x128xf32>
    %cst_14 = arith.constant dense<0.000000e+00> : vector<128xf32>
    %14 = vector.multi_reduction <add>, %13, %cst_14 [0] : vector<128x128xf32> to vector<128xf32>
    %15 = vector.shape_cast %14 : vector<128xf32> to vector<1x128xf32>
    %16 = vector.shape_cast %15 : vector<1x128xf32> to vector<1x1x128xf32>
    %17 = arith.addf %12, %16 : vector<1x1x128xf32>
    %c0_15 = arith.constant 0 : index
    %c0_16 = arith.constant 0 : index
    %c0_17 = arith.constant 0 : index
    %18 = vector.load %arg5[%c0_15, %c0_16, %c0_17] : memref<1x1x128xf32, #tpu.memory_space<vmem>>, vector<1x1x128xf32>
    tpu.vector_store %arg5[%c0_15, %c0_16, %c0_17], %17 {strides = array<i32>} : memref<1x1x128xf32, #tpu.memory_space<vmem>>, vector<1x1x128xf32>,
    return
  }
  func.func @transform_0(%arg0: i32, %arg1: i32) -> (i32, i32) {
    %c1_i32 = arith.constant 1 : i32
    %0 = arith.muli %arg0, %c1_i32 : i32
    %1 = arith.addi %0, %arg1 : i32
    %c0_i32 = arith.constant 0 : i32
    %c0_i32_0 = arith.constant 0 : i32
    return %1, %c0_i32 : i32, i32
  }
  func.func @transform_1(%arg0: i32, %arg1: i32) -> (i32, i32) {
    %c0_i32 = arith.constant 0 : i32
    %c0_i32_0 = arith.constant 0 : i32
    %c0_i32_1 = arith.constant 0 : i32
    return %c0_i32, %c0_i32_0 : i32, i32
  }
  func.func @transform_2(%arg0: i32, %arg1: i32) -> (i32, i32, i32) {
    %c0_i32 = arith.constant 0 : i32
    %c0_i32_0 = arith.constant 0 : i32
    %c0_i32_1 = arith.constant 0 : i32
    return %arg0, %c0_i32, %c0_i32_0 : i32, i32, i32
  }
  func.func @transform_3(%arg0: i32, %arg1: i32) -> (i32, i32, i32) {
    %c0_i32 = arith.constant 0 : i32
    %c0_i32_0 = arith.constant 0 : i32
    %c0_i32_1 = arith.constant 0 : i32
    return %arg0, %c0_i32, %c0_i32_0 : i32, i32, i32
  }
}

module attributes {stable_mosaic.version = 11 : i64} {
  func.func @_exc_kernel(%arg0: i32, %arg1: i32, %arg2: memref<128x128xf32, #tpu.memory_space<vmem>>, %arg3: memref<128x128xf32, #tpu.memory_space<vmem>>, %arg4: memref<128x128xf32, #tpu.memory_space<vmem>>, %arg5: memref<128x128xf32, #tpu.memory_space<vmem>>, %arg6: memref<128x128xf32, #tpu.memory_space<vmem>>, %arg7: memref<128x128xf32, #tpu.memory_space<vmem>>, %arg8: memref<128x128xf32, #tpu.memory_space<vmem>>, %arg9: memref<1x128xf32, #tpu.memory_space<vmem>>, %arg10: memref<1x128xf32, #tpu.memory_space<vmem>>, %arg11: memref<1x128xf32, #tpu.memory_space<vmem>>, %arg12: memref<1x128xf32, #tpu.memory_space<vmem>>, %arg13: memref<128x128xf32, #tpu.memory_space<vmem>>, %arg14: memref<1x1x128xf32, #tpu.memory_space<vmem>>, %arg15: memref<1x1x128xf32, #tpu.memory_space<vmem>>) attributes {dimension_semantics = [#tpu.dimension_semantics<parallel>, #tpu.dimension_semantics<arbitrary>], iteration_bounds = array<i64: 1, 1>, scalar_prefetch = 0 : i64, scratch_operands = 0 : i64, tpu.core_type = #tpu.core_type<tc>, window_params = [{transform_indices = @transform_0, window_bounds = array<i64: 128, 128>}, {transform_indices = @transform_1, window_bounds = array<i64: 128, 128>}, {transform_indices = @transform_2, window_bounds = array<i64: 128, 128>}, {pipeline_mode = #tpu.pipeline_mode<synchronous>, transform_indices = @transform_3, window_bounds = array<i64: 128, 128>}, {pipeline_mode = #tpu.pipeline_mode<synchronous>, transform_indices = @transform_4, window_bounds = array<i64: 128, 128>}, {pipeline_mode = #tpu.pipeline_mode<synchronous>, transform_indices = @transform_5, window_bounds = array<i64: 128, 128>}, {pipeline_mode = #tpu.pipeline_mode<synchronous>, transform_indices = @transform_6, window_bounds = array<i64: 128, 128>}, {pipeline_mode = #tpu.pipeline_mode<synchronous>, transform_indices = @transform_7, window_bounds = array<i64: 1, 128>}, {pipeline_mode = #tpu.pipeline_mode<synchronous>, transform_indices = @transform_8, window_bounds = array<i64: 1, 128>}, {pipeline_mode = #tpu.pipeline_mode<synchronous>, transform_indices = @transform_9, window_bounds = array<i64: 1, 128>}, {pipeline_mode = #tpu.pipeline_mode<synchronous>, transform_indices = @transform_10, window_bounds = array<i64: 1, 128>}, {transform_indices = @transform_11, window_bounds = array<i64: 128, 128>}, {transform_indices = @transform_12, window_bounds = array<i64: 1, 1, 128>}, {transform_indices = @transform_13, window_bounds = array<i64: 1, 1, 128>}]} {
    %c0_i32 = arith.constant 0 : i32
    %0 = arith.cmpi eq, %arg1, %c0_i32 : i32
    %1 = arith.extui %0 : i1 to i32
    %c0_i32_0 = arith.constant 0 : i32
    %2 = arith.cmpi ne, %1, %c0_i32_0 : i32
    scf.if %2 {
      %cst_45 = arith.constant 0.000000e+00 : f32
      %60 = vector.broadcast %cst_45 : f32 to vector<1x1x128xf32>
      %c0_46 = arith.constant 0 : index
      %c0_47 = arith.constant 0 : index
      %c0_48 = arith.constant 0 : index
      %61 = vector.load %arg14[%c0_46, %c0_47, %c0_48] : memref<1x1x128xf32, #tpu.memory_space<vmem>>, vector<1x1x128xf32>
      tpu.vector_store %arg14[%c0_46, %c0_47, %c0_48], %60 {strides = array<i32>} : memref<1x1x128xf32, #tpu.memory_space<vmem>>, vector<1x1x128xf32>,
      %cst_49 = arith.constant 0.000000e+00 : f32
      %62 = vector.broadcast %cst_49 : f32 to vector<1x1x128xf32>
      %c0_50 = arith.constant 0 : index
      %c0_51 = arith.constant 0 : index
      %c0_52 = arith.constant 0 : index
      %63 = vector.load %arg15[%c0_50, %c0_51, %c0_52] : memref<1x1x128xf32, #tpu.memory_space<vmem>>, vector<1x1x128xf32>
      tpu.vector_store %arg15[%c0_50, %c0_51, %c0_52], %62 {strides = array<i32>} : memref<1x1x128xf32, #tpu.memory_space<vmem>>, vector<1x1x128xf32>,
    } else {
    }
    %c0 = arith.constant 0 : index
    %c0_1 = arith.constant 0 : index
    %3 = vector.load %arg2[%c0, %c0_1] : memref<128x128xf32, #tpu.memory_space<vmem>>, vector<128x128xf32>
    %c0_2 = arith.constant 0 : index
    %c0_3 = arith.constant 0 : index
    %4 = vector.load %arg3[%c0_2, %c0_3] : memref<128x128xf32, #tpu.memory_space<vmem>>, vector<128x128xf32>
    %c0_4 = arith.constant 0 : index
    %c0_5 = arith.constant 0 : index
    %5 = vector.load %arg4[%c0_4, %c0_5] : memref<128x128xf32, #tpu.memory_space<vmem>>, vector<128x128xf32>
    %c0_6 = arith.constant 0 : index
    %c0_7 = arith.constant 0 : index
    %6 = vector.load %arg5[%c0_6, %c0_7] : memref<128x128xf32, #tpu.memory_space<vmem>>, vector<128x128xf32>
    %cst = arith.constant dense<0.000000e+00> : vector<128x128xf32>
    %7 = tpu.matmul %3, %6, %cst {dimension_numbers = #tpu.dot_dimension_numbers<[1], [0], [0], [1], [0, 0, 1, 1], [], []>} : vector<128x128xf32>, vector<128x128xf32>, vector<128x128xf32> -> vector<128x128xf32>
    %c0_8 = arith.constant 0 : index
    %c0_9 = arith.constant 0 : index
    %8 = vector.load %arg6[%c0_8, %c0_9] : memref<128x128xf32, #tpu.memory_space<vmem>>, vector<128x128xf32>
    %cst_10 = arith.constant dense<0.000000e+00> : vector<128x128xf32>
    %9 = tpu.matmul %4, %8, %cst_10 {dimension_numbers = #tpu.dot_dimension_numbers<[1], [0], [0], [1], [0, 0, 1, 1], [], []>} : vector<128x128xf32>, vector<128x128xf32>, vector<128x128xf32> -> vector<128x128xf32>
    %10 = arith.addf %7, %9 : vector<128x128xf32>
    %c0_11 = arith.constant 0 : index
    %c0_12 = arith.constant 0 : index
    %11 = vector.load %arg9[%c0_11, %c0_12] : memref<1x128xf32, #tpu.memory_space<vmem>>, vector<1x128xf32>
    %12 = vector.broadcast %11 : vector<1x128xf32> to vector<128x128xf32>
    %13 = arith.addf %10, %12 : vector<128x128xf32>
    %14 = arith.negf %13 : vector<128x128xf32>
    %15 = math.exp %14 : vector<128x128xf32>
    %cst_13 = arith.constant 1.000000e+00 : f32
    %16 = vector.broadcast %cst_13 : f32 to vector<128x128xf32>
    %17 = arith.addf %16, %15 : vector<128x128xf32>
    %18 = arith.divf %16, %17 : vector<128x128xf32>
    %c0_14 = arith.constant 0 : index
    %c0_15 = arith.constant 0 : index
    %19 = vector.load %arg7[%c0_14, %c0_15] : memref<128x128xf32, #tpu.memory_space<vmem>>, vector<128x128xf32>
    %cst_16 = arith.constant dense<0.000000e+00> : vector<128x128xf32>
    %20 = tpu.matmul %5, %19, %cst_16 {dimension_numbers = #tpu.dot_dimension_numbers<[1], [0], [0], [1], [0, 0, 1, 1], [], []>} : vector<128x128xf32>, vector<128x128xf32>, vector<128x128xf32> -> vector<128x128xf32>
    %c0_17 = arith.constant 0 : index
    %c0_18 = arith.constant 0 : index
    %21 = vector.load %arg10[%c0_17, %c0_18] : memref<1x128xf32, #tpu.memory_space<vmem>>, vector<1x128xf32>
    %22 = vector.broadcast %21 : vector<1x128xf32> to vector<128x128xf32>
    %23 = arith.addf %20, %22 : vector<128x128xf32>
    %c0_19 = arith.constant 0 : index
    %c0_20 = arith.constant 0 : index
    %24 = vector.load %arg11[%c0_19, %c0_20] : memref<1x128xf32, #tpu.memory_space<vmem>>, vector<1x128xf32>
    %25 = vector.broadcast %24 : vector<1x128xf32> to vector<128x128xf32>
    %26 = arith.mulf %25, %5 : vector<128x128xf32>
    %c0_21 = arith.constant 0 : index
    %c0_22 = arith.constant 0 : index
    %27 = vector.load %arg12[%c0_21, %c0_22] : memref<1x128xf32, #tpu.memory_space<vmem>>, vector<1x128xf32>
    %28 = vector.broadcast %27 : vector<1x128xf32> to vector<128x128xf32>
    %29 = arith.addf %26, %28 : vector<128x128xf32>
    %30 = arith.mulf %23, %29 : vector<128x128xf32>
    %cst_23 = arith.constant 0.000000e+00 : f32
    %31 = vector.broadcast %cst_23 : f32 to vector<128x128xf32>
    %32 = arith.maximumf %30, %31 : vector<128x128xf32>
    %33 = math.absf %30 : vector<128x128xf32>
    %cst_24 = arith.constant 0.000000e+00 : f32
    %34 = vector.broadcast %cst_24 : f32 to vector<128x128xf32>
    %35 = arith.subf %34, %33 : vector<128x128xf32>
    %36 = math.exp %35 : vector<128x128xf32>
    %37 = math.log1p %36 : vector<128x128xf32>
    %38 = arith.addf %32, %37 : vector<128x128xf32>
    %cst_25 = arith.constant 1.000000e+00 : f32
    %39 = vector.broadcast %cst_25 : f32 to vector<128x128xf32>
    %40 = arith.subf %39, %18 : vector<128x128xf32>
    %41 = arith.mulf %40, %4 : vector<128x128xf32>
    %42 = arith.mulf %18, %38 : vector<128x128xf32>
    %43 = arith.addf %41, %42 : vector<128x128xf32>
    %c0_26 = arith.constant 0 : index
    %c0_27 = arith.constant 0 : index
    %44 = vector.load %arg13[%c0_26, %c0_27] : memref<128x128xf32, #tpu.memory_space<vmem>>, vector<128x128xf32>
    tpu.vector_store %arg13[%c0_26, %c0_27], %43 {strides = array<i32>} : memref<128x128xf32, #tpu.memory_space<vmem>>, vector<128x128xf32>,
    %c0_28 = arith.constant 0 : index
    %c0_29 = arith.constant 0 : index
    %45 = vector.load %arg8[%c0_28, %c0_29] : memref<128x128xf32, #tpu.memory_space<vmem>>, vector<128x128xf32>
    %cst_30 = arith.constant dense<0.000000e+00> : vector<128x128xf32>
    %46 = tpu.matmul %43, %45, %cst_30 {dimension_numbers = #tpu.dot_dimension_numbers<[1], [0], [0], [1], [0, 0, 1, 1], [], []>} : vector<128x128xf32>, vector<128x128xf32>, vector<128x128xf32> -> vector<128x128xf32>
    %c0_31 = arith.constant 0 : index
    %c0_32 = arith.constant 0 : index
    %c0_33 = arith.constant 0 : index
    %47 = vector.load %arg14[%c0_31, %c0_32, %c0_33] : memref<1x1x128xf32, #tpu.memory_space<vmem>>, vector<1x1x128xf32>
    %cst_34 = arith.constant dense<0.000000e+00> : vector<128xf32>
    %48 = vector.multi_reduction <add>, %46, %cst_34 [0] : vector<128x128xf32> to vector<128xf32>
    %49 = vector.shape_cast %48 : vector<128xf32> to vector<1x128xf32>
    %50 = vector.shape_cast %49 : vector<1x128xf32> to vector<1x1x128xf32>
    %51 = arith.addf %47, %50 : vector<1x1x128xf32>
    %c0_35 = arith.constant 0 : index
    %c0_36 = arith.constant 0 : index
    %c0_37 = arith.constant 0 : index
    %52 = vector.load %arg14[%c0_35, %c0_36, %c0_37] : memref<1x1x128xf32, #tpu.memory_space<vmem>>, vector<1x1x128xf32>
    tpu.vector_store %arg14[%c0_35, %c0_36, %c0_37], %51 {strides = array<i32>} : memref<1x1x128xf32, #tpu.memory_space<vmem>>, vector<1x1x128xf32>,
    %c0_38 = arith.constant 0 : index
    %c0_39 = arith.constant 0 : index
    %c0_40 = arith.constant 0 : index
    %53 = vector.load %arg15[%c0_38, %c0_39, %c0_40] : memref<1x1x128xf32, #tpu.memory_space<vmem>>, vector<1x1x128xf32>
    %54 = arith.mulf %46, %46 : vector<128x128xf32>
    %cst_41 = arith.constant dense<0.000000e+00> : vector<128xf32>
    %55 = vector.multi_reduction <add>, %54, %cst_41 [0] : vector<128x128xf32> to vector<128xf32>
    %56 = vector.shape_cast %55 : vector<128xf32> to vector<1x128xf32>
    %57 = vector.shape_cast %56 : vector<1x128xf32> to vector<1x1x128xf32>
    %58 = arith.addf %53, %57 : vector<1x1x128xf32>
    %c0_42 = arith.constant 0 : index
    %c0_43 = arith.constant 0 : index
    %c0_44 = arith.constant 0 : index
    %59 = vector.load %arg15[%c0_42, %c0_43, %c0_44] : memref<1x1x128xf32, #tpu.memory_space<vmem>>, vector<1x1x128xf32>
    tpu.vector_store %arg15[%c0_42, %c0_43, %c0_44], %58 {strides = array<i32>} : memref<1x1x128xf32, #tpu.memory_space<vmem>>, vector<1x1x128xf32>,
    return
  }
  func.func @transform_0(%arg0: i32, %arg1: i32) -> (i32, i32) {
    %c1_i32 = arith.constant 1 : i32
    %0 = arith.muli %arg0, %c1_i32 : i32
    %1 = arith.addi %0, %arg1 : i32
    %c0_i32 = arith.constant 0 : i32
    %c0_i32_0 = arith.constant 0 : i32
    return %1, %c0_i32 : i32, i32
  }
  func.func @transform_1(%arg0: i32, %arg1: i32) -> (i32, i32) {
    %c1_i32 = arith.constant 1 : i32
    %0 = arith.muli %arg0, %c1_i32 : i32
    %1 = arith.addi %0, %arg1 : i32
    %c0_i32 = arith.constant 0 : i32
    %c0_i32_0 = arith.constant 0 : i32
    return %1, %c0_i32 : i32, i32
  }
  func.func @transform_2(%arg0: i32, %arg1: i32) -> (i32, i32) {
    %c1_i32 = arith.constant 1 : i32
    %0 = arith.muli %arg0, %c1_i32 : i32
    %1 = arith.addi %0, %arg1 : i32
    %c0_i32 = arith.constant 0 : i32
    %c0_i32_0 = arith.constant 0 : i32
    return %1, %c0_i32 : i32, i32
  }
  func.func @transform_3(%arg0: i32, %arg1: i32) -> (i32, i32) {
    %c0_i32 = arith.constant 0 : i32
    %c0_i32_0 = arith.constant 0 : i32
    %c0_i32_1 = arith.constant 0 : i32
    return %c0_i32, %c0_i32_0 : i32, i32
  }
  func.func @transform_4(%arg0: i32, %arg1: i32) -> (i32, i32) {
    %c0_i32 = arith.constant 0 : i32
    %c0_i32_0 = arith.constant 0 : i32
    %c0_i32_1 = arith.constant 0 : i32
    return %c0_i32, %c0_i32_0 : i32, i32
  }
  func.func @transform_5(%arg0: i32, %arg1: i32) -> (i32, i32) {
    %c0_i32 = arith.constant 0 : i32
    %c0_i32_0 = arith.constant 0 : i32
    %c0_i32_1 = arith.constant 0 : i32
    return %c0_i32, %c0_i32_0 : i32, i32
  }
  func.func @transform_6(%arg0: i32, %arg1: i32) -> (i32, i32) {
    %c0_i32 = arith.constant 0 : i32
    %c0_i32_0 = arith.constant 0 : i32
    %c0_i32_1 = arith.constant 0 : i32
    return %c0_i32, %c0_i32_0 : i32, i32
  }
  func.func @transform_7(%arg0: i32, %arg1: i32) -> (i32, i32) {
    %c0_i32 = arith.constant 0 : i32
    %c0_i32_0 = arith.constant 0 : i32
    %c0_i32_1 = arith.constant 0 : i32
    return %c0_i32, %c0_i32_0 : i32, i32
  }
  func.func @transform_8(%arg0: i32, %arg1: i32) -> (i32, i32) {
    %c0_i32 = arith.constant 0 : i32
    %c0_i32_0 = arith.constant 0 : i32
    %c0_i32_1 = arith.constant 0 : i32
    return %c0_i32, %c0_i32_0 : i32, i32
  }
  func.func @transform_9(%arg0: i32, %arg1: i32) -> (i32, i32) {
    %c0_i32 = arith.constant 0 : i32
    %c0_i32_0 = arith.constant 0 : i32
    %c0_i32_1 = arith.constant 0 : i32
    return %c0_i32, %c0_i32_0 : i32, i32
  }
  func.func @transform_10(%arg0: i32, %arg1: i32) -> (i32, i32) {
    %c0_i32 = arith.constant 0 : i32
    %c0_i32_0 = arith.constant 0 : i32
    %c0_i32_1 = arith.constant 0 : i32
    return %c0_i32, %c0_i32_0 : i32, i32
  }
  func.func @transform_11(%arg0: i32, %arg1: i32) -> (i32, i32) {
    %c1_i32 = arith.constant 1 : i32
    %0 = arith.muli %arg0, %c1_i32 : i32
    %1 = arith.addi %0, %arg1 : i32
    %c0_i32 = arith.constant 0 : i32
    %c0_i32_0 = arith.constant 0 : i32
    return %1, %c0_i32 : i32, i32
  }
  func.func @transform_12(%arg0: i32, %arg1: i32) -> (i32, i32, i32) {
    %c0_i32 = arith.constant 0 : i32
    %c0_i32_0 = arith.constant 0 : i32
    %c0_i32_1 = arith.constant 0 : i32
    return %arg0, %c0_i32, %c0_i32_0 : i32, i32, i32
  }
  func.func @transform_13(%arg0: i32, %arg1: i32) -> (i32, i32, i32) {
    %c0_i32 = arith.constant 0 : i32
    %c0_i32_0 = arith.constant 0 : i32
    %c0_i32_1 = arith.constant 0 : i32
    return %arg0, %c0_i32, %c0_i32_0 : i32, i32, i32
  }
}

module attributes {stable_mosaic.version = 11 : i64} {
  func.func @_inh_kernel(%arg0: i32, %arg1: i32, %arg2: memref<128x128xf32, #tpu.memory_space<vmem>>, %arg3: memref<128x128xf32, #tpu.memory_space<vmem>>, %arg4: memref<128x128xf32, #tpu.memory_space<vmem>>, %arg5: memref<128x128xf32, #tpu.memory_space<vmem>>, %arg6: memref<128x128xf32, #tpu.memory_space<vmem>>, %arg7: memref<128x128xf32, #tpu.memory_space<vmem>>, %arg8: memref<128x128xf32, #tpu.memory_space<vmem>>, %arg9: memref<1x128xf32, #tpu.memory_space<vmem>>, %arg10: memref<1x128xf32, #tpu.memory_space<vmem>>, %arg11: memref<1x128xf32, #tpu.memory_space<vmem>>, %arg12: memref<1x128xf32, #tpu.memory_space<vmem>>, %arg13: memref<128x128xf32, #tpu.memory_space<vmem>>, %arg14: memref<1x1x128xf32, #tpu.memory_space<vmem>>, %arg15: memref<1x1x128xf32, #tpu.memory_space<vmem>>) attributes {dimension_semantics = [#tpu.dimension_semantics<parallel>, #tpu.dimension_semantics<arbitrary>], iteration_bounds = array<i64: 1, 1>, scalar_prefetch = 0 : i64, scratch_operands = 0 : i64, tpu.core_type = #tpu.core_type<tc>, window_params = [{transform_indices = @transform_0, window_bounds = array<i64: 128, 128>}, {transform_indices = @transform_1, window_bounds = array<i64: 128, 128>}, {transform_indices = @transform_2, window_bounds = array<i64: 128, 128>}, {pipeline_mode = #tpu.pipeline_mode<synchronous>, transform_indices = @transform_3, window_bounds = array<i64: 128, 128>}, {pipeline_mode = #tpu.pipeline_mode<synchronous>, transform_indices = @transform_4, window_bounds = array<i64: 128, 128>}, {pipeline_mode = #tpu.pipeline_mode<synchronous>, transform_indices = @transform_5, window_bounds = array<i64: 128, 128>}, {pipeline_mode = #tpu.pipeline_mode<synchronous>, transform_indices = @transform_6, window_bounds = array<i64: 128, 128>}, {pipeline_mode = #tpu.pipeline_mode<synchronous>, transform_indices = @transform_7, window_bounds = array<i64: 1, 128>}, {pipeline_mode = #tpu.pipeline_mode<synchronous>, transform_indices = @transform_8, window_bounds = array<i64: 1, 128>}, {pipeline_mode = #tpu.pipeline_mode<synchronous>, transform_indices = @transform_9, window_bounds = array<i64: 1, 128>}, {pipeline_mode = #tpu.pipeline_mode<synchronous>, transform_indices = @transform_10, window_bounds = array<i64: 1, 128>}, {transform_indices = @transform_11, window_bounds = array<i64: 128, 128>}, {transform_indices = @transform_12, window_bounds = array<i64: 1, 1, 128>}, {transform_indices = @transform_13, window_bounds = array<i64: 1, 1, 128>}]} {
    %c0_i32 = arith.constant 0 : i32
    %0 = arith.cmpi eq, %arg1, %c0_i32 : i32
    %1 = arith.extui %0 : i1 to i32
    %c0_i32_0 = arith.constant 0 : i32
    %2 = arith.cmpi ne, %1, %c0_i32_0 : i32
    scf.if %2 {
      %cst_47 = arith.constant 0.000000e+00 : f32
      %69 = vector.broadcast %cst_47 : f32 to vector<1x1x128xf32>
      %c0_48 = arith.constant 0 : index
      %c0_49 = arith.constant 0 : index
      %c0_50 = arith.constant 0 : index
      %70 = vector.load %arg14[%c0_48, %c0_49, %c0_50] : memref<1x1x128xf32, #tpu.memory_space<vmem>>, vector<1x1x128xf32>
      tpu.vector_store %arg14[%c0_48, %c0_49, %c0_50], %69 {strides = array<i32>} : memref<1x1x128xf32, #tpu.memory_space<vmem>>, vector<1x1x128xf32>,
      %cst_51 = arith.constant 0.000000e+00 : f32
      %71 = vector.broadcast %cst_51 : f32 to vector<1x1x128xf32>
      %c0_52 = arith.constant 0 : index
      %c0_53 = arith.constant 0 : index
      %c0_54 = arith.constant 0 : index
      %72 = vector.load %arg15[%c0_52, %c0_53, %c0_54] : memref<1x1x128xf32, #tpu.memory_space<vmem>>, vector<1x1x128xf32>
      tpu.vector_store %arg15[%c0_52, %c0_53, %c0_54], %71 {strides = array<i32>} : memref<1x1x128xf32, #tpu.memory_space<vmem>>, vector<1x1x128xf32>,
    } else {
    }
    %c0 = arith.constant 0 : index
    %c0_1 = arith.constant 0 : index
    %3 = vector.load %arg2[%c0, %c0_1] : memref<128x128xf32, #tpu.memory_space<vmem>>, vector<128x128xf32>
    %c0_2 = arith.constant 0 : index
    %c0_3 = arith.constant 0 : index
    %4 = vector.load %arg3[%c0_2, %c0_3] : memref<128x128xf32, #tpu.memory_space<vmem>>, vector<128x128xf32>
    %c0_4 = arith.constant 0 : index
    %c0_5 = arith.constant 0 : index
    %5 = vector.load %arg4[%c0_4, %c0_5] : memref<128x128xf32, #tpu.memory_space<vmem>>, vector<128x128xf32>
    %c0_6 = arith.constant 0 : index
    %c0_7 = arith.constant 0 : index
    %6 = vector.load %arg7[%c0_6, %c0_7] : memref<128x128xf32, #tpu.memory_space<vmem>>, vector<128x128xf32>
    %cst = arith.constant dense<0.000000e+00> : vector<128x128xf32>
    %7 = tpu.matmul %5, %6, %cst {dimension_numbers = #tpu.dot_dimension_numbers<[1], [0], [0], [1], [0, 0, 1, 1], [], []>} : vector<128x128xf32>, vector<128x128xf32>, vector<128x128xf32> -> vector<128x128xf32>
    %c0_8 = arith.constant 0 : index
    %c0_9 = arith.constant 0 : index
    %8 = vector.load %arg10[%c0_8, %c0_9] : memref<1x128xf32, #tpu.memory_space<vmem>>, vector<1x128xf32>
    %9 = vector.broadcast %8 : vector<1x128xf32> to vector<128x128xf32>
    %10 = arith.addf %7, %9 : vector<128x128xf32>
    %c0_10 = arith.constant 0 : index
    %c0_11 = arith.constant 0 : index
    %11 = vector.load %arg11[%c0_10, %c0_11] : memref<1x128xf32, #tpu.memory_space<vmem>>, vector<1x128xf32>
    %12 = vector.broadcast %11 : vector<1x128xf32> to vector<128x128xf32>
    %13 = arith.mulf %12, %4 : vector<128x128xf32>
    %c0_12 = arith.constant 0 : index
    %c0_13 = arith.constant 0 : index
    %14 = vector.load %arg12[%c0_12, %c0_13] : memref<1x128xf32, #tpu.memory_space<vmem>>, vector<1x128xf32>
    %15 = vector.broadcast %14 : vector<1x128xf32> to vector<128x128xf32>
    %16 = arith.addf %13, %15 : vector<128x128xf32>
    %17 = arith.mulf %10, %16 : vector<128x128xf32>
    %cst_14 = arith.constant 0.000000e+00 : f32
    %18 = vector.broadcast %cst_14 : f32 to vector<128x128xf32>
    %19 = arith.maximumf %17, %18 : vector<128x128xf32>
    %20 = math.absf %17 : vector<128x128xf32>
    %cst_15 = arith.constant 0.000000e+00 : f32
    %21 = vector.broadcast %cst_15 : f32 to vector<128x128xf32>
    %22 = arith.subf %21, %20 : vector<128x128xf32>
    %23 = math.exp %22 : vector<128x128xf32>
    %24 = math.log1p %23 : vector<128x128xf32>
    %25 = arith.addf %19, %24 : vector<128x128xf32>
    %26 = arith.subf %3, %25 : vector<128x128xf32>
    %cst_16 = arith.constant 0.000000e+00 : f32
    %27 = vector.broadcast %cst_16 : f32 to vector<128x128xf32>
    %28 = arith.maximumf %26, %27 : vector<128x128xf32>
    %29 = math.absf %26 : vector<128x128xf32>
    %cst_17 = arith.constant 0.000000e+00 : f32
    %30 = vector.broadcast %cst_17 : f32 to vector<128x128xf32>
    %31 = arith.subf %30, %29 : vector<128x128xf32>
    %32 = math.exp %31 : vector<128x128xf32>
    %33 = math.log1p %32 : vector<128x128xf32>
    %34 = arith.addf %28, %33 : vector<128x128xf32>
    %c0_18 = arith.constant 0 : index
    %c0_19 = arith.constant 0 : index
    %35 = vector.load %arg5[%c0_18, %c0_19] : memref<128x128xf32, #tpu.memory_space<vmem>>, vector<128x128xf32>
    %cst_20 = arith.constant dense<0.000000e+00> : vector<128x128xf32>
    %36 = tpu.matmul %3, %35, %cst_20 {dimension_numbers = #tpu.dot_dimension_numbers<[1], [0], [0], [1], [0, 0, 1, 1], [], []>} : vector<128x128xf32>, vector<128x128xf32>, vector<128x128xf32> -> vector<128x128xf32>
    %c0_21 = arith.constant 0 : index
    %c0_22 = arith.constant 0 : index
    %37 = vector.load %arg6[%c0_21, %c0_22] : memref<128x128xf32, #tpu.memory_space<vmem>>, vector<128x128xf32>
    %cst_23 = arith.constant dense<0.000000e+00> : vector<128x128xf32>
    %38 = tpu.matmul %4, %37, %cst_23 {dimension_numbers = #tpu.dot_dimension_numbers<[1], [0], [0], [1], [0, 0, 1, 1], [], []>} : vector<128x128xf32>, vector<128x128xf32>, vector<128x128xf32> -> vector<128x128xf32>
    %39 = arith.addf %36, %38 : vector<128x128xf32>
    %c0_24 = arith.constant 0 : index
    %c0_25 = arith.constant 0 : index
    %40 = vector.load %arg9[%c0_24, %c0_25] : memref<1x128xf32, #tpu.memory_space<vmem>>, vector<1x128xf32>
    %41 = vector.broadcast %40 : vector<1x128xf32> to vector<128x128xf32>
    %42 = arith.addf %39, %41 : vector<128x128xf32>
    %43 = arith.negf %42 : vector<128x128xf32>
    %44 = math.exp %43 : vector<128x128xf32>
    %cst_26 = arith.constant 1.000000e+00 : f32
    %45 = vector.broadcast %cst_26 : f32 to vector<128x128xf32>
    %46 = arith.addf %45, %44 : vector<128x128xf32>
    %47 = arith.divf %45, %46 : vector<128x128xf32>
    %cst_27 = arith.constant 1.000000e+00 : f32
    %48 = vector.broadcast %cst_27 : f32 to vector<128x128xf32>
    %49 = arith.subf %48, %47 : vector<128x128xf32>
    %50 = arith.mulf %49, %4 : vector<128x128xf32>
    %51 = arith.mulf %47, %34 : vector<128x128xf32>
    %52 = arith.addf %50, %51 : vector<128x128xf32>
    %c0_28 = arith.constant 0 : index
    %c0_29 = arith.constant 0 : index
    %53 = vector.load %arg13[%c0_28, %c0_29] : memref<128x128xf32, #tpu.memory_space<vmem>>, vector<128x128xf32>
    tpu.vector_store %arg13[%c0_28, %c0_29], %52 {strides = array<i32>} : memref<128x128xf32, #tpu.memory_space<vmem>>, vector<128x128xf32>,
    %c0_30 = arith.constant 0 : index
    %c0_31 = arith.constant 0 : index
    %54 = vector.load %arg8[%c0_30, %c0_31] : memref<128x128xf32, #tpu.memory_space<vmem>>, vector<128x128xf32>
    %cst_32 = arith.constant dense<0.000000e+00> : vector<128x128xf32>
    %55 = tpu.matmul %52, %54, %cst_32 {dimension_numbers = #tpu.dot_dimension_numbers<[1], [0], [0], [1], [0, 0, 1, 1], [], []>} : vector<128x128xf32>, vector<128x128xf32>, vector<128x128xf32> -> vector<128x128xf32>
    %c0_33 = arith.constant 0 : index
    %c0_34 = arith.constant 0 : index
    %c0_35 = arith.constant 0 : index
    %56 = vector.load %arg14[%c0_33, %c0_34, %c0_35] : memref<1x1x128xf32, #tpu.memory_space<vmem>>, vector<1x1x128xf32>
    %cst_36 = arith.constant dense<0.000000e+00> : vector<128xf32>
    %57 = vector.multi_reduction <add>, %55, %cst_36 [0] : vector<128x128xf32> to vector<128xf32>
    %58 = vector.shape_cast %57 : vector<128xf32> to vector<1x128xf32>
    %59 = vector.shape_cast %58 : vector<1x128xf32> to vector<1x1x128xf32>
    %60 = arith.addf %56, %59 : vector<1x1x128xf32>
    %c0_37 = arith.constant 0 : index
    %c0_38 = arith.constant 0 : index
    %c0_39 = arith.constant 0 : index
    %61 = vector.load %arg14[%c0_37, %c0_38, %c0_39] : memref<1x1x128xf32, #tpu.memory_space<vmem>>, vector<1x1x128xf32>
    tpu.vector_store %arg14[%c0_37, %c0_38, %c0_39], %60 {strides = array<i32>} : memref<1x1x128xf32, #tpu.memory_space<vmem>>, vector<1x1x128xf32>,
    %c0_40 = arith.constant 0 : index
    %c0_41 = arith.constant 0 : index
    %c0_42 = arith.constant 0 : index
    %62 = vector.load %arg15[%c0_40, %c0_41, %c0_42] : memref<1x1x128xf32, #tpu.memory_space<vmem>>, vector<1x1x128xf32>
    %63 = arith.mulf %55, %55 : vector<128x128xf32>
    %cst_43 = arith.constant dense<0.000000e+00> : vector<128xf32>
    %64 = vector.multi_reduction <add>, %63, %cst_43 [0] : vector<128x128xf32> to vector<128xf32>
    %65 = vector.shape_cast %64 : vector<128xf32> to vector<1x128xf32>
    %66 = vector.shape_cast %65 : vector<1x128xf32> to vector<1x1x128xf32>
    %67 = arith.addf %62, %66 : vector<1x1x128xf32>
    %c0_44 = arith.constant 0 : index
    %c0_45 = arith.constant 0 : index
    %c0_46 = arith.constant 0 : index
    %68 = vector.load %arg15[%c0_44, %c0_45, %c0_46] : memref<1x1x128xf32, #tpu.memory_space<vmem>>, vector<1x1x128xf32>
    tpu.vector_store %arg15[%c0_44, %c0_45, %c0_46], %67 {strides = array<i32>} : memref<1x1x128xf32, #tpu.memory_space<vmem>>, vector<1x1x128xf32>,
    return
  }
  func.func @transform_0(%arg0: i32, %arg1: i32) -> (i32, i32) {
    %c1_i32 = arith.constant 1 : i32
    %0 = arith.muli %arg0, %c1_i32 : i32
    %1 = arith.addi %0, %arg1 : i32
    %c0_i32 = arith.constant 0 : i32
    %c0_i32_0 = arith.constant 0 : i32
    return %1, %c0_i32 : i32, i32
  }
  func.func @transform_1(%arg0: i32, %arg1: i32) -> (i32, i32) {
    %c1_i32 = arith.constant 1 : i32
    %0 = arith.muli %arg0, %c1_i32 : i32
    %1 = arith.addi %0, %arg1 : i32
    %c0_i32 = arith.constant 0 : i32
    %c0_i32_0 = arith.constant 0 : i32
    return %1, %c0_i32 : i32, i32
  }
  func.func @transform_2(%arg0: i32, %arg1: i32) -> (i32, i32) {
    %c1_i32 = arith.constant 1 : i32
    %0 = arith.muli %arg0, %c1_i32 : i32
    %1 = arith.addi %0, %arg1 : i32
    %c0_i32 = arith.constant 0 : i32
    %c0_i32_0 = arith.constant 0 : i32
    return %1, %c0_i32 : i32, i32
  }
  func.func @transform_3(%arg0: i32, %arg1: i32) -> (i32, i32) {
    %c0_i32 = arith.constant 0 : i32
    %c0_i32_0 = arith.constant 0 : i32
    %c0_i32_1 = arith.constant 0 : i32
    return %c0_i32, %c0_i32_0 : i32, i32
  }
  func.func @transform_4(%arg0: i32, %arg1: i32) -> (i32, i32) {
    %c0_i32 = arith.constant 0 : i32
    %c0_i32_0 = arith.constant 0 : i32
    %c0_i32_1 = arith.constant 0 : i32
    return %c0_i32, %c0_i32_0 : i32, i32
  }
  func.func @transform_5(%arg0: i32, %arg1: i32) -> (i32, i32) {
    %c0_i32 = arith.constant 0 : i32
    %c0_i32_0 = arith.constant 0 : i32
    %c0_i32_1 = arith.constant 0 : i32
    return %c0_i32, %c0_i32_0 : i32, i32
  }
  func.func @transform_6(%arg0: i32, %arg1: i32) -> (i32, i32) {
    %c0_i32 = arith.constant 0 : i32
    %c0_i32_0 = arith.constant 0 : i32
    %c0_i32_1 = arith.constant 0 : i32
    return %c0_i32, %c0_i32_0 : i32, i32
  }
  func.func @transform_7(%arg0: i32, %arg1: i32) -> (i32, i32) {
    %c0_i32 = arith.constant 0 : i32
    %c0_i32_0 = arith.constant 0 : i32
    %c0_i32_1 = arith.constant 0 : i32
    return %c0_i32, %c0_i32_0 : i32, i32
  }
  func.func @transform_8(%arg0: i32, %arg1: i32) -> (i32, i32) {
    %c0_i32 = arith.constant 0 : i32
    %c0_i32_0 = arith.constant 0 : i32
    %c0_i32_1 = arith.constant 0 : i32
    return %c0_i32, %c0_i32_0 : i32, i32
  }
  func.func @transform_9(%arg0: i32, %arg1: i32) -> (i32, i32) {
    %c0_i32 = arith.constant 0 : i32
    %c0_i32_0 = arith.constant 0 : i32
    %c0_i32_1 = arith.constant 0 : i32
    return %c0_i32, %c0_i32_0 : i32, i32
  }
  func.func @transform_10(%arg0: i32, %arg1: i32) -> (i32, i32) {
    %c0_i32 = arith.constant 0 : i32
    %c0_i32_0 = arith.constant 0 : i32
    %c0_i32_1 = arith.constant 0 : i32
    return %c0_i32, %c0_i32_0 : i32, i32
  }
  func.func @transform_11(%arg0: i32, %arg1: i32) -> (i32, i32) {
    %c1_i32 = arith.constant 1 : i32
    %0 = arith.muli %arg0, %c1_i32 : i32
    %1 = arith.addi %0, %arg1 : i32
    %c0_i32 = arith.constant 0 : i32
    %c0_i32_0 = arith.constant 0 : i32
    return %1, %c0_i32 : i32, i32
  }
  func.func @transform_12(%arg0: i32, %arg1: i32) -> (i32, i32, i32) {
    %c0_i32 = arith.constant 0 : i32
    %c0_i32_0 = arith.constant 0 : i32
    %c0_i32_1 = arith.constant 0 : i32
    return %arg0, %c0_i32, %c0_i32_0 : i32, i32, i32
  }
  func.func @transform_13(%arg0: i32, %arg1: i32) -> (i32, i32, i32) {
    %c0_i32 = arith.constant 0 : i32
    %c0_i32_0 = arith.constant 0 : i32
    %c0_i32_1 = arith.constant 0 : i32
    return %arg0, %c0_i32, %c0_i32_0 : i32, i32, i32
  }
}

</mosaic_0001>

<llo_original>
// kernel: tile.75
$region0: #{tile.75}
  #allocation0 [shape = 's32[1]{0}', space=sflag, size = 0x4, scoped, tag = 'scoped memory for tile.75']
  %s0 = inlined_call_operand.vmem [shape: f32[32], index: 0, kind: input, shape index: {}]
  %s1 = inlined_call_operand.vmem [shape: f32[4,32], index: 1, kind: output, shape index: {}]
  // Predicated region
  $region2: #{tile.75} parent=0 // pred_check
    _
  $region3: #{tile.75} parent=0 // pred_check_branch
    %3 = sbr.rel (0) target = $region5
  $region4: #{tile.75} parent=0 // pred_region
    _
  $region5: #{tile.75} parent=0 // pred_fallthru
    _
  %v4 = vld [vmem:[%s0] ss:$0 sm:$0xff]
  %5 = vst [vmem:[%s1] sm:$0xf] %v4

// kernel: mul.102
$region0: #{mul.102}
  %s0 = inlined_call_operand.vmem [shape: f32[4,32], index: 0, kind: input, shape index: {}]
  %s1 = inlined_call_operand.vmem [shape: f32[128], index: 1, kind: output, shape index: {}]
  $region1: #{mul.102} parent=0
    #allocation0 [shape = 'u8[4096]{0}', space=vmem, size = 0x1000, scoped, tag = 'scoped mem for output reshape']
    #allocation1 [shape = 'u8[4096]{0}', space=vmem, size = 0x1000, scoped, tag = 'scoped mem for input reshape']
    %s3 = sshll.u32 1, 4
    %s4 = ssub.s32 %s3, 1
    %v5 = vld [vmem:[%s0] sm:%s4]
    %6 = vst [vmem:[#allocation1] sm:%s4] %v5
    %v7 = vld [vmem:[#allocation1] sm:$0x1]
    %vm8 = vcmask 261120
    %9 = vst.msk [vmem:[#allocation0] sm:$0x1] %vm8, %v7
    %s10 = scalar_lea.vmem [#allocation1], 3
    %v11 = vld [vmem:[%s10] sm:$0x1]
    %12 = vrot.lane.b32.xlu0 %v11, 96
    %v13 = vpop.permute.xlu0 %12
    %vm14 = vcmask 1048320
    %15 = vst.msk [vmem:[#allocation0] sm:$0x1] %vm14, %v13
    %s16 = scalar_lea.vmem [#allocation1], 2
    %v17 = vld [vmem:[%s16] sm:$0x1]
    %18 = vrot.lane.b32.xlu0 %v17, 64
    %v19 = vpop.permute.xlu0 %18
    %vm20 = vcmask 785920
    %21 = vst.msk [vmem:[#allocation0] sm:$0x1] %vm20, %v19
    %s22 = scalar_lea.vmem [#allocation1], 1
    %v23 = vld [vmem:[%s22] sm:$0x1]
    %24 = vrot.lane.b32.xlu0 %v23, 32
    %v25 = vpop.permute.xlu0 %24
    %vm26 = vcmask 523520
    %27 = vst.msk [vmem:[#allocation0] sm:$0x1] %vm26, %v25
    %s29 = sshll.u32 1, 1
    %s30 = ssub.s32 %s29, 1
    %v32 = vld [vmem:[#allocation0] sm:%s30]
    %s33 = sshll.u32 1, 1
    %s34 = ssub.s32 %s33, 1
    %35 = vst [vmem:[%s1] sm:%s34] %v32

// kernel: tile.81
$region0: #{tile.81}
  %s0 = inlined_call_operand.vmem [shape: f32[4,32], index: 0, kind: input, shape index: {}]
  %s1 = inlined_call_operand.vmem [shape: f32[1,128], index: 1, kind: output, shape index: {}]
  $region1: #{tile.81} parent=0
    #allocation0 [shape = 'u8[4096]{0}', space=vmem, size = 0x1000, scoped, tag = 'scoped mem for output reshape']
    #allocation1 [shape = 'u8[4096]{0}', space=vmem, size = 0x1000, scoped, tag = 'scoped mem for input reshape']
    %s3 = sshll.u32 1, 4
    %s4 = ssub.s32 %s3, 1
    %v5 = vld [vmem:[%s0] sm:%s4]
    %6 = vst [vmem:[#allocation1] sm:%s4] %v5
    %v7 = vld [vmem:[#allocation1] sm:$0x1]
    %vm8 = vcmask 261120
    %9 = vst.msk [vmem:[#allocation0] sm:$0x1] %vm8, %v7
    %s10 = scalar_lea.vmem [#allocation1], 3
    %v11 = vld [vmem:[%s10] sm:$0x1]
    %12 = vrot.lane.b32.xlu0 %v11, 96
    %v13 = vpop.permute.xlu0 %12
    %vm14 = vcmask 1048320
    %15 = vst.msk [vmem:[#allocation0] sm:$0x1] %vm14, %v13
    %s16 = scalar_lea.vmem [#allocation1], 2
    %v17 = vld [vmem:[%s16] sm:$0x1]
    %18 = vrot.lane.b32.xlu0 %v17, 64
    %v19 = vpop.permute.xlu0 %18
    %vm20 = vcmask 785920
    %21 = vst.msk [vmem:[#allocation0] sm:$0x1] %vm20, %v19
    %s22 = scalar_lea.vmem [#allocation1], 1
    %v23 = vld [vmem:[%s22] sm:$0x1]
    %24 = vrot.lane.b32.xlu0 %v23, 32
    %v25 = vpop.permute.xlu0 %24
    %vm26 = vcmask 523520
    %27 = vst.msk [vmem:[#allocation0] sm:$0x1] %vm26, %v25
    %s29 = sshll.u32 1, 1
    %s30 = ssub.s32 %s29, 1
    %v32 = vld [vmem:[#allocation0] sm:%s30]
    %s33 = sshll.u32 1, 1
    %s34 = ssub.s32 %s33, 1
    %35 = vst [vmem:[%s1] sm:%s34] %v32

// kernel: rcell_forward.3
$region0: #{rcell_forward.3}
  #allocation0 [shape = 'u32[]', space=smem, size = 0x4, offset = 0x4, fixed_abs, tag = 'smem constant byte address 0x4 - core index']
  #allocation1 [shape = 'u32[144,128]{1,0:T(1,128)}', space=vmem, size = 0x12000, scoped, tag = 'internal scratch']
  %s0 = inlined_call_operand.vmem [shape: f32[128,128], index: 0, kind: input, shape index: {}]
  %s1 = inlined_call_operand.vmem [shape: f32[128,128], index: 1, kind: input, shape index: {}]
  %s2 = inlined_call_operand.vmem [shape: f32[1,1,128], index: 2, kind: output, shape index: {0}]
  %s3 = inlined_call_operand.vmem [shape: f32[1,1,128], index: 3, kind: output, shape index: {1}]
  %4 = xla_tuple %s2, %s3
  %s5 = sld [smem:[#allocation0]]
  $region30: #{rcell_forward.3} parent=0
    _
  %s7 = ssub.s32 1, %s5
  %s8 = scalar_select 0, %s7, %s5
  // Predicated region
  $region2: #{rcell_forward.3} parent=0 // pred_check
    _
  $region3: #{rcell_forward.3} parent=0 // pred_check_branch
    %10 = sbr.rel (0) target = $region5
  $region4: #{rcell_forward.3} parent=0 // pred_region
    %s11 = sadd.s32 0, 0
    %s12 = smul.u32 16, %s11
    %p13 = scmp.lt.s32.totalorder %s12, 15
    %s14 = scalar_select %p13, %s12, 15
    %s15 = smul.addr %s14, 8
    %s16 = scalar_lea.vmem %s0, %s15
    %s17 = sadd.s32 0, 0
    %s18 = smul.u32 16, %s17
  $region5: #{rcell_forward.3} parent=0 // pred_fallthru
    _
  // Predicated region
  $region6: #{rcell_forward.3} parent=0 // pred_check
    _
  $region7: #{rcell_forward.3} parent=0 // pred_check_branch
    %20 = sbr.rel (0) target = $region9
  $region8: #{rcell_forward.3} parent=0 // pred_region
    _
  $region9: #{rcell_forward.3} parent=0 // pred_fallthru
    _
  %s21 = sadd.s32 0, 0
  %s22 = smul.u32 16, %s21
  %p23 = scmp.lt.s32.totalorder %s22, 15
  %s24 = scalar_select %p23, %s22, 15
  %s25 = smul.addr %s24, 8
  %s26 = scalar_lea.vmem %s0, %s25
  %s27 = sadd.s32 0, 0
  %s28 = smul.u32 16, %s27
  %p29 = scmp.lt.s32.totalorder %s28, 15
  %s30 = scalar_select %p29, %s28, 15
  %s31 = smul.addr %s30, 8
  %s32 = scalar_lea.vmem %s0, %s31
  %s33 = sadd.s32 0, 0
  %s34 = smul.u32 16, %s33
  %p35 = scmp.eq.s32.totalorder 0, 0
  // Predicated region
  $region10: #{rcell_forward.3} parent=0 // pred_check
    %p36 = pneg %p35
  $region11: #{rcell_forward.3} parent=0 // pred_check_branch
    %38 = sbr.rel (%p36) target = $region13
  $region12: #{rcell_forward.3} parent=0 // pred_region
    %39 = vst [vmem:[%s2] sm:$0x1] 0.0
    %40 = vst [vmem:[%s3] sm:$0x1] 0.0
  $region13: #{rcell_forward.3} parent=0 // pred_fallthru
    _
  %v41 = vld [vmem:[%s32] sm:$0xff]
  %v42 = vld [vmem:[%s32 + $0x8] sm:$0xff]
  %v43 = vld [vmem:[%s32 + $0x10] sm:$0xff]
  %v44 = vld [vmem:[%s32 + $0x18] sm:$0xff]
  %v45 = vld [vmem:[%s32 + $0x20] sm:$0xff]
  %v46 = vld [vmem:[%s32 + $0x28] sm:$0xff]
  %v47 = vld [vmem:[%s32 + $0x30] sm:$0xff]
  %v48 = vld [vmem:[%s32 + $0x38] sm:$0xff]
  %v49 = vld [vmem:[%s32 + $0x40] sm:$0xff]
  %v50 = vld [vmem:[%s32 + $0x48] sm:$0xff]
  %v51 = vld [vmem:[%s32 + $0x50] sm:$0xff]
  %v52 = vld [vmem:[%s32 + $0x58] sm:$0xff]
  %v53 = vld [vmem:[%s32 + $0x60] sm:$0xff]
  %v54 = vld [vmem:[%s32 + $0x68] sm:$0xff]
  %v55 = vld [vmem:[%s32 + $0x70] sm:$0xff]
  %v56 = vld [vmem:[%s32 + $0x78] sm:$0xff]
  %v57 = vld [vmem:[%s1] sm:$0xff]
  %v58 = vld [vmem:[%s1 + $0x8] sm:$0xff]
  %v59 = vld [vmem:[%s1 + $0x10] sm:$0xff]
  %v60 = vld [vmem:[%s1 + $0x18] sm:$0xff]
  %v61 = vld [vmem:[%s1 + $0x20] sm:$0xff]
  %v62 = vld [vmem:[%s1 + $0x28] sm:$0xff]
  %v63 = vld [vmem:[%s1 + $0x30] sm:$0xff]
  %v64 = vld [vmem:[%s1 + $0x38] sm:$0xff]
  %v65 = vld [vmem:[%s1 + $0x40] sm:$0xff]
  %v66 = vld [vmem:[%s1 + $0x48] sm:$0xff]
  %v67 = vld [vmem:[%s1 + $0x50] sm:$0xff]
  %v68 = vld [vmem:[%s1 + $0x58] sm:$0xff]
  %v69 = vld [vmem:[%s1 + $0x60] sm:$0xff]
  %v70 = vld [vmem:[%s1 + $0x68] sm:$0xff]
  %v71 = vld [vmem:[%s1 + $0x70] sm:$0xff]
  %v72 = vld [vmem:[%s1 + $0x78] sm:$0xff]
  %73 = vmatprep.subr.mxu0 0.0
  %74 = vmatpush1.msra.mxu0 %v72
  %75 = vmatprep.subr.mxu0 0.0
  %76 = vmatpush1.msra.mxu0 %v71
  %77 = vmatprep.subr.mxu0 0.0
  %78 = vmatpush1.msra.mxu0 %v70
  %79 = vmatprep.subr.mxu0 0.0
  %80 = vmatpush1.msra.mxu0 %v69
  %81 = vmatprep.subr.mxu0 0.0
  %82 = vmatpush1.msra.mxu0 %v68
  %83 = vmatprep.subr.mxu0 0.0
  %84 = vmatpush1.msra.mxu0 %v67
  %85 = vmatprep.subr.mxu0 0.0
  %86 = vmatpush1.msra.mxu0 %v66
  %87 = vmatprep.subr.mxu0 0.0
  %88 = vmatpush1.msra.mxu0 %v65
  %89 = vmatprep.subr.mxu0 0.0
  %90 = vmatpush1.msra.mxu0 %v64
  %91 = vmatprep.subr.mxu0 0.0
  %92 = vmatpush1.msra.mxu0 %v63
  %93 = vmatprep.subr.mxu0 0.0
  %94 = vmatpush1.msra.mxu0 %v62
  %95 = vmatprep.subr.mxu0 0.0
  %96 = vmatpush1.msra.mxu0 %v61
  %97 = vmatprep.subr.mxu0 0.0
  %98 = vmatpush1.msra.mxu0 %v60
  %99 = vmatprep.subr.mxu0 0.0
  %100 = vmatpush1.msra.mxu0 %v59
  %101 = vmatprep.subr.mxu0 0.0
  %102 = vmatpush1.msra.mxu0 %v58
  %103 = vmatprep.subr.mxu0 0.0
  %104 = vmatpush1.msra.mxu0 %v57
  %105 = vmatprep.subr.mxu0 0.0
  %106 = vmatpush2.msra.mxu0 0.0
  %107 = vmatprep.subr.mxu0 0.0
  %108 = vmatpush2.msra.mxu0 0.0
  %109 = vmatprep.subr.mxu0 0.0
  %110 = vmatpush2.msra.mxu0 0.0
  %111 = vmatprep.subr.mxu0 0.0
  %112 = vmatpush2.msra.mxu0 0.0
  %113 = vmatprep.subr.mxu0 0.0
  %114 = vmatpush2.msra.mxu0 0.0
  %115 = vmatprep.subr.mxu0 0.0
  %116 = vmatpush2.msra.mxu0 0.0
  %117 = vmatprep.subr.mxu0 0.0
  %118 = vmatpush2.msra.mxu0 0.0
  %119 = vmatprep.subr.mxu0 0.0
  %120 = vmatpush2.msra.mxu0 0.0
  %121 = vmatprep.subr.mxu0 0.0
  %122 = vmatpush2.msra.mxu0 0.0
  %123 = vmatprep.subr.mxu0 0.0
  %124 = vmatpush2.msra.mxu0 0.0
  %125 = vmatprep.subr.mxu0 0.0
  %126 = vmatpush2.msra.mxu0 0.0
  %127 = vmatprep.subr.mxu0 0.0
  %128 = vmatpush2.msra.mxu0 0.0
  %129 = vmatprep.subr.mxu0 0.0
  %130 = vmatpush2.msra.mxu0 0.0
  %131 = vmatprep.subr.mxu0 0.0
  %132 = vmatpush2.msra.mxu0 0.0
  %133 = vmatprep.subr.mxu0 0.0
  %134 = vmatpush2.msra.mxu0 0.0
  %135 = vmatprep.subr.mxu0 0.0
  %136 = vmatpush2.msra.mxu0 0.0
  %137 = vmatprep.mubr.f32.mxu0 0.0
  %138 = vmatmul.mubr.f32.gmra.mxu0 %v41
  %v139 = vpop.f32.mrf.mxu0
  %v140 = vadd.f32 0.0, %v139
  %v141 = vpop.f32.mrf.mxu0
  %142 = vmatprep.mubr.f32.mxu0 0.0
  %143 = vmatmul.mubr.f32.gmra.mxu0 %v42
  %v144 = vpop.f32.mrf.mxu0
  %v145 = vadd.f32 0.0, %v144
  %v146 = vpop.f32.mrf.mxu0
  %147 = vmatprep.mubr.f32.mxu0 0.0
  %148 = vmatmul.mubr.f32.gmra.mxu0 %v43
  %v149 = vpop.f32.mrf.mxu0
  %v150 = vadd.f32 0.0, %v149
  %v151 = vpop.f32.mrf.mxu0
  %152 = vmatprep.mubr.f32.mxu0 0.0
  %153 = vmatmul.mubr.f32.gmra.mxu0 %v44
  %v154 = vpop.f32.mrf.mxu0
  %v155 = vadd.f32 0.0, %v154
  %v156 = vpop.f32.mrf.mxu0
  %157 = vmatprep.mubr.f32.mxu0 0.0
  %158 = vmatmul.mubr.f32.gmra.mxu0 %v45
  %v159 = vpop.f32.mrf.mxu0
  %v160 = vadd.f32 0.0, %v159
  %v161 = vpop.f32.mrf.mxu0
  %162 = vmatprep.mubr.f32.mxu0 0.0
  %163 = vmatmul.mubr.f32.gmra.mxu0 %v46
  %v164 = vpop.f32.mrf.mxu0
  %v165 = vadd.f32 0.0, %v164
  %v166 = vpop.f32.mrf.mxu0
  %167 = vmatprep.mubr.f32.mxu0 0.0
  %168 = vmatmul.mubr.f32.gmra.mxu0 %v47
  %v169 = vpop.f32.mrf.mxu0
  %v170 = vadd.f32 0.0, %v169
  %v171 = vpop.f32.mrf.mxu0
  %172 = vmatprep.mubr.f32.mxu0 0.0
  %173 = vmatmul.mubr.f32.gmra.mxu0 %v48
  %v174 = vpop.f32.mrf.mxu0
  %v175 = vadd.f32 0.0, %v174
  %v176 = vpop.f32.mrf.mxu0
  %177 = vmatprep.mubr.f32.mxu0 0.0
  %178 = vmatmul.mubr.f32.gmra.mxu0 %v49
  %v179 = vpop.f32.mrf.mxu0
  %v180 = vadd.f32 0.0, %v179
  %v181 = vpop.f32.mrf.mxu0
  %182 = vmatprep.mubr.f32.mxu0 0.0
  %183 = vmatmul.mubr.f32.gmra.mxu0 %v50
  %v184 = vpop.f32.mrf.mxu0
  %v185 = vadd.f32 0.0, %v184
  %v186 = vpop.f32.mrf.mxu0
  %187 = vmatprep.mubr.f32.mxu0 0.0
  %188 = vmatmul.mubr.f32.gmra.mxu0 %v51
  %v189 = vpop.f32.mrf.mxu0
  %v190 = vadd.f32 0.0, %v189
  %v191 = vpop.f32.mrf.mxu0
  %192 = vmatprep.mubr.f32.mxu0 0.0
  %193 = vmatmul.mubr.f32.gmra.mxu0 %v52
  %v194 = vpop.f32.mrf.mxu0
  %v195 = vadd.f32 0.0, %v194
  %v196 = vpop.f32.mrf.mxu0
  %197 = vmatprep.mubr.f32.mxu0 0.0
  %198 = vmatmul.mubr.f32.gmra.mxu0 %v53
  %v199 = vpop.f32.mrf.mxu0
  %v200 = vadd.f32 0.0, %v199
  %v201 = vpop.f32.mrf.mxu0
  %202 = vmatprep.mubr.f32.mxu0 0.0
  %203 = vmatmul.mubr.f32.gmra.mxu0 %v54
  %v204 = vpop.f32.mrf.mxu0
  %v205 = vadd.f32 0.0, %v204
  %v206 = vpop.f32.mrf.mxu0
  %207 = vmatprep.mubr.f32.mxu0 0.0
  %208 = vmatmul.mubr.f32.gmra.mxu0 %v55
  %v209 = vpop.f32.mrf.mxu0
  %v210 = vadd.f32 0.0, %v209
  %v211 = vpop.f32.mrf.mxu0
  %212 = vmatprep.mubr.f32.mxu0 0.0
  %213 = vmatmul.mubr.f32.gmra.mxu0 %v56
  %v214 = vpop.f32.mrf.mxu0
  %v215 = vadd.f32 0.0, %v214
  %v216 = vpop.f32.mrf.mxu0
  %217 = vdwg.mxu0
  %v218 = vld [vmem:[%s2] sm:$0x1]
  %v219 = vadd.f32 %v140, %v145
  %v220 = vadd.f32 %v219, %v150
  %v221 = vadd.f32 %v220, %v155
  %v222 = vadd.f32 %v221, %v160
  %v223 = vadd.f32 %v222, %v165
  %v224 = vadd.f32 %v223, %v170
  %v225 = vadd.f32 %v224, %v175
  %v226 = vadd.f32 %v225, %v180
  %v227 = vadd.f32 %v226, %v185
  %v228 = vadd.f32 %v227, %v190
  %v229 = vadd.f32 %v228, %v195
  %v230 = vadd.f32 %v229, %v200
  %v231 = vadd.f32 %v230, %v205
  %v232 = vadd.f32 %v231, %v210
  %v233 = vadd.f32 %v232, %v215
  %v234 = vrot.slane %v233, 4
  %v235 = vadd.f32 %v233, %v234
  %v236 = vrot.slane %v235, 2
  %v237 = vadd.f32 %v235, %v236
  %v238 = vrot.slane %v237, 1
  %v239 = vadd.f32 %v237, %v238
  %v240 = vadd.f32 %v218, %v239
  %241 = vst [vmem:[%s2] sm:$0x1] %v240
  %v242 = vld [vmem:[%s3] sm:$0x1]
  %v243 = vmul.f32 %v140, %v140
  %v244 = vmul.f32 %v145, %v145
  %v245 = vmul.f32 %v150, %v150
  %v246 = vmul.f32 %v155, %v155
  %v247 = vmul.f32 %v160, %v160
  %v248 = vmul.f32 %v165, %v165
  %v249 = vmul.f32 %v170, %v170
  %v250 = vmul.f32 %v175, %v175
  %v251 = vmul.f32 %v180, %v180
  %v252 = vmul.f32 %v185, %v185
  %v253 = vmul.f32 %v190, %v190
  %v254 = vmul.f32 %v195, %v195
  %v255 = vmul.f32 %v200, %v200
  %v256 = vmul.f32 %v205, %v205
  %v257 = vmul.f32 %v210, %v210
  %v258 = vmul.f32 %v215, %v215
  %v259 = vadd.f32 %v243, %v244
  %v260 = vadd.f32 %v259, %v245
  %v261 = vadd.f32 %v260, %v246
  %v262 = vadd.f32 %v261, %v247
  %v263 = vadd.f32 %v262, %v248
  %v264 = vadd.f32 %v263, %v249
  %v265 = vadd.f32 %v264, %v250
  %v266 = vadd.f32 %v265, %v251
  %v267 = vadd.f32 %v266, %v252
  %v268 = vadd.f32 %v267, %v253
  %v269 = vadd.f32 %v268, %v254
  %v270 = vadd.f32 %v269, %v255
  %v271 = vadd.f32 %v270, %v256
  %v272 = vadd.f32 %v271, %v257
  %v273 = vadd.f32 %v272, %v258
  %v274 = vrot.slane %v273, 4
  %v275 = vadd.f32 %v273, %v274
  %v276 = vrot.slane %v275, 2
  %v277 = vadd.f32 %v275, %v276
  %v278 = vrot.slane %v277, 1
  %v279 = vadd.f32 %v277, %v278
  %v280 = vadd.f32 %v242, %v279
  %281 = vst [vmem:[%s3] sm:$0x1] %v280
  // Predicated region
  $region14: #{rcell_forward.3} parent=0 // pred_check
    _
  $region15: #{rcell_forward.3} parent=0 // pred_check_branch
    %283 = sbr.rel (0) target = $region17
  $region16: #{rcell_forward.3} parent=0 // pred_region
    _
  $region17: #{rcell_forward.3} parent=0 // pred_fallthru
    _
  // Predicated region
  $region18: #{rcell_forward.3} parent=0 // pred_check
    _
  $region19: #{rcell_forward.3} parent=0 // pred_check_branch
    %285 = sbr.rel (0) target = $region21
  $region20: #{rcell_forward.3} parent=0 // pred_region
    _
  $region21: #{rcell_forward.3} parent=0 // pred_fallthru
    _
  // Predicated region
  $region22: #{rcell_forward.3} parent=0 // pred_check
    _
  $region23: #{rcell_forward.3} parent=0 // pred_check_branch
    %287 = sbr.rel (0) target = $region25
  $region24: #{rcell_forward.3} parent=0 // pred_region
    _
  $region25: #{rcell_forward.3} parent=0 // pred_fallthru
    _
  // Predicated region
  $region26: #{rcell_forward.3} parent=0 // pred_check
    _
  $region27: #{rcell_forward.3} parent=0 // pred_check_branch
    %289 = sbr.rel (0) target = $region29
  $region28: #{rcell_forward.3} parent=0 // pred_region
    _
  $region29: #{rcell_forward.3} parent=0 // pred_fallthru
    _

// kernel: rcell_forward.4
$region0: #{rcell_forward.4}
  #allocation0 [shape = 'u32[]', space=smem, size = 0x4, offset = 0x4, fixed_abs, tag = 'smem constant byte address 0x4 - core index']
  #allocation1 [shape = 'u32[144,128]{1,0:T(1,128)}', space=vmem, size = 0x12000, scoped, tag = 'internal scratch']
  %s0 = inlined_call_operand.vmem [shape: f32[128,128], index: 0, kind: input, shape index: {}]
  %s1 = inlined_call_operand.vmem [shape: f32[128,128], index: 1, kind: input, shape index: {}]
  %s2 = inlined_call_operand.vmem [shape: f32[128,128], index: 2, kind: input, shape index: {}]
  %s3 = inlined_call_operand.vmem [shape: f32[128,128], index: 3, kind: input, shape index: {}]
  %s4 = inlined_call_operand.vmem [shape: f32[128,128], index: 4, kind: input, shape index: {}]
  %s5 = inlined_call_operand.vmem [shape: f32[128,128], index: 5, kind: input, shape index: {}]
  %s6 = inlined_call_operand.vmem [shape: f32[128,128], index: 6, kind: input, shape index: {}]
  %s7 = inlined_call_operand.vmem [shape: f32[1,128], index: 7, kind: input, shape index: {}]
  %s8 = inlined_call_operand.vmem [shape: f32[1,128], index: 8, kind: input, shape index: {}]
  %s9 = inlined_call_operand.vmem [shape: f32[1,128], index: 9, kind: input, shape index: {}]
  %s10 = inlined_call_operand.vmem [shape: f32[1,128], index: 10, kind: input, shape index: {}]
  %s11 = inlined_call_operand.vmem [shape: f32[128,128], index: 11, kind: output, shape index: {0}]
  %s12 = inlined_call_operand.vmem [shape: f32[1,1,128], index: 12, kind: output, shape index: {1}]
  %s13 = inlined_call_operand.vmem [shape: f32[1,1,128], index: 13, kind: output, shape index: {2}]
  %14 = xla_tuple %s11, %s12, %s13
  %s15 = sld [smem:[#allocation0]]
  $region74: #{rcell_forward.4} parent=0
    _
  %s17 = ssub.s32 1, %s15
  %s18 = scalar_select 0, %s17, %s15
  // Predicated region
  $region2: #{rcell_forward.4} parent=0 // pred_check
    _
  $region3: #{rcell_forward.4} parent=0 // pred_check_branch
    %20 = sbr.rel (0) target = $region5
  $region4: #{rcell_forward.4} parent=0 // pred_region
    %s21 = sadd.s32 0, 0
    %s22 = smul.u32 16, %s21
    %p23 = scmp.lt.s32.totalorder %s22, 15
    %s24 = scalar_select %p23, %s22, 15
    %s25 = smul.addr %s24, 8
    %s26 = scalar_lea.vmem %s0, %s25
    %s27 = sadd.s32 0, 0
    %s28 = smul.u32 16, %s27
  $region5: #{rcell_forward.4} parent=0 // pred_fallthru
    _
  // Predicated region
  $region6: #{rcell_forward.4} parent=0 // pred_check
    _
  $region7: #{rcell_forward.4} parent=0 // pred_check_branch
    %30 = sbr.rel (0) target = $region9
  $region8: #{rcell_forward.4} parent=0 // pred_region
    %s31 = sadd.s32 0, 0
    %s32 = smul.u32 16, %s31
    %p33 = scmp.lt.s32.totalorder %s32, 15
    %s34 = scalar_select %p33, %s32, 15
    %s35 = smul.addr %s34, 8
    %s36 = scalar_lea.vmem %s1, %s35
    %s37 = sadd.s32 0, 0
    %s38 = smul.u32 16, %s37
  $region9: #{rcell_forward.4} parent=0 // pred_fallthru
    _
  // Predicated region
  $region10: #{rcell_forward.4} parent=0 // pred_check
    _
  $region11: #{rcell_forward.4} parent=0 // pred_check_branch
    %40 = sbr.rel (0) target = $region13
  $region12: #{rcell_forward.4} parent=0 // pred_region
    %s41 = sadd.s32 0, 0
    %s42 = smul.u32 16, %s41
    %p43 = scmp.lt.s32.totalorder %s42, 15
    %s44 = scalar_select %p43, %s42, 15
    %s45 = smul.addr %s44, 8
    %s46 = scalar_lea.vmem %s2, %s45
    %s47 = sadd.s32 0, 0
    %s48 = smul.u32 16, %s47
  $region13: #{rcell_forward.4} parent=0 // pred_fallthru
    _
  // Predicated region
  $region14: #{rcell_forward.4} parent=0 // pred_check
    _
  $region15: #{rcell_forward.4} parent=0 // pred_check_branch
    %50 = sbr.rel (0) target = $region17
  $region16: #{rcell_forward.4} parent=0 // pred_region
    _
  $region17: #{rcell_forward.4} parent=0 // pred_fallthru
    _
  // Predicated region
  $region18: #{rcell_forward.4} parent=0 // pred_check
    _
  $region19: #{rcell_forward.4} parent=0 // pred_check_branch
    %52 = sbr.rel (0) target = $region21
  $region20: #{rcell_forward.4} parent=0 // pred_region
    _
  $region21: #{rcell_forward.4} parent=0 // pred_fallthru
    _
  // Predicated region
  $region22: #{rcell_forward.4} parent=0 // pred_check
    _
  $region23: #{rcell_forward.4} parent=0 // pred_check_branch
    %54 = sbr.rel (0) target = $region25
  $region24: #{rcell_forward.4} parent=0 // pred_region
    _
  $region25: #{rcell_forward.4} parent=0 // pred_fallthru
    _
  // Predicated region
  $region26: #{rcell_forward.4} parent=0 // pred_check
    _
  $region27: #{rcell_forward.4} parent=0 // pred_check_branch
    %56 = sbr.rel (0) target = $region29
  $region28: #{rcell_forward.4} parent=0 // pred_region
    _
  $region29: #{rcell_forward.4} parent=0 // pred_fallthru
    _
  // Predicated region
  $region30: #{rcell_forward.4} parent=0 // pred_check
    _
  $region31: #{rcell_forward.4} parent=0 // pred_check_branch
    %58 = sbr.rel (0) target = $region33
  $region32: #{rcell_forward.4} parent=0 // pred_region
    _
  $region33: #{rcell_forward.4} parent=0 // pred_fallthru
    _
  // Predicated region
  $region34: #{rcell_forward.4} parent=0 // pred_check
    _
  $region35: #{rcell_forward.4} parent=0 // pred_check_branch
    %60 = sbr.rel (0) target = $region37
  $region36: #{rcell_forward.4} parent=0 // pred_region
    _
  $region37: #{rcell_forward.4} parent=0 // pred_fallthru
    _
  // Predicated region
  $region38: #{rcell_forward.4} parent=0 // pred_check
    _
  $region39: #{rcell_forward.4} parent=0 // pred_check_branch
    %62 = sbr.rel (0) target = $region41
  $region40: #{rcell_forward.4} parent=0 // pred_region
    _
  $region41: #{rcell_forward.4} parent=0 // pred_fallthru
    _
  // Predicated region
  $region42: #{rcell_forward.4} parent=0 // pred_check
    _
  $region43: #{rcell_forward.4} parent=0 // pred_check_branch
    %64 = sbr.rel (0) target = $region45
  $region44: #{rcell_forward.4} parent=0 // pred_region
    _
  $region45: #{rcell_forward.4} parent=0 // pred_fallthru
    _
  %s65 = sadd.s32 0, 0
  %s66 = smul.u32 16, %s65
  %p67 = scmp.lt.s32.totalorder %s66, 15
  %s68 = scalar_select %p67, %s66, 15
  %s69 = smul.addr %s68, 8
  %s70 = scalar_lea.vmem %s0, %s69
  %s71 = sadd.s32 0, 0
  %s72 = smul.u32 16, %s71
  %p73 = scmp.lt.s32.totalorder %s72, 15
  %s74 = scalar_select %p73, %s72, 15
  %s75 = smul.addr %s74, 8
  %s76 = scalar_lea.vmem %s1, %s75
  %s77 = sadd.s32 0, 0
  %s78 = smul.u32 16, %s77
  %p79 = scmp.lt.s32.totalorder %s78, 15
  %s80 = scalar_select %p79, %s78, 15
  %s81 = smul.addr %s80, 8
  %s82 = scalar_lea.vmem %s2, %s81
  %s83 = sadd.s32 0, 0
  %s84 = smul.u32 16, %s83
  %p85 = scmp.lt.s32.totalorder %s84, 15
  %s86 = scalar_select %p85, %s84, 15
  %s87 = smul.addr %s86, 8
  %s88 = scalar_lea.vmem %s11, %s87
  %s89 = sadd.s32 0, 0
  %s90 = smul.u32 16, %s89
  %p91 = scmp.lt.s32.totalorder %s90, 15
  %s92 = scalar_select %p91, %s90, 15
  %s93 = smul.addr %s92, 8
  %s94 = scalar_lea.vmem %s0, %s93
  %s95 = sadd.s32 0, 0
  %s96 = smul.u32 16, %s95
  %s97 = sadd.s32 0, 0
  %s98 = smul.u32 16, %s97
  %p99 = scmp.lt.s32.totalorder %s98, 15
  %s100 = scalar_select %p99, %s98, 15
  %s101 = smul.addr %s100, 8
  %s102 = scalar_lea.vmem %s1, %s101
  %s103 = sadd.s32 0, 0
  %s104 = smul.u32 16, %s103
  %s105 = sadd.s32 0, 0
  %s106 = smul.u32 16, %s105
  %p107 = scmp.lt.s32.totalorder %s106, 15
  %s108 = scalar_select %p107, %s106, 15
  %s109 = smul.addr %s108, 8
  %s110 = scalar_lea.vmem %s2, %s109
  %s111 = sadd.s32 0, 0
  %s112 = smul.u32 16, %s111
  %s113 = sadd.s32 0, 0
  %s114 = smul.u32 16, %s113
  %p115 = scmp.lt.s32.totalorder %s114, 15
  %s116 = scalar_select %p115, %s114, 15
  %s117 = smul.addr %s116, 8
  %s118 = scalar_lea.vmem %s11, %s117
  %s119 = sadd.s32 0, 0
  %s120 = smul.u32 16, %s119
  %p121 = scmp.eq.s32.totalorder 0, 0
  // Predicated region
  $region46: #{rcell_forward.4} parent=0 // pred_check
    %p122 = pneg %p121
  $region47: #{rcell_forward.4} parent=0 // pred_check_branch
    %124 = sbr.rel (%p122) target = $region49
  $region48: #{rcell_forward.4} parent=0 // pred_region
    %125 = vst [vmem:[%s12] sm:$0x1] 0.0
    %126 = vst [vmem:[%s13] sm:$0x1] 0.0
  $region49: #{rcell_forward.4} parent=0 // pred_fallthru
    _
  %v127 = vld [vmem:[%s94] sm:$0xff]
  %v128 = vld [vmem:[%s94 + $0x8] sm:$0xff]
  %v129 = vld [vmem:[%s94 + $0x10] sm:$0xff]
  %v130 = vld [vmem:[%s94 + $0x18] sm:$0xff]
  %v131 = vld [vmem:[%s94 + $0x20] sm:$0xff]
  %v132 = vld [vmem:[%s94 + $0x28] sm:$0xff]
  %v133 = vld [vmem:[%s94 + $0x30] sm:$0xff]
  %v134 = vld [vmem:[%s94 + $0x38] sm:$0xff]
  %v135 = vld [vmem:[%s94 + $0x40] sm:$0xff]
  %v136 = vld [vmem:[%s94 + $0x48] sm:$0xff]
  %v137 = vld [vmem:[%s94 + $0x50] sm:$0xff]
  %v138 = vld [vmem:[%s94 + $0x58] sm:$0xff]
  %v139 = vld [vmem:[%s94 + $0x60] sm:$0xff]
  %v140 = vld [vmem:[%s94 + $0x68] sm:$0xff]
  %v141 = vld [vmem:[%s94 + $0x70] sm:$0xff]
  %v142 = vld [vmem:[%s94 + $0x78] sm:$0xff]
  %v143 = vld [vmem:[%s102] sm:$0xff]
  %v144 = vld [vmem:[%s102 + $0x8] sm:$0xff]
  %v145 = vld [vmem:[%s102 + $0x10] sm:$0xff]
  %v146 = vld [vmem:[%s102 + $0x18] sm:$0xff]
  %v147 = vld [vmem:[%s102 + $0x20] sm:$0xff]
  %v148 = vld [vmem:[%s102 + $0x28] sm:$0xff]
  %v149 = vld [vmem:[%s102 + $0x30] sm:$0xff]
  %v150 = vld [vmem:[%s102 + $0x38] sm:$0xff]
  %v151 = vld [vmem:[%s102 + $0x40] sm:$0xff]
  %v152 = vld [vmem:[%s102 + $0x48] sm:$0xff]
  %v153 = vld [vmem:[%s102 + $0x50] sm:$0xff]
  %v154 = vld [vmem:[%s102 + $0x58] sm:$0xff]
  %v155 = vld [vmem:[%s102 + $0x60] sm:$0xff]
  %v156 = vld [vmem:[%s102 + $0x68] sm:$0xff]
  %v157 = vld [vmem:[%s102 + $0x70] sm:$0xff]
  %v158 = vld [vmem:[%s102 + $0x78] sm:$0xff]
  %v159 = vld [vmem:[%s110] sm:$0xff]
  %v160 = vld [vmem:[%s110 + $0x8] sm:$0xff]
  %v161 = vld [vmem:[%s110 + $0x10] sm:$0xff]
  %v162 = vld [vmem:[%s110 + $0x18] sm:$0xff]
  %v163 = vld [vmem:[%s110 + $0x20] sm:$0xff]
  %v164 = vld [vmem:[%s110 + $0x28] sm:$0xff]
  %v165 = vld [vmem:[%s110 + $0x30] sm:$0xff]
  %v166 = vld [vmem:[%s110 + $0x38] sm:$0xff]
  %v167 = vld [vmem:[%s110 + $0x40] sm:$0xff]
  %v168 = vld [vmem:[%s110 + $0x48] sm:$0xff]
  %v169 = vld [vmem:[%s110 + $0x50] sm:$0xff]
  %v170 = vld [vmem:[%s110 + $0x58] sm:$0xff]
  %v171 = vld [vmem:[%s110 + $0x60] sm:$0xff]
  %v172 = vld [vmem:[%s110 + $0x68] sm:$0xff]
  %v173 = vld [vmem:[%s110 + $0x70] sm:$0xff]
  %v174 = vld [vmem:[%s110 + $0x78] sm:$0xff]
  %v175 = vld [vmem:[%s5] sm:$0xff]
  %v176 = vld [vmem:[%s5 + $0x8] sm:$0xff]
  %v177 = vld [vmem:[%s5 + $0x10] sm:$0xff]
  %v178 = vld [vmem:[%s5 + $0x18] sm:$0xff]
  %v179 = vld [vmem:[%s5 + $0x20] sm:$0xff]
  %v180 = vld [vmem:[%s5 + $0x28] sm:$0xff]
  %v181 = vld [vmem:[%s5 + $0x30] sm:$0xff]
  %v182 = vld [vmem:[%s5 + $0x38] sm:$0xff]
  %v183 = vld [vmem:[%s5 + $0x40] sm:$0xff]
  %v184 = vld [vmem:[%s5 + $0x48] sm:$0xff]
  %v185 = vld [vmem:[%s5 + $0x50] sm:$0xff]
  %v186 = vld [vmem:[%s5 + $0x58] sm:$0xff]
  %v187 = vld [vmem:[%s5 + $0x60] sm:$0xff]
  %v188 = vld [vmem:[%s5 + $0x68] sm:$0xff]
  %v189 = vld [vmem:[%s5 + $0x70] sm:$0xff]
  %v190 = vld [vmem:[%s5 + $0x78] sm:$0xff]
  %v191 = vld [vmem:[%s8] sm:$0x1]
  %v193 = vlaneseq
  %v194 = vshrl.u32 %v193, 7
  %v195 = vsub.s32 0, %v194
  %v196 = vrot.slane %v191, %v195
  %198 = vmatprep.subr.mxu0 0.0
  %199 = vmatpush1.msra.mxu0 %v190
  %200 = vmatprep.subr.mxu0 0.0
  %201 = vmatpush1.msra.mxu0 %v189
  %202 = vmatprep.subr.mxu0 0.0
  %203 = vmatpush1.msra.mxu0 %v188
  %204 = vmatprep.subr.mxu0 0.0
  %205 = vmatpush1.msra.mxu0 %v187
  %206 = vmatprep.subr.mxu0 0.0
  %207 = vmatpush1.msra.mxu0 %v186
  %208 = vmatprep.subr.mxu0 0.0
  %209 = vmatpush1.msra.mxu0 %v185
  %210 = vmatprep.subr.mxu0 0.0
  %211 = vmatpush1.msra.mxu0 %v184
  %212 = vmatprep.subr.mxu0 0.0
  %213 = vmatpush1.msra.mxu0 %v183
  %214 = vmatprep.subr.mxu0 0.0
  %215 = vmatpush1.msra.mxu0 %v182
  %216 = vmatprep.subr.mxu0 0.0
  %217 = vmatpush1.msra.mxu0 %v181
  %218 = vmatprep.subr.mxu0 0.0
  %219 = vmatpush1.msra.mxu0 %v180
  %220 = vmatprep.subr.mxu0 0.0
  %221 = vmatpush1.msra.mxu0 %v179
  %222 = vmatprep.subr.mxu0 0.0
  %223 = vmatpush1.msra.mxu0 %v178
  %224 = vmatprep.subr.mxu0 0.0
  %225 = vmatpush1.msra.mxu0 %v177
  %226 = vmatprep.subr.mxu0 0.0
  %227 = vmatpush1.msra.mxu0 %v176
  %228 = vmatprep.subr.mxu0 0.0
  %229 = vmatpush1.msra.mxu0 %v175
  %230 = vmatprep.subr.mxu0 0.0
  %231 = vmatpush2.msra.mxu0 0.0
  %232 = vmatprep.subr.mxu0 0.0
  %233 = vmatpush2.msra.mxu0 0.0
  %234 = vmatprep.subr.mxu0 0.0
  %235 = vmatpush2.msra.mxu0 0.0
  %236 = vmatprep.subr.mxu0 0.0
  %237 = vmatpush2.msra.mxu0 0.0
  %238 = vmatprep.subr.mxu0 0.0
  %239 = vmatpush2.msra.mxu0 0.0
  %240 = vmatprep.subr.mxu0 0.0
  %241 = vmatpush2.msra.mxu0 0.0
  %242 = vmatprep.subr.mxu0 0.0
  %243 = vmatpush2.msra.mxu0 0.0
  %244 = vmatprep.subr.mxu0 0.0
  %245 = vmatpush2.msra.mxu0 0.0
  %246 = vmatprep.subr.mxu0 0.0
  %247 = vmatpush2.msra.mxu0 0.0
  %248 = vmatprep.subr.mxu0 0.0
  %249 = vmatpush2.msra.mxu0 0.0
  %250 = vmatprep.subr.mxu0 0.0
  %251 = vmatpush2.msra.mxu0 0.0
  %252 = vmatprep.subr.mxu0 0.0
  %253 = vmatpush2.msra.mxu0 0.0
  %254 = vmatprep.subr.mxu0 0.0
  %255 = vmatpush2.msra.mxu0 0.0
  %256 = vmatprep.subr.mxu0 0.0
  %257 = vmatpush2.msra.mxu0 0.0
  %258 = vmatprep.subr.mxu0 0.0
  %259 = vmatpush2.msra.mxu0 0.0
  %260 = vmatprep.subr.mxu0 0.0
  %261 = vmatpush2.msra.mxu0 0.0
  %262 = vmatprep.mubr.f32.mxu0 0.0
  %263 = vmatmul.mubr.f32.gmra.mxu0 %v159
  %v264 = vpop.f32.mrf.mxu0
  %v265 = vadd.f32 %v196, %v264
  %v266 = vpop.f32.mrf.mxu0
  %267 = vmatprep.mubr.f32.mxu0 0.0
  %268 = vmatmul.mubr.f32.gmra.mxu0 %v160
  %v269 = vpop.f32.mrf.mxu0
  %v270 = vadd.f32 %v196, %v269
  %v271 = vpop.f32.mrf.mxu0
  %272 = vmatprep.mubr.f32.mxu0 0.0
  %273 = vmatmul.mubr.f32.gmra.mxu0 %v161
  %v274 = vpop.f32.mrf.mxu0
  %v275 = vadd.f32 %v196, %v274
  %v276 = vpop.f32.mrf.mxu0
  %277 = vmatprep.mubr.f32.mxu0 0.0
  %278 = vmatmul.mubr.f32.gmra.mxu0 %v162
  %v279 = vpop.f32.mrf.mxu0
  %v280 = vadd.f32 %v196, %v279
  %v281 = vpop.f32.mrf.mxu0
  %282 = vmatprep.mubr.f32.mxu0 0.0
  %283 = vmatmul.mubr.f32.gmra.mxu0 %v163
  %v284 = vpop.f32.mrf.mxu0
  %v285 = vadd.f32 %v196, %v284
  %v286 = vpop.f32.mrf.mxu0
  %287 = vmatprep.mubr.f32.mxu0 0.0
  %288 = vmatmul.mubr.f32.gmra.mxu0 %v164
  %v289 = vpop.f32.mrf.mxu0
  %v290 = vadd.f32 %v196, %v289
  %v291 = vpop.f32.mrf.mxu0
  %292 = vmatprep.mubr.f32.mxu0 0.0
  %293 = vmatmul.mubr.f32.gmra.mxu0 %v165
  %v294 = vpop.f32.mrf.mxu0
  %v295 = vadd.f32 %v196, %v294
  %v296 = vpop.f32.mrf.mxu0
  %297 = vmatprep.mubr.f32.mxu0 0.0
  %298 = vmatmul.mubr.f32.gmra.mxu0 %v166
  %v299 = vpop.f32.mrf.mxu0
  %v300 = vadd.f32 %v196, %v299
  %v301 = vpop.f32.mrf.mxu0
  %302 = vmatprep.mubr.f32.mxu0 0.0
  %303 = vmatmul.mubr.f32.gmra.mxu0 %v167
  %v304 = vpop.f32.mrf.mxu0
  %v305 = vadd.f32 %v196, %v304
  %v306 = vpop.f32.mrf.mxu0
  %307 = vmatprep.mubr.f32.mxu0 0.0
  %308 = vmatmul.mubr.f32.gmra.mxu0 %v168
  %v309 = vpop.f32.mrf.mxu0
  %v310 = vadd.f32 %v196, %v309
  %v311 = vpop.f32.mrf.mxu0
  %312 = vmatprep.mubr.f32.mxu0 0.0
  %313 = vmatmul.mubr.f32.gmra.mxu0 %v169
  %v314 = vpop.f32.mrf.mxu0
  %v315 = vadd.f32 %v196, %v314
  %v316 = vpop.f32.mrf.mxu0
  %317 = vmatprep.mubr.f32.mxu0 0.0
  %318 = vmatmul.mubr.f32.gmra.mxu0 %v170
  %v319 = vpop.f32.mrf.mxu0
  %v320 = vadd.f32 %v196, %v319
  %v321 = vpop.f32.mrf.mxu0
  %322 = vmatprep.mubr.f32.mxu0 0.0
  %323 = vmatmul.mubr.f32.gmra.mxu0 %v171
  %v324 = vpop.f32.mrf.mxu0
  %v325 = vadd.f32 %v196, %v324
  %v326 = vpop.f32.mrf.mxu0
  %327 = vmatprep.mubr.f32.mxu0 0.0
  %328 = vmatmul.mubr.f32.gmra.mxu0 %v172
  %v329 = vpop.f32.mrf.mxu0
  %v330 = vadd.f32 %v196, %v329
  %v331 = vpop.f32.mrf.mxu0
  %332 = vmatprep.mubr.f32.mxu0 0.0
  %333 = vmatmul.mubr.f32.gmra.mxu0 %v173
  %v334 = vpop.f32.mrf.mxu0
  %v335 = vadd.f32 %v196, %v334
  %v336 = vpop.f32.mrf.mxu0
  %337 = vmatprep.mubr.f32.mxu0 0.0
  %338 = vmatmul.mubr.f32.gmra.mxu0 %v174
  %v339 = vpop.f32.mrf.mxu0
  %v340 = vadd.f32 %v196, %v339
  %v341 = vpop.f32.mrf.mxu0
  %342 = vdwg.mxu0
  %v343 = vld [vmem:[%s9] sm:$0x1]
  %v345 = vlaneseq
  %v346 = vshrl.u32 %v345, 7
  %v347 = vsub.s32 0, %v346
  %v348 = vrot.slane %v343, %v347
  %v350 = vmul.f32 %v348, %v143
  %v351 = vmul.f32 %v348, %v144
  %v352 = vmul.f32 %v348, %v145
  %v353 = vmul.f32 %v348, %v146
  %v354 = vmul.f32 %v348, %v147
  %v355 = vmul.f32 %v348, %v148
  %v356 = vmul.f32 %v348, %v149
  %v357 = vmul.f32 %v348, %v150
  %v358 = vmul.f32 %v348, %v151
  %v359 = vmul.f32 %v348, %v152
  %v360 = vmul.f32 %v348, %v153
  %v361 = vmul.f32 %v348, %v154
  %v362 = vmul.f32 %v348, %v155
  %v363 = vmul.f32 %v348, %v156
  %v364 = vmul.f32 %v348, %v157
  %v365 = vmul.f32 %v348, %v158
  %v366 = vld [vmem:[%s10] sm:$0x1]
  %v368 = vlaneseq
  %v369 = vshrl.u32 %v368, 7
  %v370 = vsub.s32 0, %v369
  %v371 = vrot.slane %v366, %v370
  %v373 = vadd.f32 %v350, %v371
  %v374 = vadd.f32 %v351, %v371
  %v375 = vadd.f32 %v352, %v371
  %v376 = vadd.f32 %v353, %v371
  %v377 = vadd.f32 %v354, %v371
  %v378 = vadd.f32 %v355, %v371
  %v379 = vadd.f32 %v356, %v371
  %v380 = vadd.f32 %v357, %v371
  %v381 = vadd.f32 %v358, %v371
  %v382 = vadd.f32 %v359, %v371
  %v383 = vadd.f32 %v360, %v371
  %v384 = vadd.f32 %v361, %v371
  %v385 = vadd.f32 %v362, %v371
  %v386 = vadd.f32 %v363, %v371
  %v387 = vadd.f32 %v364, %v371
  %v388 = vadd.f32 %v365, %v371
  %v389 = vmul.f32 %v265, %v373
  %v390 = vmul.f32 %v270, %v374
  %v391 = vmul.f32 %v275, %v375
  %v392 = vmul.f32 %v280, %v376
  %v393 = vmul.f32 %v285, %v377
  %v394 = vmul.f32 %v290, %v378
  %v395 = vmul.f32 %v295, %v379
  %v396 = vmul.f32 %v300, %v380
  %v397 = vmul.f32 %v305, %v381
  %v398 = vmul.f32 %v310, %v382
  %v399 = vmul.f32 %v315, %v383
  %v400 = vmul.f32 %v320, %v384
  %v401 = vmul.f32 %v325, %v385
  %v402 = vmul.f32 %v330, %v386
  %v403 = vmul.f32 %v335, %v387
  %v404 = vmul.f32 %v340, %v388
  %v405 = vmax.f32 %v389, 0.0
  %v406 = vmax.f32 %v390, 0.0
  %v407 = vmax.f32 %v391, 0.0
  %v408 = vmax.f32 %v392, 0.0
  %v409 = vmax.f32 %v393, 0.0
  %v410 = vmax.f32 %v394, 0.0
  %v411 = vmax.f32 %v395, 0.0
  %v412 = vmax.f32 %v396, 0.0
  %v413 = vmax.f32 %v397, 0.0
  %v414 = vmax.f32 %v398, 0.0
  %v415 = vmax.f32 %v399, 0.0
  %v416 = vmax.f32 %v400, 0.0
  %v417 = vmax.f32 %v401, 0.0
  %v418 = vmax.f32 %v402, 0.0
  %v419 = vmax.f32 %v403, 0.0
  %v420 = vmax.f32 %v404, 0.0
  %v421 = vand.u32 2147483647, %v389
  %v422 = vand.u32 2147483647, %v390
  %v423 = vand.u32 2147483647, %v391
  %v424 = vand.u32 2147483647, %v392
  %v425 = vand.u32 2147483647, %v393
  %v426 = vand.u32 2147483647, %v394
  %v427 = vand.u32 2147483647, %v395
  %v428 = vand.u32 2147483647, %v396
  %v429 = vand.u32 2147483647, %v397
  %v430 = vand.u32 2147483647, %v398
  %v431 = vand.u32 2147483647, %v399
  %v432 = vand.u32 2147483647, %v400
  %v433 = vand.u32 2147483647, %v401
  %v434 = vand.u32 2147483647, %v402
  %v435 = vand.u32 2147483647, %v403
  %v436 = vand.u32 2147483647, %v404
  %v437 = vsub.f32 0.0, %v421
  %v438 = vsub.f32 0.0, %v422
  %v439 = vsub.f32 0.0, %v423
  %v440 = vsub.f32 0.0, %v424
  %v441 = vsub.f32 0.0, %v425
  %v442 = vsub.f32 0.0, %v426
  %v443 = vsub.f32 0.0, %v427
  %v444 = vsub.f32 0.0, %v428
  %v445 = vsub.f32 0.0, %v429
  %v446 = vsub.f32 0.0, %v430
  %v447 = vsub.f32 0.0, %v431
  %v448 = vsub.f32 0.0, %v432
  %v449 = vsub.f32 0.0, %v433
  %v450 = vsub.f32 0.0, %v434
  %v451 = vsub.f32 0.0, %v435
  %v452 = vsub.f32 0.0, %v436
  %v453 = vmul.f32 %v437, 1.442695
  %v454 = vpow.pop %v453
  %v455 = vmul.f32 %v438, 1.442695
  %v456 = vpow.pop %v455
  %v457 = vmul.f32 %v439, 1.442695
  %v458 = vpow.pop %v457
  %v459 = vmul.f32 %v440, 1.442695
  %v460 = vpow.pop %v459
  %v461 = vmul.f32 %v441, 1.442695
  %v462 = vpow.pop %v461
  %v463 = vmul.f32 %v442, 1.442695
  %v464 = vpow.pop %v463
  %v465 = vmul.f32 %v443, 1.442695
  %v466 = vpow.pop %v465
  %v467 = vmul.f32 %v444, 1.442695
  %v468 = vpow.pop %v467
  %v469 = vmul.f32 %v445, 1.442695
  %v470 = vpow.pop %v469
  %v471 = vmul.f32 %v446, 1.442695
  %v472 = vpow.pop %v471
  %v473 = vmul.f32 %v447, 1.442695
  %v474 = vpow.pop %v473
  %v475 = vmul.f32 %v448, 1.442695
  %v476 = vpow.pop %v475
  %v477 = vmul.f32 %v449, 1.442695
  %v478 = vpow.pop %v477
  %v479 = vmul.f32 %v450, 1.442695
  %v480 = vpow.pop %v479
  %v481 = vmul.f32 %v451, 1.442695
  %v482 = vpow.pop %v481
  %v483 = vmul.f32 %v452, 1.442695
  %v484 = vpow.pop %v483
  %v485 = vadd.f32 %v454, 1.0
  %v486 = vlog2.pop %v485
  %v487 = vmul.f32 %v486, 0.6931472
  %v488 = vmul.f32 -0.5, %v454
  %v489 = vadd.f32 %v488, 1.0
  %v490 = vmul.f32 %v489, %v454
  %v491 = vand.u32 2147483647, %v454
  %vm492 = vcmp.lt.f32.partialorder %v491, 0.0004427343
  %v493 = vsel %vm492, %v490, %v487
  %v494 = vadd.f32 %v456, 1.0
  %v495 = vlog2.pop %v494
  %v496 = vmul.f32 %v495, 0.6931472
  %v497 = vmul.f32 -0.5, %v456
  %v498 = vadd.f32 %v497, 1.0
  %v499 = vmul.f32 %v498, %v456
  %v500 = vand.u32 2147483647, %v456
  %vm501 = vcmp.lt.f32.partialorder %v500, 0.0004427343
  %v502 = vsel %vm501, %v499, %v496
  %v503 = vadd.f32 %v458, 1.0
  %v504 = vlog2.pop %v503
  %v505 = vmul.f32 %v504, 0.6931472
  %v506 = vmul.f32 -0.5, %v458
  %v507 = vadd.f32 %v506, 1.0
  %v508 = vmul.f32 %v507, %v458
  %v509 = vand.u32 2147483647, %v458
  %vm510 = vcmp.lt.f32.partialorder %v509, 0.0004427343
  %v511 = vsel %vm510, %v508, %v505
  %v512 = vadd.f32 %v460, 1.0
  %v513 = vlog2.pop %v512
  %v514 = vmul.f32 %v513, 0.6931472
  %v515 = vmul.f32 -0.5, %v460
  %v516 = vadd.f32 %v515, 1.0
  %v517 = vmul.f32 %v516, %v460
  %v518 = vand.u32 2147483647, %v460
  %vm519 = vcmp.lt.f32.partialorder %v518, 0.0004427343
  %v520 = vsel %vm519, %v517, %v514
  %v521 = vadd.f32 %v462, 1.0
  %v522 = vlog2.pop %v521
  %v523 = vmul.f32 %v522, 0.6931472
  %v524 = vmul.f32 -0.5, %v462
  %v525 = vadd.f32 %v524, 1.0
  %v526 = vmul.f32 %v525, %v462
  %v527 = vand.u32 2147483647, %v462
  %vm528 = vcmp.lt.f32.partialorder %v527, 0.0004427343
  %v529 = vsel %vm528, %v526, %v523
  %v530 = vadd.f32 %v464, 1.0
  %v531 = vlog2.pop %v530
  %v532 = vmul.f32 %v531, 0.6931472
  %v533 = vmul.f32 -0.5, %v464
  %v534 = vadd.f32 %v533, 1.0
  %v535 = vmul.f32 %v534, %v464
  %v536 = vand.u32 2147483647, %v464
  %vm537 = vcmp.lt.f32.partialorder %v536, 0.0004427343
  %v538 = vsel %vm537, %v535, %v532
  %v539 = vadd.f32 %v466, 1.0
  %v540 = vlog2.pop %v539
  %v541 = vmul.f32 %v540, 0.6931472
  %v542 = vmul.f32 -0.5, %v466
  %v543 = vadd.f32 %v542, 1.0
  %v544 = vmul.f32 %v543, %v466
  %v545 = vand.u32 2147483647, %v466
  %vm546 = vcmp.lt.f32.partialorder %v545, 0.0004427343
  %v547 = vsel %vm546, %v544, %v541
  %v548 = vadd.f32 %v468, 1.0
  %v549 = vlog2.pop %v548
  %v550 = vmul.f32 %v549, 0.6931472
  %v551 = vmul.f32 -0.5, %v468
  %v552 = vadd.f32 %v551, 1.0
  %v553 = vmul.f32 %v552, %v468
  %v554 = vand.u32 2147483647, %v468
  %vm555 = vcmp.lt.f32.partialorder %v554, 0.0004427343
  %v556 = vsel %vm555, %v553, %v550
  %v557 = vadd.f32 %v470, 1.0
  %v558 = vlog2.pop %v557
  %v559 = vmul.f32 %v558, 0.6931472
  %v560 = vmul.f32 -0.5, %v470
  %v561 = vadd.f32 %v560, 1.0
  %v562 = vmul.f32 %v561, %v470
  %v563 = vand.u32 2147483647, %v470
  %vm564 = vcmp.lt.f32.partialorder %v563, 0.0004427343
  %v565 = vsel %vm564, %v562, %v559
  %v566 = vadd.f32 %v472, 1.0
  %v567 = vlog2.pop %v566
  %v568 = vmul.f32 %v567, 0.6931472
  %v569 = vmul.f32 -0.5, %v472
  %v570 = vadd.f32 %v569, 1.0
  %v571 = vmul.f32 %v570, %v472
  %v572 = vand.u32 2147483647, %v472
  %vm573 = vcmp.lt.f32.partialorder %v572, 0.0004427343
  %v574 = vsel %vm573, %v571, %v568
  %v575 = vadd.f32 %v474, 1.0
  %v576 = vlog2.pop %v575
  %v577 = vmul.f32 %v576, 0.6931472
  %v578 = vmul.f32 -0.5, %v474
  %v579 = vadd.f32 %v578, 1.0
  %v580 = vmul.f32 %v579, %v474
  %v581 = vand.u32 2147483647, %v474
  %vm582 = vcmp.lt.f32.partialorder %v581, 0.0004427343
  %v583 = vsel %vm582, %v580, %v577
  %v584 = vadd.f32 %v476, 1.0
  %v585 = vlog2.pop %v584
  %v586 = vmul.f32 %v585, 0.6931472
  %v587 = vmul.f32 -0.5, %v476
  %v588 = vadd.f32 %v587, 1.0
  %v589 = vmul.f32 %v588, %v476
  %v590 = vand.u32 2147483647, %v476
  %vm591 = vcmp.lt.f32.partialorder %v590, 0.0004427343
  %v592 = vsel %vm591, %v589, %v586
  %v593 = vadd.f32 %v478, 1.0
  %v594 = vlog2.pop %v593
  %v595 = vmul.f32 %v594, 0.6931472
  %v596 = vmul.f32 -0.5, %v478
  %v597 = vadd.f32 %v596, 1.0
  %v598 = vmul.f32 %v597, %v478
  %v599 = vand.u32 2147483647, %v478
  %vm600 = vcmp.lt.f32.partialorder %v599, 0.0004427343
  %v601 = vsel %vm600, %v598, %v595
  %v602 = vadd.f32 %v480, 1.0
  %v603 = vlog2.pop %v602
  %v604 = vmul.f32 %v603, 0.6931472
  %v605 = vmul.f32 -0.5, %v480
  %v606 = vadd.f32 %v605, 1.0
  %v607 = vmul.f32 %v606, %v480
  %v608 = vand.u32 2147483647, %v480
  %vm609 = vcmp.lt.f32.partialorder %v608, 0.0004427343
  %v610 = vsel %vm609, %v607, %v604
  %v611 = vadd.f32 %v482, 1.0
  %v612 = vlog2.pop %v611
  %v613 = vmul.f32 %v612, 0.6931472
  %v614 = vmul.f32 -0.5, %v482
  %v615 = vadd.f32 %v614, 1.0
  %v616 = vmul.f32 %v615, %v482
  %v617 = vand.u32 2147483647, %v482
  %vm618 = vcmp.lt.f32.partialorder %v617, 0.0004427343
  %v619 = vsel %vm618, %v616, %v613
  %v620 = vadd.f32 %v484, 1.0
  %v621 = vlog2.pop %v620
  %v622 = vmul.f32 %v621, 0.6931472
  %v623 = vmul.f32 -0.5, %v484
  %v624 = vadd.f32 %v623, 1.0
  %v625 = vmul.f32 %v624, %v484
  %v626 = vand.u32 2147483647, %v484
  %vm627 = vcmp.lt.f32.partialorder %v626, 0.0004427343
  %v628 = vsel %vm627, %v625, %v622
  %v629 = vadd.f32 %v405, %v493
  %v630 = vadd.f32 %v406, %v502
  %v631 = vadd.f32 %v407, %v511
  %v632 = vadd.f32 %v408, %v520
  %v633 = vadd.f32 %v409, %v529
  %v634 = vadd.f32 %v410, %v538
  %v635 = vadd.f32 %v411, %v547
  %v636 = vadd.f32 %v412, %v556
  %v637 = vadd.f32 %v413, %v565
  %v638 = vadd.f32 %v414, %v574
  %v639 = vadd.f32 %v415, %v583
  %v640 = vadd.f32 %v416, %v592
  %v641 = vadd.f32 %v417, %v601
  %v642 = vadd.f32 %v418, %v610
  %v643 = vadd.f32 %v419, %v619
  %v644 = vadd.f32 %v420, %v628
  %v645 = vsub.f32 %v127, %v629
  %v646 = vsub.f32 %v128, %v630
  %v647 = vsub.f32 %v129, %v631
  %v648 = vsub.f32 %v130, %v632
  %v649 = vsub.f32 %v131, %v633
  %v650 = vsub.f32 %v132, %v634
  %v651 = vsub.f32 %v133, %v635
  %v652 = vsub.f32 %v134, %v636
  %v653 = vsub.f32 %v135, %v637
  %v654 = vsub.f32 %v136, %v638
  %v655 = vsub.f32 %v137, %v639
  %v656 = vsub.f32 %v138, %v640
  %v657 = vsub.f32 %v139, %v641
  %v658 = vsub.f32 %v140, %v642
  %v659 = vsub.f32 %v141, %v643
  %v660 = vsub.f32 %v142, %v644
  %v661 = vmax.f32 %v645, 0.0
  %v662 = vmax.f32 %v646, 0.0
  %v663 = vmax.f32 %v647, 0.0
  %v664 = vmax.f32 %v648, 0.0
  %v665 = vmax.f32 %v649, 0.0
  %v666 = vmax.f32 %v650, 0.0
  %v667 = vmax.f32 %v651, 0.0
  %v668 = vmax.f32 %v652, 0.0
  %v669 = vmax.f32 %v653, 0.0
  %v670 = vmax.f32 %v654, 0.0
  %v671 = vmax.f32 %v655, 0.0
  %v672 = vmax.f32 %v656, 0.0
  %v673 = vmax.f32 %v657, 0.0
  %v674 = vmax.f32 %v658, 0.0
  %v675 = vmax.f32 %v659, 0.0
  %v676 = vmax.f32 %v660, 0.0
  %v677 = vand.u32 2147483647, %v645
  %v678 = vand.u32 2147483647, %v646
  %v679 = vand.u32 2147483647, %v647
  %v680 = vand.u32 2147483647, %v648
  %v681 = vand.u32 2147483647, %v649
  %v682 = vand.u32 2147483647, %v650
  %v683 = vand.u32 2147483647, %v651
  %v684 = vand.u32 2147483647, %v652
  %v685 = vand.u32 2147483647, %v653
  %v686 = vand.u32 2147483647, %v654
  %v687 = vand.u32 2147483647, %v655
  %v688 = vand.u32 2147483647, %v656
  %v689 = vand.u32 2147483647, %v657
  %v690 = vand.u32 2147483647, %v658
  %v691 = vand.u32 2147483647, %v659
  %v692 = vand.u32 2147483647, %v660
  %v693 = vsub.f32 0.0, %v677
  %v694 = vsub.f32 0.0, %v678
  %v695 = vsub.f32 0.0, %v679
  %v696 = vsub.f32 0.0, %v680
  %v697 = vsub.f32 0.0, %v681
  %v698 = vsub.f32 0.0, %v682
  %v699 = vsub.f32 0.0, %v683
  %v700 = vsub.f32 0.0, %v684
  %v701 = vsub.f32 0.0, %v685
  %v702 = vsub.f32 0.0, %v686
  %v703 = vsub.f32 0.0, %v687
  %v704 = vsub.f32 0.0, %v688
  %v705 = vsub.f32 0.0, %v689
  %v706 = vsub.f32 0.0, %v690
  %v707 = vsub.f32 0.0, %v691
  %v708 = vsub.f32 0.0, %v692
  %v709 = vmul.f32 %v693, 1.442695
  %v710 = vpow.pop %v709
  %v711 = vmul.f32 %v694, 1.442695
  %v712 = vpow.pop %v711
  %v713 = vmul.f32 %v695, 1.442695
  %v714 = vpow.pop %v713
  %v715 = vmul.f32 %v696, 1.442695
  %v716 = vpow.pop %v715
  %v717 = vmul.f32 %v697, 1.442695
  %v718 = vpow.pop %v717
  %v719 = vmul.f32 %v698, 1.442695
  %v720 = vpow.pop %v719
  %v721 = vmul.f32 %v699, 1.442695
  %v722 = vpow.pop %v721
  %v723 = vmul.f32 %v700, 1.442695
  %v724 = vpow.pop %v723
  %v725 = vmul.f32 %v701, 1.442695
  %v726 = vpow.pop %v725
  %v727 = vmul.f32 %v702, 1.442695
  %v728 = vpow.pop %v727
  %v729 = vmul.f32 %v703, 1.442695
  %v730 = vpow.pop %v729
  %v731 = vmul.f32 %v704, 1.442695
  %v732 = vpow.pop %v731
  %v733 = vmul.f32 %v705, 1.442695
  %v734 = vpow.pop %v733
  %v735 = vmul.f32 %v706, 1.442695
  %v736 = vpow.pop %v735
  %v737 = vmul.f32 %v707, 1.442695
  %v738 = vpow.pop %v737
  %v739 = vmul.f32 %v708, 1.442695
  %v740 = vpow.pop %v739
  %v741 = vadd.f32 %v710, 1.0
  %v742 = vlog2.pop %v741
  %v743 = vmul.f32 %v742, 0.6931472
  %v744 = vmul.f32 -0.5, %v710
  %v745 = vadd.f32 %v744, 1.0
  %v746 = vmul.f32 %v745, %v710
  %v747 = vand.u32 2147483647, %v710
  %vm748 = vcmp.lt.f32.partialorder %v747, 0.0004427343
  %v749 = vsel %vm748, %v746, %v743
  %v750 = vadd.f32 %v712, 1.0
  %v751 = vlog2.pop %v750
  %v752 = vmul.f32 %v751, 0.6931472
  %v753 = vmul.f32 -0.5, %v712
  %v754 = vadd.f32 %v753, 1.0
  %v755 = vmul.f32 %v754, %v712
  %v756 = vand.u32 2147483647, %v712
  %vm757 = vcmp.lt.f32.partialorder %v756, 0.0004427343
  %v758 = vsel %vm757, %v755, %v752
  %v759 = vadd.f32 %v714, 1.0
  %v760 = vlog2.pop %v759
  %v761 = vmul.f32 %v760, 0.6931472
  %v762 = vmul.f32 -0.5, %v714
  %v763 = vadd.f32 %v762, 1.0
  %v764 = vmul.f32 %v763, %v714
  %v765 = vand.u32 2147483647, %v714
  %vm766 = vcmp.lt.f32.partialorder %v765, 0.0004427343
  %v767 = vsel %vm766, %v764, %v761
  %v768 = vadd.f32 %v716, 1.0
  %v769 = vlog2.pop %v768
  %v770 = vmul.f32 %v769, 0.6931472
  %v771 = vmul.f32 -0.5, %v716
  %v772 = vadd.f32 %v771, 1.0
  %v773 = vmul.f32 %v772, %v716
  %v774 = vand.u32 2147483647, %v716
  %vm775 = vcmp.lt.f32.partialorder %v774, 0.0004427343
  %v776 = vsel %vm775, %v773, %v770
  %v777 = vadd.f32 %v718, 1.0
  %v778 = vlog2.pop %v777
  %v779 = vmul.f32 %v778, 0.6931472
  %v780 = vmul.f32 -0.5, %v718
  %v781 = vadd.f32 %v780, 1.0
  %v782 = vmul.f32 %v781, %v718
  %v783 = vand.u32 2147483647, %v718
  %vm784 = vcmp.lt.f32.partialorder %v783, 0.0004427343
  %v785 = vsel %vm784, %v782, %v779
  %v786 = vadd.f32 %v720, 1.0
  %v787 = vlog2.pop %v786
  %v788 = vmul.f32 %v787, 0.6931472
  %v789 = vmul.f32 -0.5, %v720
  %v790 = vadd.f32 %v789, 1.0
  %v791 = vmul.f32 %v790, %v720
  %v792 = vand.u32 2147483647, %v720
  %vm793 = vcmp.lt.f32.partialorder %v792, 0.0004427343
  %v794 = vsel %vm793, %v791, %v788
  %v795 = vadd.f32 %v722, 1.0
  %v796 = vlog2.pop %v795
  %v797 = vmul.f32 %v796, 0.6931472
  %v798 = vmul.f32 -0.5, %v722
  %v799 = vadd.f32 %v798, 1.0
  %v800 = vmul.f32 %v799, %v722
  %v801 = vand.u32 2147483647, %v722
  %vm802 = vcmp.lt.f32.partialorder %v801, 0.0004427343
  %v803 = vsel %vm802, %v800, %v797
  %v804 = vadd.f32 %v724, 1.0
  %v805 = vlog2.pop %v804
  %v806 = vmul.f32 %v805, 0.6931472
  %v807 = vmul.f32 -0.5, %v724
  %v808 = vadd.f32 %v807, 1.0
  %v809 = vmul.f32 %v808, %v724
  %v810 = vand.u32 2147483647, %v724
  %vm811 = vcmp.lt.f32.partialorder %v810, 0.0004427343
  %v812 = vsel %vm811, %v809, %v806
  %v813 = vadd.f32 %v726, 1.0
  %v814 = vlog2.pop %v813
  %v815 = vmul.f32 %v814, 0.6931472
  %v816 = vmul.f32 -0.5, %v726
  %v817 = vadd.f32 %v816, 1.0
  %v818 = vmul.f32 %v817, %v726
  %v819 = vand.u32 2147483647, %v726
  %vm820 = vcmp.lt.f32.partialorder %v819, 0.0004427343
  %v821 = vsel %vm820, %v818, %v815
  %v822 = vadd.f32 %v728, 1.0
  %v823 = vlog2.pop %v822
  %v824 = vmul.f32 %v823, 0.6931472
  %v825 = vmul.f32 -0.5, %v728
  %v826 = vadd.f32 %v825, 1.0
  %v827 = vmul.f32 %v826, %v728
  %v828 = vand.u32 2147483647, %v728
  %vm829 = vcmp.lt.f32.partialorder %v828, 0.0004427343
  %v830 = vsel %vm829, %v827, %v824
  %v831 = vadd.f32 %v730, 1.0
  %v832 = vlog2.pop %v831
  %v833 = vmul.f32 %v832, 0.6931472
  %v834 = vmul.f32 -0.5, %v730
  %v835 = vadd.f32 %v834, 1.0
  %v836 = vmul.f32 %v835, %v730
  %v837 = vand.u32 2147483647, %v730
  %vm838 = vcmp.lt.f32.partialorder %v837, 0.0004427343
  %v839 = vsel %vm838, %v836, %v833
  %v840 = vadd.f32 %v732, 1.0
  %v841 = vlog2.pop %v840
  %v842 = vmul.f32 %v841, 0.6931472
  %v843 = vmul.f32 -0.5, %v732
  %v844 = vadd.f32 %v843, 1.0
  %v845 = vmul.f32 %v844, %v732
  %v846 = vand.u32 2147483647, %v732
  %vm847 = vcmp.lt.f32.partialorder %v846, 0.0004427343
  %v848 = vsel %vm847, %v845, %v842
  %v849 = vadd.f32 %v734, 1.0
  %v850 = vlog2.pop %v849
  %v851 = vmul.f32 %v850, 0.6931472
  %v852 = vmul.f32 -0.5, %v734
  %v853 = vadd.f32 %v852, 1.0
  %v854 = vmul.f32 %v853, %v734
  %v855 = vand.u32 2147483647, %v734
  %vm856 = vcmp.lt.f32.partialorder %v855, 0.0004427343
  %v857 = vsel %vm856, %v854, %v851
  %v858 = vadd.f32 %v736, 1.0
  %v859 = vlog2.pop %v858
  %v860 = vmul.f32 %v859, 0.6931472
  %v861 = vmul.f32 -0.5, %v736
  %v862 = vadd.f32 %v861, 1.0
  %v863 = vmul.f32 %v862, %v736
  %v864 = vand.u32 2147483647, %v736
  %vm865 = vcmp.lt.f32.partialorder %v864, 0.0004427343
  %v866 = vsel %vm865, %v863, %v860
  %v867 = vadd.f32 %v738, 1.0
  %v868 = vlog2.pop %v867
  %v869 = vmul.f32 %v868, 0.6931472
  %v870 = vmul.f32 -0.5, %v738
  %v871 = vadd.f32 %v870, 1.0
  %v872 = vmul.f32 %v871, %v738
  %v873 = vand.u32 2147483647, %v738
  %vm874 = vcmp.lt.f32.partialorder %v873, 0.0004427343
  %v875 = vsel %vm874, %v872, %v869
  %v876 = vadd.f32 %v740, 1.0
  %v877 = vlog2.pop %v876
  %v878 = vmul.f32 %v877, 0.6931472
  %v879 = vmul.f32 -0.5, %v740
  %v880 = vadd.f32 %v879, 1.0
  %v881 = vmul.f32 %v880, %v740
  %v882 = vand.u32 2147483647, %v740
  %vm883 = vcmp.lt.f32.partialorder %v882, 0.0004427343
  %v884 = vsel %vm883, %v881, %v878
  %v885 = vadd.f32 %v661, %v749
  %v886 = vadd.f32 %v662, %v758
  %v887 = vadd.f32 %v663, %v767
  %v888 = vadd.f32 %v664, %v776
  %v889 = vadd.f32 %v665, %v785
  %v890 = vadd.f32 %v666, %v794
  %v891 = vadd.f32 %v667, %v803
  %v892 = vadd.f32 %v668, %v812
  %v893 = vadd.f32 %v669, %v821
  %v894 = vadd.f32 %v670, %v830
  %v895 = vadd.f32 %v671, %v839
  %v896 = vadd.f32 %v672, %v848
  %v897 = vadd.f32 %v673, %v857
  %v898 = vadd.f32 %v674, %v866
  %v899 = vadd.f32 %v675, %v875
  %v900 = vadd.f32 %v676, %v884
  %v901 = vld [vmem:[%s3] sm:$0xff]
  %v902 = vld [vmem:[%s3 + $0x8] sm:$0xff]
  %v903 = vld [vmem:[%s3 + $0x10] sm:$0xff]
  %v904 = vld [vmem:[%s3 + $0x18] sm:$0xff]
  %v905 = vld [vmem:[%s3 + $0x20] sm:$0xff]
  %v906 = vld [vmem:[%s3 + $0x28] sm:$0xff]
  %v907 = vld [vmem:[%s3 + $0x30] sm:$0xff]
  %v908 = vld [vmem:[%s3 + $0x38] sm:$0xff]
  %v909 = vld [vmem:[%s3 + $0x40] sm:$0xff]
  %v910 = vld [vmem:[%s3 + $0x48] sm:$0xff]
  %v911 = vld [vmem:[%s3 + $0x50] sm:$0xff]
  %v912 = vld [vmem:[%s3 + $0x58] sm:$0xff]
  %v913 = vld [vmem:[%s3 + $0x60] sm:$0xff]
  %v914 = vld [vmem:[%s3 + $0x68] sm:$0xff]
  %v915 = vld [vmem:[%s3 + $0x70] sm:$0xff]
  %v916 = vld [vmem:[%s3 + $0x78] sm:$0xff]
  %v917 = vld [vmem:[%s4] sm:$0xff]
  %v918 = vld [vmem:[%s4 + $0x8] sm:$0xff]
  %v919 = vld [vmem:[%s4 + $0x10] sm:$0xff]
  %v920 = vld [vmem:[%s4 + $0x18] sm:$0xff]
  %v921 = vld [vmem:[%s4 + $0x20] sm:$0xff]
  %v922 = vld [vmem:[%s4 + $0x28] sm:$0xff]
  %v923 = vld [vmem:[%s4 + $0x30] sm:$0xff]
  %v924 = vld [vmem:[%s4 + $0x38] sm:$0xff]
  %v925 = vld [vmem:[%s4 + $0x40] sm:$0xff]
  %v926 = vld [vmem:[%s4 + $0x48] sm:$0xff]
  %v927 = vld [vmem:[%s4 + $0x50] sm:$0xff]
  %v928 = vld [vmem:[%s4 + $0x58] sm:$0xff]
  %v929 = vld [vmem:[%s4 + $0x60] sm:$0xff]
  %v930 = vld [vmem:[%s4 + $0x68] sm:$0xff]
  %v931 = vld [vmem:[%s4 + $0x70] sm:$0xff]
  %v932 = vld [vmem:[%s4 + $0x78] sm:$0xff]
  %933 = vmatprep.subr.mxu0 0.0
  %934 = vmatpush1.msra.mxu0 %v932
  %935 = vmatprep.subr.mxu0 0.0
  %936 = vmatpush1.msra.mxu0 %v931
  %937 = vmatprep.subr.mxu0 0.0
  %938 = vmatpush1.msra.mxu0 %v930
  %939 = vmatprep.subr.mxu0 0.0
  %940 = vmatpush1.msra.mxu0 %v929
  %941 = vmatprep.subr.mxu0 0.0
  %942 = vmatpush1.msra.mxu0 %v928
  %943 = vmatprep.subr.mxu0 0.0
  %944 = vmatpush1.msra.mxu0 %v927
  %945 = vmatprep.subr.mxu0 0.0
  %946 = vmatpush1.msra.mxu0 %v926
  %947 = vmatprep.subr.mxu0 0.0
  %948 = vmatpush1.msra.mxu0 %v925
  %949 = vmatprep.subr.mxu0 0.0
  %950 = vmatpush1.msra.mxu0 %v924
  %951 = vmatprep.subr.mxu0 0.0
  %952 = vmatpush1.msra.mxu0 %v923
  %953 = vmatprep.subr.mxu0 0.0
  %954 = vmatpush1.msra.mxu0 %v922
  %955 = vmatprep.subr.mxu0 0.0
  %956 = vmatpush1.msra.mxu0 %v921
  %957 = vmatprep.subr.mxu0 0.0
  %958 = vmatpush1.msra.mxu0 %v920
  %959 = vmatprep.subr.mxu0 0.0
  %960 = vmatpush1.msra.mxu0 %v919
  %961 = vmatprep.subr.mxu0 0.0
  %962 = vmatpush1.msra.mxu0 %v918
  %963 = vmatprep.subr.mxu0 0.0
  %964 = vmatpush1.msra.mxu0 %v917
  %965 = vmatprep.subr.mxu0 0.0
  %966 = vmatpush2.msra.mxu0 0.0
  %967 = vmatprep.subr.mxu0 0.0
  %968 = vmatpush2.msra.mxu0 0.0
  %969 = vmatprep.subr.mxu0 0.0
  %970 = vmatpush2.msra.mxu0 0.0
  %971 = vmatprep.subr.mxu0 0.0
  %972 = vmatpush2.msra.mxu0 0.0
  %973 = vmatprep.subr.mxu0 0.0
  %974 = vmatpush2.msra.mxu0 0.0
  %975 = vmatprep.subr.mxu0 0.0
  %976 = vmatpush2.msra.mxu0 0.0
  %977 = vmatprep.subr.mxu0 0.0
  %978 = vmatpush2.msra.mxu0 0.0
  %979 = vmatprep.subr.mxu0 0.0
  %980 = vmatpush2.msra.mxu0 0.0
  %981 = vmatprep.subr.mxu0 0.0
  %982 = vmatpush2.msra.mxu0 0.0
  %983 = vmatprep.subr.mxu0 0.0
  %984 = vmatpush2.msra.mxu0 0.0
  %985 = vmatprep.subr.mxu0 0.0
  %986 = vmatpush2.msra.mxu0 0.0
  %987 = vmatprep.subr.mxu0 0.0
  %988 = vmatpush2.msra.mxu0 0.0
  %989 = vmatprep.subr.mxu0 0.0
  %990 = vmatpush2.msra.mxu0 0.0
  %991 = vmatprep.subr.mxu0 0.0
  %992 = vmatpush2.msra.mxu0 0.0
  %993 = vmatprep.subr.mxu0 0.0
  %994 = vmatpush2.msra.mxu0 0.0
  %995 = vmatprep.subr.mxu0 0.0
  %996 = vmatpush2.msra.mxu0 0.0
  %997 = vmatprep.mubr.f32.mxu0 0.0
  %998 = vmatmul.mubr.f32.gmra.mxu0 %v143
  %v999 = vpop.f32.mrf.mxu0
  %v1000 = vadd.f32 0.0, %v999
  %v1001 = vpop.f32.mrf.mxu0
  %1002 = vmatprep.mubr.f32.mxu0 0.0
  %1003 = vmatmul.mubr.f32.gmra.mxu0 %v144
  %v1004 = vpop.f32.mrf.mxu0
  %v1005 = vadd.f32 0.0, %v1004
  %v1006 = vpop.f32.mrf.mxu0
  %1007 = vmatprep.mubr.f32.mxu0 0.0
  %1008 = vmatmul.mubr.f32.gmra.mxu0 %v145
  %v1009 = vpop.f32.mrf.mxu0
  %v1010 = vadd.f32 0.0, %v1009
  %v1011 = vpop.f32.mrf.mxu0
  %1012 = vmatprep.mubr.f32.mxu0 0.0
  %1013 = vmatmul.mubr.f32.gmra.mxu0 %v146
  %v1014 = vpop.f32.mrf.mxu0
  %v1015 = vadd.f32 0.0, %v1014
  %v1016 = vpop.f32.mrf.mxu0
  %1017 = vmatprep.mubr.f32.mxu0 0.0
  %1018 = vmatmul.mubr.f32.gmra.mxu0 %v147
  %v1019 = vpop.f32.mrf.mxu0
  %v1020 = vadd.f32 0.0, %v1019
  %v1021 = vpop.f32.mrf.mxu0
  %1022 = vmatprep.mubr.f32.mxu0 0.0
  %1023 = vmatmul.mubr.f32.gmra.mxu0 %v148
  %v1024 = vpop.f32.mrf.mxu0
  %v1025 = vadd.f32 0.0, %v1024
  %v1026 = vpop.f32.mrf.mxu0
  %1027 = vmatprep.mubr.f32.mxu0 0.0
  %1028 = vmatmul.mubr.f32.gmra.mxu0 %v149
  %v1029 = vpop.f32.mrf.mxu0
  %v1030 = vadd.f32 0.0, %v1029
  %v1031 = vpop.f32.mrf.mxu0
  %1032 = vmatprep.mubr.f32.mxu0 0.0
  %1033 = vmatmul.mubr.f32.gmra.mxu0 %v150
  %v1034 = vpop.f32.mrf.mxu0
  %v1035 = vadd.f32 0.0, %v1034
  %v1036 = vpop.f32.mrf.mxu0
  %1037 = vmatprep.mubr.f32.mxu0 0.0
  %1038 = vmatmul.mubr.f32.gmra.mxu0 %v151
  %v1039 = vpop.f32.mrf.mxu0
  %v1040 = vadd.f32 0.0, %v1039
  %v1041 = vpop.f32.mrf.mxu0
  %1042 = vmatprep.mubr.f32.mxu0 0.0
  %1043 = vmatmul.mubr.f32.gmra.mxu0 %v152
  %v1044 = vpop.f32.mrf.mxu0
  %v1045 = vadd.f32 0.0, %v1044
  %v1046 = vpop.f32.mrf.mxu0
  %1047 = vmatprep.mubr.f32.mxu0 0.0
  %1048 = vmatmul.mubr.f32.gmra.mxu0 %v153
  %v1049 = vpop.f32.mrf.mxu0
  %v1050 = vadd.f32 0.0, %v1049
  %v1051 = vpop.f32.mrf.mxu0
  %1052 = vmatprep.mubr.f32.mxu0 0.0
  %1053 = vmatmul.mubr.f32.gmra.mxu0 %v154
  %v1054 = vpop.f32.mrf.mxu0
  %v1055 = vadd.f32 0.0, %v1054
  %v1056 = vpop.f32.mrf.mxu0
  %1057 = vmatprep.mubr.f32.mxu0 0.0
  %1058 = vmatmul.mubr.f32.gmra.mxu0 %v155
  %v1059 = vpop.f32.mrf.mxu0
  %v1060 = vadd.f32 0.0, %v1059
  %v1061 = vpop.f32.mrf.mxu0
  %1062 = vmatprep.mubr.f32.mxu0 0.0
  %1063 = vmatmul.mubr.f32.gmra.mxu0 %v156
  %v1064 = vpop.f32.mrf.mxu0
  %v1065 = vadd.f32 0.0, %v1064
  %v1066 = vpop.f32.mrf.mxu0
  %1067 = vmatprep.mubr.f32.mxu0 0.0
  %1068 = vmatmul.mubr.f32.gmra.mxu0 %v157
  %v1069 = vpop.f32.mrf.mxu0
  %v1070 = vadd.f32 0.0, %v1069
  %v1071 = vpop.f32.mrf.mxu0
  %1072 = vmatprep.mubr.f32.mxu0 0.0
  %1073 = vmatmul.mubr.f32.gmra.mxu0 %v158
  %v1074 = vpop.f32.mrf.mxu0
  %v1075 = vadd.f32 0.0, %v1074
  %v1076 = vpop.f32.mrf.mxu0
  %1077 = vdwg.mxu0
  %1078 = vmatprep.subr.mxu0 0.0
  %1079 = vmatpush1.msra.mxu0 %v916
  %1080 = vmatprep.subr.mxu0 0.0
  %1081 = vmatpush1.msra.mxu0 %v915
  %1082 = vmatprep.subr.mxu0 0.0
  %1083 = vmatpush1.msra.mxu0 %v914
  %1084 = vmatprep.subr.mxu0 0.0
  %1085 = vmatpush1.msra.mxu0 %v913
  %1086 = vmatprep.subr.mxu0 0.0
  %1087 = vmatpush1.msra.mxu0 %v912
  %1088 = vmatprep.subr.mxu0 0.0
  %1089 = vmatpush1.msra.mxu0 %v911
  %1090 = vmatprep.subr.mxu0 0.0
  %1091 = vmatpush1.msra.mxu0 %v910
  %1092 = vmatprep.subr.mxu0 0.0
  %1093 = vmatpush1.msra.mxu0 %v909
  %1094 = vmatprep.subr.mxu0 0.0
  %1095 = vmatpush1.msra.mxu0 %v908
  %1096 = vmatprep.subr.mxu0 0.0
  %1097 = vmatpush1.msra.mxu0 %v907
  %1098 = vmatprep.subr.mxu0 0.0
  %1099 = vmatpush1.msra.mxu0 %v906
  %1100 = vmatprep.subr.mxu0 0.0
  %1101 = vmatpush1.msra.mxu0 %v905
  %1102 = vmatprep.subr.mxu0 0.0
  %1103 = vmatpush1.msra.mxu0 %v904
  %1104 = vmatprep.subr.mxu0 0.0
  %1105 = vmatpush1.msra.mxu0 %v903
  %1106 = vmatprep.subr.mxu0 0.0
  %1107 = vmatpush1.msra.mxu0 %v902
  %1108 = vmatprep.subr.mxu0 0.0
  %1109 = vmatpush1.msra.mxu0 %v901
  %1110 = vmatprep.subr.mxu0 0.0
  %1111 = vmatpush2.msra.mxu0 0.0
  %1112 = vmatprep.subr.mxu0 0.0
  %1113 = vmatpush2.msra.mxu0 0.0
  %1114 = vmatprep.subr.mxu0 0.0
  %1115 = vmatpush2.msra.mxu0 0.0
  %1116 = vmatprep.subr.mxu0 0.0
  %1117 = vmatpush2.msra.mxu0 0.0
  %1118 = vmatprep.subr.mxu0 0.0
  %1119 = vmatpush2.msra.mxu0 0.0
  %1120 = vmatprep.subr.mxu0 0.0
  %1121 = vmatpush2.msra.mxu0 0.0
  %1122 = vmatprep.subr.mxu0 0.0
  %1123 = vmatpush2.msra.mxu0 0.0
  %1124 = vmatprep.subr.mxu0 0.0
  %1125 = vmatpush2.msra.mxu0 0.0
  %1126 = vmatprep.subr.mxu0 0.0
  %1127 = vmatpush2.msra.mxu0 0.0
  %1128 = vmatprep.subr.mxu0 0.0
  %1129 = vmatpush2.msra.mxu0 0.0
  %1130 = vmatprep.subr.mxu0 0.0
  %1131 = vmatpush2.msra.mxu0 0.0
  %1132 = vmatprep.subr.mxu0 0.0
  %1133 = vmatpush2.msra.mxu0 0.0
  %1134 = vmatprep.subr.mxu0 0.0
  %1135 = vmatpush2.msra.mxu0 0.0
  %1136 = vmatprep.subr.mxu0 0.0
  %1137 = vmatpush2.msra.mxu0 0.0
  %1138 = vmatprep.subr.mxu0 0.0
  %1139 = vmatpush2.msra.mxu0 0.0
  %1140 = vmatprep.subr.mxu0 0.0
  %1141 = vmatpush2.msra.mxu0 0.0
  %1142 = vmatprep.mubr.f32.mxu0 0.0
  %1143 = vmatmul.mubr.f32.gmra.mxu0 %v127
  %v1144 = vpop.f32.mrf.mxu0
  %v1145 = vadd.f32 %v1000, %v1144
  %v1146 = vpop.f32.mrf.mxu0
  %1147 = vmatprep.mubr.f32.mxu0 0.0
  %1148 = vmatmul.mubr.f32.gmra.mxu0 %v128
  %v1149 = vpop.f32.mrf.mxu0
  %v1150 = vadd.f32 %v1005, %v1149
  %v1151 = vpop.f32.mrf.mxu0
  %1152 = vmatprep.mubr.f32.mxu0 0.0
  %1153 = vmatmul.mubr.f32.gmra.mxu0 %v129
  %v1154 = vpop.f32.mrf.mxu0
  %v1155 = vadd.f32 %v1010, %v1154
  %v1156 = vpop.f32.mrf.mxu0
  %1157 = vmatprep.mubr.f32.mxu0 0.0
  %1158 = vmatmul.mubr.f32.gmra.mxu0 %v130
  %v1159 = vpop.f32.mrf.mxu0
  %v1160 = vadd.f32 %v1015, %v1159
  %v1161 = vpop.f32.mrf.mxu0
  %1162 = vmatprep.mubr.f32.mxu0 0.0
  %1163 = vmatmul.mubr.f32.gmra.mxu0 %v131
  %v1164 = vpop.f32.mrf.mxu0
  %v1165 = vadd.f32 %v1020, %v1164
  %v1166 = vpop.f32.mrf.mxu0
  %1167 = vmatprep.mubr.f32.mxu0 0.0
  %1168 = vmatmul.mubr.f32.gmra.mxu0 %v132
  %v1169 = vpop.f32.mrf.mxu0
  %v1170 = vadd.f32 %v1025, %v1169
  %v1171 = vpop.f32.mrf.mxu0
  %1172 = vmatprep.mubr.f32.mxu0 0.0
  %1173 = vmatmul.mubr.f32.gmra.mxu0 %v133
  %v1174 = vpop.f32.mrf.mxu0
  %v1175 = vadd.f32 %v1030, %v1174
  %v1176 = vpop.f32.mrf.mxu0
  %1177 = vmatprep.mubr.f32.mxu0 0.0
  %1178 = vmatmul.mubr.f32.gmra.mxu0 %v134
  %v1179 = vpop.f32.mrf.mxu0
  %v1180 = vadd.f32 %v1035, %v1179
  %v1181 = vpop.f32.mrf.mxu0
  %1182 = vmatprep.mubr.f32.mxu0 0.0
  %1183 = vmatmul.mubr.f32.gmra.mxu0 %v135
  %v1184 = vpop.f32.mrf.mxu0
  %v1185 = vadd.f32 %v1040, %v1184
  %v1186 = vpop.f32.mrf.mxu0
  %1187 = vmatprep.mubr.f32.mxu0 0.0
  %1188 = vmatmul.mubr.f32.gmra.mxu0 %v136
  %v1189 = vpop.f32.mrf.mxu0
  %v1190 = vadd.f32 %v1045, %v1189
  %v1191 = vpop.f32.mrf.mxu0
  %1192 = vmatprep.mubr.f32.mxu0 0.0
  %1193 = vmatmul.mubr.f32.gmra.mxu0 %v137
  %v1194 = vpop.f32.mrf.mxu0
  %v1195 = vadd.f32 %v1050, %v1194
  %v1196 = vpop.f32.mrf.mxu0
  %1197 = vmatprep.mubr.f32.mxu0 0.0
  %1198 = vmatmul.mubr.f32.gmra.mxu0 %v138
  %v1199 = vpop.f32.mrf.mxu0
  %v1200 = vadd.f32 %v1055, %v1199
  %v1201 = vpop.f32.mrf.mxu0
  %1202 = vmatprep.mubr.f32.mxu0 0.0
  %1203 = vmatmul.mubr.f32.gmra.mxu0 %v139
  %v1204 = vpop.f32.mrf.mxu0
  %v1205 = vadd.f32 %v1060, %v1204
  %v1206 = vpop.f32.mrf.mxu0
  %1207 = vmatprep.mubr.f32.mxu0 0.0
  %1208 = vmatmul.mubr.f32.gmra.mxu0 %v140
  %v1209 = vpop.f32.mrf.mxu0
  %v1210 = vadd.f32 %v1065, %v1209
  %v1211 = vpop.f32.mrf.mxu0
  %1212 = vmatprep.mubr.f32.mxu0 0.0
  %1213 = vmatmul.mubr.f32.gmra.mxu0 %v141
  %v1214 = vpop.f32.mrf.mxu0
  %v1215 = vadd.f32 %v1070, %v1214
  %v1216 = vpop.f32.mrf.mxu0
  %1217 = vmatprep.mubr.f32.mxu0 0.0
  %1218 = vmatmul.mubr.f32.gmra.mxu0 %v142
  %v1219 = vpop.f32.mrf.mxu0
  %v1220 = vadd.f32 %v1075, %v1219
  %v1221 = vpop.f32.mrf.mxu0
  %1222 = vdwg.mxu0
  %v1223 = vld [vmem:[%s7] sm:$0x1]
  %v1225 = vlaneseq
  %v1226 = vshrl.u32 %v1225, 7
  %v1227 = vsub.s32 0, %v1226
  %v1228 = vrot.slane %v1223, %v1227
  %v1230 = vadd.f32 %v1145, %v1228
  %v1231 = vadd.f32 %v1150, %v1228
  %v1232 = vadd.f32 %v1155, %v1228
  %v1233 = vadd.f32 %v1160, %v1228
  %v1234 = vadd.f32 %v1165, %v1228
  %v1235 = vadd.f32 %v1170, %v1228
  %v1236 = vadd.f32 %v1175, %v1228
  %v1237 = vadd.f32 %v1180, %v1228
  %v1238 = vadd.f32 %v1185, %v1228
  %v1239 = vadd.f32 %v1190, %v1228
  %v1240 = vadd.f32 %v1195, %v1228
  %v1241 = vadd.f32 %v1200, %v1228
  %v1242 = vadd.f32 %v1205, %v1228
  %v1243 = vadd.f32 %v1210, %v1228
  %v1244 = vadd.f32 %v1215, %v1228
  %v1245 = vadd.f32 %v1220, %v1228
  %v1246 = vxor.u32 %v1230, 2147483648
  %v1247 = vxor.u32 %v1231, 2147483648
  %v1248 = vxor.u32 %v1232, 2147483648
  %v1249 = vxor.u32 %v1233, 2147483648
  %v1250 = vxor.u32 %v1234, 2147483648
  %v1251 = vxor.u32 %v1235, 2147483648
  %v1252 = vxor.u32 %v1236, 2147483648
  %v1253 = vxor.u32 %v1237, 2147483648
  %v1254 = vxor.u32 %v1238, 2147483648
  %v1255 = vxor.u32 %v1239, 2147483648
  %v1256 = vxor.u32 %v1240, 2147483648
  %v1257 = vxor.u32 %v1241, 2147483648
  %v1258 = vxor.u32 %v1242, 2147483648
  %v1259 = vxor.u32 %v1243, 2147483648
  %v1260 = vxor.u32 %v1244, 2147483648
  %v1261 = vxor.u32 %v1245, 2147483648
  %v1262 = vmul.f32 %v1246, 1.442695
  %v1263 = vpow.pop %v1262
  %v1264 = vmul.f32 %v1247, 1.442695
  %v1265 = vpow.pop %v1264
  %v1266 = vmul.f32 %v1248, 1.442695
  %v1267 = vpow.pop %v1266
  %v1268 = vmul.f32 %v1249, 1.442695
  %v1269 = vpow.pop %v1268
  %v1270 = vmul.f32 %v1250, 1.442695
  %v1271 = vpow.pop %v1270
  %v1272 = vmul.f32 %v1251, 1.442695
  %v1273 = vpow.pop %v1272
  %v1274 = vmul.f32 %v1252, 1.442695
  %v1275 = vpow.pop %v1274
  %v1276 = vmul.f32 %v1253, 1.442695
  %v1277 = vpow.pop %v1276
  %v1278 = vmul.f32 %v1254, 1.442695
  %v1279 = vpow.pop %v1278
  %v1280 = vmul.f32 %v1255, 1.442695
  %v1281 = vpow.pop %v1280
  %v1282 = vmul.f32 %v1256, 1.442695
  %v1283 = vpow.pop %v1282
  %v1284 = vmul.f32 %v1257, 1.442695
  %v1285 = vpow.pop %v1284
  %v1286 = vmul.f32 %v1258, 1.442695
  %v1287 = vpow.pop %v1286
  %v1288 = vmul.f32 %v1259, 1.442695
  %v1289 = vpow.pop %v1288
  %v1290 = vmul.f32 %v1260, 1.442695
  %v1291 = vpow.pop %v1290
  %v1292 = vmul.f32 %v1261, 1.442695
  %v1293 = vpow.pop %v1292
  %v1294 = vadd.f32 %v1263, 1.0
  %v1295 = vadd.f32 %v1265, 1.0
  %v1296 = vadd.f32 %v1267, 1.0
  %v1297 = vadd.f32 %v1269, 1.0
  %v1298 = vadd.f32 %v1271, 1.0
  %v1299 = vadd.f32 %v1273, 1.0
  %v1300 = vadd.f32 %v1275, 1.0
  %v1301 = vadd.f32 %v1277, 1.0
  %v1302 = vadd.f32 %v1279, 1.0
  %v1303 = vadd.f32 %v1281, 1.0
  %v1304 = vadd.f32 %v1283, 1.0
  %v1305 = vadd.f32 %v1285, 1.0
  %v1306 = vadd.f32 %v1287, 1.0
  %v1307 = vadd.f32 %v1289, 1.0
  %v1308 = vadd.f32 %v1291, 1.0
  %v1309 = vadd.f32 %v1293, 1.0
  %v1310 = vrcp.pop %v1294
  %v1311 = vmul.f32 1.0, %v1310
  %v1312 = vrcp.pop %v1295
  %v1313 = vmul.f32 1.0, %v1312
  %v1314 = vrcp.pop %v1296
  %v1315 = vmul.f32 1.0, %v1314
  %v1316 = vrcp.pop %v1297
  %v1317 = vmul.f32 1.0, %v1316
  %v1318 = vrcp.pop %v1298
  %v1319 = vmul.f32 1.0, %v1318
  %v1320 = vrcp.pop %v1299
  %v1321 = vmul.f32 1.0, %v1320
  %v1322 = vrcp.pop %v1300
  %v1323 = vmul.f32 1.0, %v1322
  %v1324 = vrcp.pop %v1301
  %v1325 = vmul.f32 1.0, %v1324
  %v1326 = vrcp.pop %v1302
  %v1327 = vmul.f32 1.0, %v1326
  %v1328 = vrcp.pop %v1303
  %v1329 = vmul.f32 1.0, %v1328
  %v1330 = vrcp.pop %v1304
  %v1331 = vmul.f32 1.0, %v1330
  %v1332 = vrcp.pop %v1305
  %v1333 = vmul.f32 1.0, %v1332
  %v1334 = vrcp.pop %v1306
  %v1335 = vmul.f32 1.0, %v1334
  %v1336 = vrcp.pop %v1307
  %v1337 = vmul.f32 1.0, %v1336
  %v1338 = vrcp.pop %v1308
  %v1339 = vmul.f32 1.0, %v1338
  %v1340 = vrcp.pop %v1309
  %v1341 = vmul.f32 1.0, %v1340
  %v1342 = vsub.f32 1.0, %v1311
  %v1343 = vsub.f32 1.0, %v1313
  %v1344 = vsub.f32 1.0, %v1315
  %v1345 = vsub.f32 1.0, %v1317
  %v1346 = vsub.f32 1.0, %v1319
  %v1347 = vsub.f32 1.0, %v1321
  %v1348 = vsub.f32 1.0, %v1323
  %v1349 = vsub.f32 1.0, %v1325
  %v1350 = vsub.f32 1.0, %v1327
  %v1351 = vsub.f32 1.0, %v1329
  %v1352 = vsub.f32 1.0, %v1331
  %v1353 = vsub.f32 1.0, %v1333
  %v1354 = vsub.f32 1.0, %v1335
  %v1355 = vsub.f32 1.0, %v1337
  %v1356 = vsub.f32 1.0, %v1339
  %v1357 = vsub.f32 1.0, %v1341
  %v1358 = vmul.f32 %v1342, %v143
  %v1359 = vmul.f32 %v1343, %v144
  %v1360 = vmul.f32 %v1344, %v145
  %v1361 = vmul.f32 %v1345, %v146
  %v1362 = vmul.f32 %v1346, %v147
  %v1363 = vmul.f32 %v1347, %v148
  %v1364 = vmul.f32 %v1348, %v149
  %v1365 = vmul.f32 %v1349, %v150
  %v1366 = vmul.f32 %v1350, %v151
  %v1367 = vmul.f32 %v1351, %v152
  %v1368 = vmul.f32 %v1352, %v153
  %v1369 = vmul.f32 %v1353, %v154
  %v1370 = vmul.f32 %v1354, %v155
  %v1371 = vmul.f32 %v1355, %v156
  %v1372 = vmul.f32 %v1356, %v157
  %v1373 = vmul.f32 %v1357, %v158
  %v1374 = vmul.f32 %v1311, %v885
  %v1375 = vmul.f32 %v1313, %v886
  %v1376 = vmul.f32 %v1315, %v887
  %v1377 = vmul.f32 %v1317, %v888
  %v1378 = vmul.f32 %v1319, %v889
  %v1379 = vmul.f32 %v1321, %v890
  %v1380 = vmul.f32 %v1323, %v891
  %v1381 = vmul.f32 %v1325, %v892
  %v1382 = vmul.f32 %v1327, %v893
  %v1383 = vmul.f32 %v1329, %v894
  %v1384 = vmul.f32 %v1331, %v895
  %v1385 = vmul.f32 %v1333, %v896
  %v1386 = vmul.f32 %v1335, %v897
  %v1387 = vmul.f32 %v1337, %v898
  %v1388 = vmul.f32 %v1339, %v899
  %v1389 = vmul.f32 %v1341, %v900
  %v1390 = vadd.f32 %v1358, %v1374
  %v1391 = vadd.f32 %v1359, %v1375
  %v1392 = vadd.f32 %v1360, %v1376
  %v1393 = vadd.f32 %v1361, %v1377
  %v1394 = vadd.f32 %v1362, %v1378
  %v1395 = vadd.f32 %v1363, %v1379
  %v1396 = vadd.f32 %v1364, %v1380
  %v1397 = vadd.f32 %v1365, %v1381
  %v1398 = vadd.f32 %v1366, %v1382
  %v1399 = vadd.f32 %v1367, %v1383
  %v1400 = vadd.f32 %v1368, %v1384
  %v1401 = vadd.f32 %v1369, %v1385
  %v1402 = vadd.f32 %v1370, %v1386
  %v1403 = vadd.f32 %v1371, %v1387
  %v1404 = vadd.f32 %v1372, %v1388
  %v1405 = vadd.f32 %v1373, %v1389
  %1406 = vst [vmem:[%s118] sm:$0xff] %v1390
  %1407 = vst [vmem:[%s118 + $0x8] sm:$0xff] %v1391
  %1408 = vst [vmem:[%s118 + $0x10] sm:$0xff] %v1392
  %1409 = vst [vmem:[%s118 + $0x18] sm:$0xff] %v1393
  %1410 = vst [vmem:[%s118 + $0x20] sm:$0xff] %v1394
  %1411 = vst [vmem:[%s118 + $0x28] sm:$0xff] %v1395
  %1412 = vst [vmem:[%s118 + $0x30] sm:$0xff] %v1396
  %1413 = vst [vmem:[%s118 + $0x38] sm:$0xff] %v1397
  %1414 = vst [vmem:[%s118 + $0x40] sm:$0xff] %v1398
  %1415 = vst [vmem:[%s118 + $0x48] sm:$0xff] %v1399
  %1416 = vst [vmem:[%s118 + $0x50] sm:$0xff] %v1400
  %1417 = vst [vmem:[%s118 + $0x58] sm:$0xff] %v1401
  %1418 = vst [vmem:[%s118 + $0x60] sm:$0xff] %v1402
  %1419 = vst [vmem:[%s118 + $0x68] sm:$0xff] %v1403
  %1420 = vst [vmem:[%s118 + $0x70] sm:$0xff] %v1404
  %1421 = vst [vmem:[%s118 + $0x78] sm:$0xff] %v1405
  %v1422 = vld [vmem:[%s6] sm:$0xff]
  %v1423 = vld [vmem:[%s6 + $0x8] sm:$0xff]
  %v1424 = vld [vmem:[%s6 + $0x10] sm:$0xff]
  %v1425 = vld [vmem:[%s6 + $0x18] sm:$0xff]
  %v1426 = vld [vmem:[%s6 + $0x20] sm:$0xff]
  %v1427 = vld [vmem:[%s6 + $0x28] sm:$0xff]
  %v1428 = vld [vmem:[%s6 + $0x30] sm:$0xff]
  %v1429 = vld [vmem:[%s6 + $0x38] sm:$0xff]
  %v1430 = vld [vmem:[%s6 + $0x40] sm:$0xff]
  %v1431 = vld [vmem:[%s6 + $0x48] sm:$0xff]
  %v1432 = vld [vmem:[%s6 + $0x50] sm:$0xff]
  %v1433 = vld [vmem:[%s6 + $0x58] sm:$0xff]
  %v1434 = vld [vmem:[%s6 + $0x60] sm:$0xff]
  %v1435 = vld [vmem:[%s6 + $0x68] sm:$0xff]
  %v1436 = vld [vmem:[%s6 + $0x70] sm:$0xff]
  %v1437 = vld [vmem:[%s6 + $0x78] sm:$0xff]
  %1438 = vmatprep.subr.mxu0 0.0
  %1439 = vmatpush1.msra.mxu0 %v1437
  %1440 = vmatprep.subr.mxu0 0.0
  %1441 = vmatpush1.msra.mxu0 %v1436
  %1442 = vmatprep.subr.mxu0 0.0
  %1443 = vmatpush1.msra.mxu0 %v1435
  %1444 = vmatprep.subr.mxu0 0.0
  %1445 = vmatpush1.msra.mxu0 %v1434
  %1446 = vmatprep.subr.mxu0 0.0
  %1447 = vmatpush1.msra.mxu0 %v1433
  %1448 = vmatprep.subr.mxu0 0.0
  %1449 = vmatpush1.msra.mxu0 %v1432
  %1450 = vmatprep.subr.mxu0 0.0
  %1451 = vmatpush1.msra.mxu0 %v1431
  %1452 = vmatprep.subr.mxu0 0.0
  %1453 = vmatpush1.msra.mxu0 %v1430
  %1454 = vmatprep.subr.mxu0 0.0
  %1455 = vmatpush1.msra.mxu0 %v1429
  %1456 = vmatprep.subr.mxu0 0.0
  %1457 = vmatpush1.msra.mxu0 %v1428
  %1458 = vmatprep.subr.mxu0 0.0
  %1459 = vmatpush1.msra.mxu0 %v1427
  %1460 = vmatprep.subr.mxu0 0.0
  %1461 = vmatpush1.msra.mxu0 %v1426
  %1462 = vmatprep.subr.mxu0 0.0
  %1463 = vmatpush1.msra.mxu0 %v1425
  %1464 = vmatprep.subr.mxu0 0.0
  %1465 = vmatpush1.msra.mxu0 %v1424
  %1466 = vmatprep.subr.mxu0 0.0
  %1467 = vmatpush1.msra.mxu0 %v1423
  %1468 = vmatprep.subr.mxu0 0.0
  %1469 = vmatpush1.msra.mxu0 %v1422
  %1470 = vmatprep.subr.mxu0 0.0
  %1471 = vmatpush2.msra.mxu0 0.0
  %1472 = vmatprep.subr.mxu0 0.0
  %1473 = vmatpush2.msra.mxu0 0.0
  %1474 = vmatprep.subr.mxu0 0.0
  %1475 = vmatpush2.msra.mxu0 0.0
  %1476 = vmatprep.subr.mxu0 0.0
  %1477 = vmatpush2.msra.mxu0 0.0
  %1478 = vmatprep.subr.mxu0 0.0
  %1479 = vmatpush2.msra.mxu0 0.0
  %1480 = vmatprep.subr.mxu0 0.0
  %1481 = vmatpush2.msra.mxu0 0.0
  %1482 = vmatprep.subr.mxu0 0.0
  %1483 = vmatpush2.msra.mxu0 0.0
  %1484 = vmatprep.subr.mxu0 0.0
  %1485 = vmatpush2.msra.mxu0 0.0
  %1486 = vmatprep.subr.mxu0 0.0
  %1487 = vmatpush2.msra.mxu0 0.0
  %1488 = vmatprep.subr.mxu0 0.0
  %1489 = vmatpush2.msra.mxu0 0.0
  %1490 = vmatprep.subr.mxu0 0.0
  %1491 = vmatpush2.msra.mxu0 0.0
  %1492 = vmatprep.subr.mxu0 0.0
  %1493 = vmatpush2.msra.mxu0 0.0
  %1494 = vmatprep.subr.mxu0 0.0
  %1495 = vmatpush2.msra.mxu0 0.0
  %1496 = vmatprep.subr.mxu0 0.0
  %1497 = vmatpush2.msra.mxu0 0.0
  %1498 = vmatprep.subr.mxu0 0.0
  %1499 = vmatpush2.msra.mxu0 0.0
  %1500 = vmatprep.subr.mxu0 0.0
  %1501 = vmatpush2.msra.mxu0 0.0
  %1502 = vmatprep.mubr.f32.mxu0 0.0
  %1503 = vmatmul.mubr.f32.gmra.mxu0 %v1390
  %v1504 = vpop.f32.mrf.mxu0
  %v1505 = vadd.f32 0.0, %v1504
  %v1506 = vpop.f32.mrf.mxu0
  %1507 = vmatprep.mubr.f32.mxu0 0.0
  %1508 = vmatmul.mubr.f32.gmra.mxu0 %v1391
  %v1509 = vpop.f32.mrf.mxu0
  %v1510 = vadd.f32 0.0, %v1509
  %v1511 = vpop.f32.mrf.mxu0
  %1512 = vmatprep.mubr.f32.mxu0 0.0
  %1513 = vmatmul.mubr.f32.gmra.mxu0 %v1392
  %v1514 = vpop.f32.mrf.mxu0
  %v1515 = vadd.f32 0.0, %v1514
  %v1516 = vpop.f32.mrf.mxu0
  %1517 = vmatprep.mubr.f32.mxu0 0.0
  %1518 = vmatmul.mubr.f32.gmra.mxu0 %v1393
  %v1519 = vpop.f32.mrf.mxu0
  %v1520 = vadd.f32 0.0, %v1519
  %v1521 = vpop.f32.mrf.mxu0
  %1522 = vmatprep.mubr.f32.mxu0 0.0
  %1523 = vmatmul.mubr.f32.gmra.mxu0 %v1394
  %v1524 = vpop.f32.mrf.mxu0
  %v1525 = vadd.f32 0.0, %v1524
  %v1526 = vpop.f32.mrf.mxu0
  %1527 = vmatprep.mubr.f32.mxu0 0.0
  %1528 = vmatmul.mubr.f32.gmra.mxu0 %v1395
  %v1529 = vpop.f32.mrf.mxu0
  %v1530 = vadd.f32 0.0, %v1529
  %v1531 = vpop.f32.mrf.mxu0
  %1532 = vmatprep.mubr.f32.mxu0 0.0
  %1533 = vmatmul.mubr.f32.gmra.mxu0 %v1396
  %v1534 = vpop.f32.mrf.mxu0
  %v1535 = vadd.f32 0.0, %v1534
  %v1536 = vpop.f32.mrf.mxu0
  %1537 = vmatprep.mubr.f32.mxu0 0.0
  %1538 = vmatmul.mubr.f32.gmra.mxu0 %v1397
  %v1539 = vpop.f32.mrf.mxu0
  %v1540 = vadd.f32 0.0, %v1539
  %v1541 = vpop.f32.mrf.mxu0
  %1542 = vmatprep.mubr.f32.mxu0 0.0
  %1543 = vmatmul.mubr.f32.gmra.mxu0 %v1398
  %v1544 = vpop.f32.mrf.mxu0
  %v1545 = vadd.f32 0.0, %v1544
  %v1546 = vpop.f32.mrf.mxu0
  %1547 = vmatprep.mubr.f32.mxu0 0.0
  %1548 = vmatmul.mubr.f32.gmra.mxu0 %v1399
  %v1549 = vpop.f32.mrf.mxu0
  %v1550 = vadd.f32 0.0, %v1549
  %v1551 = vpop.f32.mrf.mxu0
  %1552 = vmatprep.mubr.f32.mxu0 0.0
  %1553 = vmatmul.mubr.f32.gmra.mxu0 %v1400
  %v1554 = vpop.f32.mrf.mxu0
  %v1555 = vadd.f32 0.0, %v1554
  %v1556 = vpop.f32.mrf.mxu0
  %1557 = vmatprep.mubr.f32.mxu0 0.0
  %1558 = vmatmul.mubr.f32.gmra.mxu0 %v1401
  %v1559 = vpop.f32.mrf.mxu0
  %v1560 = vadd.f32 0.0, %v1559
  %v1561 = vpop.f32.mrf.mxu0
  %1562 = vmatprep.mubr.f32.mxu0 0.0
  %1563 = vmatmul.mubr.f32.gmra.mxu0 %v1402
  %v1564 = vpop.f32.mrf.mxu0
  %v1565 = vadd.f32 0.0, %v1564
  %v1566 = vpop.f32.mrf.mxu0
  %1567 = vmatprep.mubr.f32.mxu0 0.0
  %1568 = vmatmul.mubr.f32.gmra.mxu0 %v1403
  %v1569 = vpop.f32.mrf.mxu0
  %v1570 = vadd.f32 0.0, %v1569
  %v1571 = vpop.f32.mrf.mxu0
  %1572 = vmatprep.mubr.f32.mxu0 0.0
  %1573 = vmatmul.mubr.f32.gmra.mxu0 %v1404
  %v1574 = vpop.f32.mrf.mxu0
  %v1575 = vadd.f32 0.0, %v1574
  %v1576 = vpop.f32.mrf.mxu0
  %1577 = vmatprep.mubr.f32.mxu0 0.0
  %1578 = vmatmul.mubr.f32.gmra.mxu0 %v1405
  %v1579 = vpop.f32.mrf.mxu0
  %v1580 = vadd.f32 0.0, %v1579
  %v1581 = vpop.f32.mrf.mxu0
  %1582 = vdwg.mxu0
  %v1583 = vld [vmem:[%s12] sm:$0x1]
  %v1584 = vadd.f32 %v1505, %v1510
  %v1585 = vadd.f32 %v1584, %v1515
  %v1586 = vadd.f32 %v1585, %v1520
  %v1587 = vadd.f32 %v1586, %v1525
  %v1588 = vadd.f32 %v1587, %v1530
  %v1589 = vadd.f32 %v1588, %v1535
  %v1590 = vadd.f32 %v1589, %v1540
  %v1591 = vadd.f32 %v1590, %v1545
  %v1592 = vadd.f32 %v1591, %v1550
  %v1593 = vadd.f32 %v1592, %v1555
  %v1594 = vadd.f32 %v1593, %v1560
  %v1595 = vadd.f32 %v1594, %v1565
  %v1596 = vadd.f32 %v1595, %v1570
  %v1597 = vadd.f32 %v1596, %v1575
  %v1598 = vadd.f32 %v1597, %v1580
  %v1599 = vrot.slane %v1598, 4
  %v1600 = vadd.f32 %v1598, %v1599
  %v1601 = vrot.slane %v1600, 2
  %v1602 = vadd.f32 %v1600, %v1601
  %v1603 = vrot.slane %v1602, 1
  %v1604 = vadd.f32 %v1602, %v1603
  %v1605 = vadd.f32 %v1583, %v1604
  %1606 = vst [vmem:[%s12] sm:$0x1] %v1605
  %v1607 = vld [vmem:[%s13] sm:$0x1]
  %v1608 = vmul.f32 %v1505, %v1505
  %v1609 = vmul.f32 %v1510, %v1510
  %v1610 = vmul.f32 %v1515, %v1515
  %v1611 = vmul.f32 %v1520, %v1520
  %v1612 = vmul.f32 %v1525, %v1525
  %v1613 = vmul.f32 %v1530, %v1530
  %v1614 = vmul.f32 %v1535, %v1535
  %v1615 = vmul.f32 %v1540, %v1540
  %v1616 = vmul.f32 %v1545, %v1545
  %v1617 = vmul.f32 %v1550, %v1550
  %v1618 = vmul.f32 %v1555, %v1555
  %v1619 = vmul.f32 %v1560, %v1560
  %v1620 = vmul.f32 %v1565, %v1565
  %v1621 = vmul.f32 %v1570, %v1570
  %v1622 = vmul.f32 %v1575, %v1575
  %v1623 = vmul.f32 %v1580, %v1580
  %v1624 = vadd.f32 %v1608, %v1609
  %v1625 = vadd.f32 %v1624, %v1610
  %v1626 = vadd.f32 %v1625, %v1611
  %v1627 = vadd.f32 %v1626, %v1612
  %v1628 = vadd.f32 %v1627, %v1613
  %v1629 = vadd.f32 %v1628, %v1614
  %v1630 = vadd.f32 %v1629, %v1615
  %v1631 = vadd.f32 %v1630, %v1616
  %v1632 = vadd.f32 %v1631, %v1617
  %v1633 = vadd.f32 %v1632, %v1618
  %v1634 = vadd.f32 %v1633, %v1619
  %v1635 = vadd.f32 %v1634, %v1620
  %v1636 = vadd.f32 %v1635, %v1621
  %v1637 = vadd.f32 %v1636, %v1622
  %v1638 = vadd.f32 %v1637, %v1623
  %v1639 = vrot.slane %v1638, 4
  %v1640 = vadd.f32 %v1638, %v1639
  %v1641 = vrot.slane %v1640, 2
  %v1642 = vadd.f32 %v1640, %v1641
  %v1643 = vrot.slane %v1642, 1
  %v1644 = vadd.f32 %v1642, %v1643
  %v1645 = vadd.f32 %v1607, %v1644
  %1646 = vst [vmem:[%s13] sm:$0x1] %v1645
  %s1647 = sadd.s32 0, 0
  %s1648 = smul.u32 16, %s1647
  %p1649 = scmp.lt.s32.totalorder %s1648, 15
  %s1650 = scalar_select %p1649, %s1648, 15
  %s1651 = smul.addr %s1650, 8
  %s1652 = scalar_lea.vmem %s11, %s1651
  // Predicated region
  $region50: #{rcell_forward.4} parent=0 // pred_check
    _
  $region51: #{rcell_forward.4} parent=0 // pred_check_branch
    %1654 = sbr.rel (0) target = $region53
  $region52: #{rcell_forward.4} parent=0 // pred_region
    %s1655 = sadd.s32 0, 0
    %s1656 = smul.u32 16, %s1655
  $region53: #{rcell_forward.4} parent=0 // pred_fallthru
    _
  // Predicated region
  $region54: #{rcell_forward.4} parent=0 // pred_check
    _
  $region55: #{rcell_forward.4} parent=0 // pred_check_branch
    %1658 = sbr.rel (0) target = $region57
  $region56: #{rcell_forward.4} parent=0 // pred_region
    _
  $region57: #{rcell_forward.4} parent=0 // pred_fallthru
    _
  // Predicated region
  $region58: #{rcell_forward.4} parent=0 // pred_check
    _
  $region59: #{rcell_forward.4} parent=0 // pred_check_branch
    %1660 = sbr.rel (0) target = $region61
  $region60: #{rcell_forward.4} parent=0 // pred_region
    _
  $region61: #{rcell_forward.4} parent=0 // pred_fallthru
    _
  // Predicated region
  $region62: #{rcell_forward.4} parent=0 // pred_check
    _
  $region63: #{rcell_forward.4} parent=0 // pred_check_branch
    %1662 = sbr.rel (0) target = $region65
  $region64: #{rcell_forward.4} parent=0 // pred_region
    %s1663 = sadd.s32 0, 0
    %s1664 = smul.u32 16, %s1663
    %p1665 = scmp.lt.s32.totalorder %s1664, 15
    %s1666 = scalar_select %p1665, %s1664, 15
    %s1667 = smul.addr %s1666, 8
    %s1668 = scalar_lea.vmem %s11, %s1667
  $region65: #{rcell_forward.4} parent=0 // pred_fallthru
    _
  // Predicated region
  $region66: #{rcell_forward.4} parent=0 // pred_check
    _
  $region67: #{rcell_forward.4} parent=0 // pred_check_branch
    %1670 = sbr.rel (0) target = $region69
  $region68: #{rcell_forward.4} parent=0 // pred_region
    _
  $region69: #{rcell_forward.4} parent=0 // pred_fallthru
    _
  // Predicated region
  $region70: #{rcell_forward.4} parent=0 // pred_check
    _
  $region71: #{rcell_forward.4} parent=0 // pred_check_branch
    %1672 = sbr.rel (0) target = $region73
  $region72: #{rcell_forward.4} parent=0 // pred_region
    _
  $region73: #{rcell_forward.4} parent=0 // pred_fallthru
    _

// kernel: rcell_forward.5
$region0: #{rcell_forward.5}
  #allocation0 [shape = 'u32[]', space=smem, size = 0x4, offset = 0x4, fixed_abs, tag = 'smem constant byte address 0x4 - core index']
  #allocation1 [shape = 'u32[144,128]{1,0:T(1,128)}', space=vmem, size = 0x12000, scoped, tag = 'internal scratch']
  %s0 = inlined_call_operand.vmem [shape: f32[128,128], index: 0, kind: input, shape index: {}]
  %s1 = inlined_call_operand.vmem [shape: f32[128,128], index: 1, kind: input, shape index: {}]
  %s2 = inlined_call_operand.vmem [shape: f32[128,128], index: 2, kind: input, shape index: {}]
  %s3 = inlined_call_operand.vmem [shape: f32[128,128], index: 3, kind: input, shape index: {}]
  %s4 = inlined_call_operand.vmem [shape: f32[128,128], index: 4, kind: input, shape index: {}]
  %s5 = inlined_call_operand.vmem [shape: f32[128,128], index: 5, kind: input, shape index: {}]
  %s6 = inlined_call_operand.vmem [shape: f32[128,128], index: 6, kind: input, shape index: {}]
  %s7 = inlined_call_operand.vmem [shape: f32[1,128], index: 7, kind: input, shape index: {}]
  %s8 = inlined_call_operand.vmem [shape: f32[1,128], index: 8, kind: input, shape index: {}]
  %s9 = inlined_call_operand.vmem [shape: f32[1,128], index: 9, kind: input, shape index: {}]
  %s10 = inlined_call_operand.vmem [shape: f32[1,128], index: 10, kind: input, shape index: {}]
  %s11 = inlined_call_operand.vmem [shape: f32[128,128], index: 11, kind: output, shape index: {0}]
  %s12 = inlined_call_operand.hbm [shape: f32[1,1,128], index: 12, kind: output, shape index: {1}]
  %s13 = inlined_call_operand.hbm [shape: f32[1,1,128], index: 13, kind: output, shape index: {2}]
  %14 = xla_tuple %s11, %s12, %s13
  %s15 = sld [smem:[#allocation0]]
  $region74: #{rcell_forward.5} parent=0
    _
  %s17 = ssub.s32 1, %s15
  %s18 = scalar_select 0, %s17, %s15
  $region1: #{rcell_forward.5} parent=0
    #allocation2 [shape = 'u8[512]{0}', space=vmem, size = 0x400, scoped, tag = 'output window, operand 1, single buffered']
    #allocation3 [shape = 's32[1]{0}', space=sflag, size = 0x4, scoped, tag = 'scoped memory for rcell_forward.5']
    #allocation4 [shape = 'u8[512]{0}', space=vmem, size = 0x400, scoped, tag = 'output window, operand 2, single buffered']
    #allocation5 [shape = 's32[1]{0}', space=sflag, size = 0x4, scoped, tag = 'scoped memory for rcell_forward.5']
    %19 = vsyncpa [#allocation3], 0
    %20 = vsyncpa [#allocation5], 0
    // Predicated region
    $region2: #{rcell_forward.5} parent=1 // pred_check
      _
    $region3: #{rcell_forward.5} parent=1 // pred_check_branch
      %22 = sbr.rel (0) target = $region5
    $region4: #{rcell_forward.5} parent=1 // pred_region
      %s23 = sadd.s32 0, 0
      %s24 = smul.u32 16, %s23
      %p25 = scmp.lt.s32.totalorder %s24, 15
      %s26 = scalar_select %p25, %s24, 15
      %s27 = smul.addr %s26, 8
      %s28 = scalar_lea.vmem %s0, %s27
      %s29 = sadd.s32 0, 0
      %s30 = smul.u32 16, %s29
    $region5: #{rcell_forward.5} parent=1 // pred_fallthru
      _
    // Predicated region
    $region6: #{rcell_forward.5} parent=1 // pred_check
      _
    $region7: #{rcell_forward.5} parent=1 // pred_check_branch
      %32 = sbr.rel (0) target = $region9
    $region8: #{rcell_forward.5} parent=1 // pred_region
      %s33 = sadd.s32 0, 0
      %s34 = smul.u32 16, %s33
      %p35 = scmp.lt.s32.totalorder %s34, 15
      %s36 = scalar_select %p35, %s34, 15
      %s37 = smul.addr %s36, 8
      %s38 = scalar_lea.vmem %s1, %s37
      %s39 = sadd.s32 0, 0
      %s40 = smul.u32 16, %s39
    $region9: #{rcell_forward.5} parent=1 // pred_fallthru
      _
    // Predicated region
    $region10: #{rcell_forward.5} parent=1 // pred_check
      _
    $region11: #{rcell_forward.5} parent=1 // pred_check_branch
      %42 = sbr.rel (0) target = $region13
    $region12: #{rcell_forward.5} parent=1 // pred_region
      %s43 = sadd.s32 0, 0
      %s44 = smul.u32 16, %s43
      %p45 = scmp.lt.s32.totalorder %s44, 15
      %s46 = scalar_select %p45, %s44, 15
      %s47 = smul.addr %s46, 8
      %s48 = scalar_lea.vmem %s2, %s47
      %s49 = sadd.s32 0, 0
      %s50 = smul.u32 16, %s49
    $region13: #{rcell_forward.5} parent=1 // pred_fallthru
      _
    // Predicated region
    $region14: #{rcell_forward.5} parent=1 // pred_check
      _
    $region15: #{rcell_forward.5} parent=1 // pred_check_branch
      %52 = sbr.rel (0) target = $region17
    $region16: #{rcell_forward.5} parent=1 // pred_region
      _
    $region17: #{rcell_forward.5} parent=1 // pred_fallthru
      _
    // Predicated region
    $region18: #{rcell_forward.5} parent=1 // pred_check
      _
    $region19: #{rcell_forward.5} parent=1 // pred_check_branch
      %54 = sbr.rel (0) target = $region21
    $region20: #{rcell_forward.5} parent=1 // pred_region
      _
    $region21: #{rcell_forward.5} parent=1 // pred_fallthru
      _
    // Predicated region
    $region22: #{rcell_forward.5} parent=1 // pred_check
      _
    $region23: #{rcell_forward.5} parent=1 // pred_check_branch
      %56 = sbr.rel (0) target = $region25
    $region24: #{rcell_forward.5} parent=1 // pred_region
      _
    $region25: #{rcell_forward.5} parent=1 // pred_fallthru
      _
    // Predicated region
    $region26: #{rcell_forward.5} parent=1 // pred_check
      _
    $region27: #{rcell_forward.5} parent=1 // pred_check_branch
      %58 = sbr.rel (0) target = $region29
    $region28: #{rcell_forward.5} parent=1 // pred_region
      _
    $region29: #{rcell_forward.5} parent=1 // pred_fallthru
      _
    // Predicated region
    $region30: #{rcell_forward.5} parent=1 // pred_check
      _
    $region31: #{rcell_forward.5} parent=1 // pred_check_branch
      %60 = sbr.rel (0) target = $region33
    $region32: #{rcell_forward.5} parent=1 // pred_region
      _
    $region33: #{rcell_forward.5} parent=1 // pred_fallthru
      _
    // Predicated region
    $region34: #{rcell_forward.5} parent=1 // pred_check
      _
    $region35: #{rcell_forward.5} parent=1 // pred_check_branch
      %62 = sbr.rel (0) target = $region37
    $region36: #{rcell_forward.5} parent=1 // pred_region
      _
    $region37: #{rcell_forward.5} parent=1 // pred_fallthru
      _
    // Predicated region
    $region38: #{rcell_forward.5} parent=1 // pred_check
      _
    $region39: #{rcell_forward.5} parent=1 // pred_check_branch
      %64 = sbr.rel (0) target = $region41
    $region40: #{rcell_forward.5} parent=1 // pred_region
      _
    $region41: #{rcell_forward.5} parent=1 // pred_fallthru
      _
    // Predicated region
    $region42: #{rcell_forward.5} parent=1 // pred_check
      _
    $region43: #{rcell_forward.5} parent=1 // pred_check_branch
      %66 = sbr.rel (0) target = $region45
    $region44: #{rcell_forward.5} parent=1 // pred_region
      _
    $region45: #{rcell_forward.5} parent=1 // pred_fallthru
      _
    %s67 = sadd.s32 0, 0
    %s68 = smul.u32 16, %s67
    %p69 = scmp.lt.s32.totalorder %s68, 15
    %s70 = scalar_select %p69, %s68, 15
    %s71 = smul.addr %s70, 8
    %s72 = scalar_lea.vmem %s0, %s71
    %s73 = sadd.s32 0, 0
    %s74 = smul.u32 16, %s73
    %p75 = scmp.lt.s32.totalorder %s74, 15
    %s76 = scalar_select %p75, %s74, 15
    %s77 = smul.addr %s76, 8
    %s78 = scalar_lea.vmem %s1, %s77
    %s79 = sadd.s32 0, 0
    %s80 = smul.u32 16, %s79
    %p81 = scmp.lt.s32.totalorder %s80, 15
    %s82 = scalar_select %p81, %s80, 15
    %s83 = smul.addr %s82, 8
    %s84 = scalar_lea.vmem %s2, %s83
    %s85 = sadd.s32 0, 0
    %s86 = smul.u32 16, %s85
    %p87 = scmp.lt.s32.totalorder %s86, 15
    %s88 = scalar_select %p87, %s86, 15
    %s89 = smul.addr %s88, 8
    %s90 = scalar_lea.vmem %s11, %s89
    %s91 = sadd.s32 0, 0
    %s92 = smul.u32 16, %s91
    %p93 = scmp.lt.s32.totalorder %s92, 15
    %s94 = scalar_select %p93, %s92, 15
    %s95 = smul.addr %s94, 8
    %s96 = scalar_lea.vmem %s0, %s95
    %s97 = sadd.s32 0, 0
    %s98 = smul.u32 16, %s97
    %s99 = sadd.s32 0, 0
    %s100 = smul.u32 16, %s99
    %p101 = scmp.lt.s32.totalorder %s100, 15
    %s102 = scalar_select %p101, %s100, 15
    %s103 = smul.addr %s102, 8
    %s104 = scalar_lea.vmem %s1, %s103
    %s105 = sadd.s32 0, 0
    %s106 = smul.u32 16, %s105
    %s107 = sadd.s32 0, 0
    %s108 = smul.u32 16, %s107
    %p109 = scmp.lt.s32.totalorder %s108, 15
    %s110 = scalar_select %p109, %s108, 15
    %s111 = smul.addr %s110, 8
    %s112 = scalar_lea.vmem %s2, %s111
    %s113 = sadd.s32 0, 0
    %s114 = smul.u32 16, %s113
    %s115 = sadd.s32 0, 0
    %s116 = smul.u32 16, %s115
    %p117 = scmp.lt.s32.totalorder %s116, 15
    %s118 = scalar_select %p117, %s116, 15
    %s119 = smul.addr %s118, 8
    %s120 = scalar_lea.vmem %s11, %s119
    %s121 = sadd.s32 0, 0
    %s122 = smul.u32 16, %s121
    %p123 = scmp.eq.s32.totalorder 0, 0
    // Predicated region
    $region46: #{rcell_forward.5} parent=1 // pred_check
      %p124 = pneg %p123
    $region47: #{rcell_forward.5} parent=1 // pred_check_branch
      %126 = sbr.rel (%p124) target = $region49
    $region48: #{rcell_forward.5} parent=1 // pred_region
      %127 = vst [vmem:[#allocation2] sm:$0x1] 0.0
      %128 = vst [vmem:[#allocation4] sm:$0x1] 0.0
    $region49: #{rcell_forward.5} parent=1 // pred_fallthru
      _
    %v129 = vld [vmem:[%s96] sm:$0xff]
    %v130 = vld [vmem:[%s96 + $0x8] sm:$0xff]
    %v131 = vld [vmem:[%s96 + $0x10] sm:$0xff]
    %v132 = vld [vmem:[%s96 + $0x18] sm:$0xff]
    %v133 = vld [vmem:[%s96 + $0x20] sm:$0xff]
    %v134 = vld [vmem:[%s96 + $0x28] sm:$0xff]
    %v135 = vld [vmem:[%s96 + $0x30] sm:$0xff]
    %v136 = vld [vmem:[%s96 + $0x38] sm:$0xff]
    %v137 = vld [vmem:[%s96 + $0x40] sm:$0xff]
    %v138 = vld [vmem:[%s96 + $0x48] sm:$0xff]
    %v139 = vld [vmem:[%s96 + $0x50] sm:$0xff]
    %v140 = vld [vmem:[%s96 + $0x58] sm:$0xff]
    %v141 = vld [vmem:[%s96 + $0x60] sm:$0xff]
    %v142 = vld [vmem:[%s96 + $0x68] sm:$0xff]
    %v143 = vld [vmem:[%s96 + $0x70] sm:$0xff]
    %v144 = vld [vmem:[%s96 + $0x78] sm:$0xff]
    %v145 = vld [vmem:[%s104] sm:$0xff]
    %v146 = vld [vmem:[%s104 + $0x8] sm:$0xff]
    %v147 = vld [vmem:[%s104 + $0x10] sm:$0xff]
    %v148 = vld [vmem:[%s104 + $0x18] sm:$0xff]
    %v149 = vld [vmem:[%s104 + $0x20] sm:$0xff]
    %v150 = vld [vmem:[%s104 + $0x28] sm:$0xff]
    %v151 = vld [vmem:[%s104 + $0x30] sm:$0xff]
    %v152 = vld [vmem:[%s104 + $0x38] sm:$0xff]
    %v153 = vld [vmem:[%s104 + $0x40] sm:$0xff]
    %v154 = vld [vmem:[%s104 + $0x48] sm:$0xff]
    %v155 = vld [vmem:[%s104 + $0x50] sm:$0xff]
    %v156 = vld [vmem:[%s104 + $0x58] sm:$0xff]
    %v157 = vld [vmem:[%s104 + $0x60] sm:$0xff]
    %v158 = vld [vmem:[%s104 + $0x68] sm:$0xff]
    %v159 = vld [vmem:[%s104 + $0x70] sm:$0xff]
    %v160 = vld [vmem:[%s104 + $0x78] sm:$0xff]
    %v161 = vld [vmem:[%s112] sm:$0xff]
    %v162 = vld [vmem:[%s112 + $0x8] sm:$0xff]
    %v163 = vld [vmem:[%s112 + $0x10] sm:$0xff]
    %v164 = vld [vmem:[%s112 + $0x18] sm:$0xff]
    %v165 = vld [vmem:[%s112 + $0x20] sm:$0xff]
    %v166 = vld [vmem:[%s112 + $0x28] sm:$0xff]
    %v167 = vld [vmem:[%s112 + $0x30] sm:$0xff]
    %v168 = vld [vmem:[%s112 + $0x38] sm:$0xff]
    %v169 = vld [vmem:[%s112 + $0x40] sm:$0xff]
    %v170 = vld [vmem:[%s112 + $0x48] sm:$0xff]
    %v171 = vld [vmem:[%s112 + $0x50] sm:$0xff]
    %v172 = vld [vmem:[%s112 + $0x58] sm:$0xff]
    %v173 = vld [vmem:[%s112 + $0x60] sm:$0xff]
    %v174 = vld [vmem:[%s112 + $0x68] sm:$0xff]
    %v175 = vld [vmem:[%s112 + $0x70] sm:$0xff]
    %v176 = vld [vmem:[%s112 + $0x78] sm:$0xff]
    %v177 = vld [vmem:[%s3] sm:$0xff]
    %v178 = vld [vmem:[%s3 + $0x8] sm:$0xff]
    %v179 = vld [vmem:[%s3 + $0x10] sm:$0xff]
    %v180 = vld [vmem:[%s3 + $0x18] sm:$0xff]
    %v181 = vld [vmem:[%s3 + $0x20] sm:$0xff]
    %v182 = vld [vmem:[%s3 + $0x28] sm:$0xff]
    %v183 = vld [vmem:[%s3 + $0x30] sm:$0xff]
    %v184 = vld [vmem:[%s3 + $0x38] sm:$0xff]
    %v185 = vld [vmem:[%s3 + $0x40] sm:$0xff]
    %v186 = vld [vmem:[%s3 + $0x48] sm:$0xff]
    %v187 = vld [vmem:[%s3 + $0x50] sm:$0xff]
    %v188 = vld [vmem:[%s3 + $0x58] sm:$0xff]
    %v189 = vld [vmem:[%s3 + $0x60] sm:$0xff]
    %v190 = vld [vmem:[%s3 + $0x68] sm:$0xff]
    %v191 = vld [vmem:[%s3 + $0x70] sm:$0xff]
    %v192 = vld [vmem:[%s3 + $0x78] sm:$0xff]
    %v193 = vld [vmem:[%s4] sm:$0xff]
    %v194 = vld [vmem:[%s4 + $0x8] sm:$0xff]
    %v195 = vld [vmem:[%s4 + $0x10] sm:$0xff]
    %v196 = vld [vmem:[%s4 + $0x18] sm:$0xff]
    %v197 = vld [vmem:[%s4 + $0x20] sm:$0xff]
    %v198 = vld [vmem:[%s4 + $0x28] sm:$0xff]
    %v199 = vld [vmem:[%s4 + $0x30] sm:$0xff]
    %v200 = vld [vmem:[%s4 + $0x38] sm:$0xff]
    %v201 = vld [vmem:[%s4 + $0x40] sm:$0xff]
    %v202 = vld [vmem:[%s4 + $0x48] sm:$0xff]
    %v203 = vld [vmem:[%s4 + $0x50] sm:$0xff]
    %v204 = vld [vmem:[%s4 + $0x58] sm:$0xff]
    %v205 = vld [vmem:[%s4 + $0x60] sm:$0xff]
    %v206 = vld [vmem:[%s4 + $0x68] sm:$0xff]
    %v207 = vld [vmem:[%s4 + $0x70] sm:$0xff]
    %v208 = vld [vmem:[%s4 + $0x78] sm:$0xff]
    %209 = vmatprep.subr.mxu0 0.0
    %210 = vmatpush1.msra.mxu0 %v208
    %211 = vmatprep.subr.mxu0 0.0
    %212 = vmatpush1.msra.mxu0 %v207
    %213 = vmatprep.subr.mxu0 0.0
    %214 = vmatpush1.msra.mxu0 %v206
    %215 = vmatprep.subr.mxu0 0.0
    %216 = vmatpush1.msra.mxu0 %v205
    %217 = vmatprep.subr.mxu0 0.0
    %218 = vmatpush1.msra.mxu0 %v204
    %219 = vmatprep.subr.mxu0 0.0
    %220 = vmatpush1.msra.mxu0 %v203
    %221 = vmatprep.subr.mxu0 0.0
    %222 = vmatpush1.msra.mxu0 %v202
    %223 = vmatprep.subr.mxu0 0.0
    %224 = vmatpush1.msra.mxu0 %v201
    %225 = vmatprep.subr.mxu0 0.0
    %226 = vmatpush1.msra.mxu0 %v200
    %227 = vmatprep.subr.mxu0 0.0
    %228 = vmatpush1.msra.mxu0 %v199
    %229 = vmatprep.subr.mxu0 0.0
    %230 = vmatpush1.msra.mxu0 %v198
    %231 = vmatprep.subr.mxu0 0.0
    %232 = vmatpush1.msra.mxu0 %v197
    %233 = vmatprep.subr.mxu0 0.0
    %234 = vmatpush1.msra.mxu0 %v196
    %235 = vmatprep.subr.mxu0 0.0
    %236 = vmatpush1.msra.mxu0 %v195
    %237 = vmatprep.subr.mxu0 0.0
    %238 = vmatpush1.msra.mxu0 %v194
    %239 = vmatprep.subr.mxu0 0.0
    %240 = vmatpush1.msra.mxu0 %v193
    %241 = vmatprep.subr.mxu0 0.0
    %242 = vmatpush2.msra.mxu0 0.0
    %243 = vmatprep.subr.mxu0 0.0
    %244 = vmatpush2.msra.mxu0 0.0
    %245 = vmatprep.subr.mxu0 0.0
    %246 = vmatpush2.msra.mxu0 0.0
    %247 = vmatprep.subr.mxu0 0.0
    %248 = vmatpush2.msra.mxu0 0.0
    %249 = vmatprep.subr.mxu0 0.0
    %250 = vmatpush2.msra.mxu0 0.0
    %251 = vmatprep.subr.mxu0 0.0
    %252 = vmatpush2.msra.mxu0 0.0
    %253 = vmatprep.subr.mxu0 0.0
    %254 = vmatpush2.msra.mxu0 0.0
    %255 = vmatprep.subr.mxu0 0.0
    %256 = vmatpush2.msra.mxu0 0.0
    %257 = vmatprep.subr.mxu0 0.0
    %258 = vmatpush2.msra.mxu0 0.0
    %259 = vmatprep.subr.mxu0 0.0
    %260 = vmatpush2.msra.mxu0 0.0
    %261 = vmatprep.subr.mxu0 0.0
    %262 = vmatpush2.msra.mxu0 0.0
    %263 = vmatprep.subr.mxu0 0.0
    %264 = vmatpush2.msra.mxu0 0.0
    %265 = vmatprep.subr.mxu0 0.0
    %266 = vmatpush2.msra.mxu0 0.0
    %267 = vmatprep.subr.mxu0 0.0
    %268 = vmatpush2.msra.mxu0 0.0
    %269 = vmatprep.subr.mxu0 0.0
    %270 = vmatpush2.msra.mxu0 0.0
    %271 = vmatprep.subr.mxu0 0.0
    %272 = vmatpush2.msra.mxu0 0.0
    %273 = vmatprep.mubr.f32.mxu0 0.0
    %274 = vmatmul.mubr.f32.gmra.mxu0 %v145
    %v275 = vpop.f32.mrf.mxu0
    %v276 = vadd.f32 0.0, %v275
    %v277 = vpop.f32.mrf.mxu0
    %278 = vmatprep.mubr.f32.mxu0 0.0
    %279 = vmatmul.mubr.f32.gmra.mxu0 %v146
    %v280 = vpop.f32.mrf.mxu0
    %v281 = vadd.f32 0.0, %v280
    %v282 = vpop.f32.mrf.mxu0
    %283 = vmatprep.mubr.f32.mxu0 0.0
    %284 = vmatmul.mubr.f32.gmra.mxu0 %v147
    %v285 = vpop.f32.mrf.mxu0
    %v286 = vadd.f32 0.0, %v285
    %v287 = vpop.f32.mrf.mxu0
    %288 = vmatprep.mubr.f32.mxu0 0.0
    %289 = vmatmul.mubr.f32.gmra.mxu0 %v148
    %v290 = vpop.f32.mrf.mxu0
    %v291 = vadd.f32 0.0, %v290
    %v292 = vpop.f32.mrf.mxu0
    %293 = vmatprep.mubr.f32.mxu0 0.0
    %294 = vmatmul.mubr.f32.gmra.mxu0 %v149
    %v295 = vpop.f32.mrf.mxu0
    %v296 = vadd.f32 0.0, %v295
    %v297 = vpop.f32.mrf.mxu0
    %298 = vmatprep.mubr.f32.mxu0 0.0
    %299 = vmatmul.mubr.f32.gmra.mxu0 %v150
    %v300 = vpop.f32.mrf.mxu0
    %v301 = vadd.f32 0.0, %v300
    %v302 = vpop.f32.mrf.mxu0
    %303 = vmatprep.mubr.f32.mxu0 0.0
    %304 = vmatmul.mubr.f32.gmra.mxu0 %v151
    %v305 = vpop.f32.mrf.mxu0
    %v306 = vadd.f32 0.0, %v305
    %v307 = vpop.f32.mrf.mxu0
    %308 = vmatprep.mubr.f32.mxu0 0.0
    %309 = vmatmul.mubr.f32.gmra.mxu0 %v152
    %v310 = vpop.f32.mrf.mxu0
    %v311 = vadd.f32 0.0, %v310
    %v312 = vpop.f32.mrf.mxu0
    %313 = vmatprep.mubr.f32.mxu0 0.0
    %314 = vmatmul.mubr.f32.gmra.mxu0 %v153
    %v315 = vpop.f32.mrf.mxu0
    %v316 = vadd.f32 0.0, %v315
    %v317 = vpop.f32.mrf.mxu0
    %318 = vmatprep.mubr.f32.mxu0 0.0
    %319 = vmatmul.mubr.f32.gmra.mxu0 %v154
    %v320 = vpop.f32.mrf.mxu0
    %v321 = vadd.f32 0.0, %v320
    %v322 = vpop.f32.mrf.mxu0
    %323 = vmatprep.mubr.f32.mxu0 0.0
    %324 = vmatmul.mubr.f32.gmra.mxu0 %v155
    %v325 = vpop.f32.mrf.mxu0
    %v326 = vadd.f32 0.0, %v325
    %v327 = vpop.f32.mrf.mxu0
    %328 = vmatprep.mubr.f32.mxu0 0.0
    %329 = vmatmul.mubr.f32.gmra.mxu0 %v156
    %v330 = vpop.f32.mrf.mxu0
    %v331 = vadd.f32 0.0, %v330
    %v332 = vpop.f32.mrf.mxu0
    %333 = vmatprep.mubr.f32.mxu0 0.0
    %334 = vmatmul.mubr.f32.gmra.mxu0 %v157
    %v335 = vpop.f32.mrf.mxu0
    %v336 = vadd.f32 0.0, %v335
    %v337 = vpop.f32.mrf.mxu0
    %338 = vmatprep.mubr.f32.mxu0 0.0
    %339 = vmatmul.mubr.f32.gmra.mxu0 %v158
    %v340 = vpop.f32.mrf.mxu0
    %v341 = vadd.f32 0.0, %v340
    %v342 = vpop.f32.mrf.mxu0
    %343 = vmatprep.mubr.f32.mxu0 0.0
    %344 = vmatmul.mubr.f32.gmra.mxu0 %v159
    %v345 = vpop.f32.mrf.mxu0
    %v346 = vadd.f32 0.0, %v345
    %v347 = vpop.f32.mrf.mxu0
    %348 = vmatprep.mubr.f32.mxu0 0.0
    %349 = vmatmul.mubr.f32.gmra.mxu0 %v160
    %v350 = vpop.f32.mrf.mxu0
    %v351 = vadd.f32 0.0, %v350
    %v352 = vpop.f32.mrf.mxu0
    %353 = vdwg.mxu0
    %354 = vmatprep.subr.mxu0 0.0
    %355 = vmatpush1.msra.mxu0 %v192
    %356 = vmatprep.subr.mxu0 0.0
    %357 = vmatpush1.msra.mxu0 %v191
    %358 = vmatprep.subr.mxu0 0.0
    %359 = vmatpush1.msra.mxu0 %v190
    %360 = vmatprep.subr.mxu0 0.0
    %361 = vmatpush1.msra.mxu0 %v189
    %362 = vmatprep.subr.mxu0 0.0
    %363 = vmatpush1.msra.mxu0 %v188
    %364 = vmatprep.subr.mxu0 0.0
    %365 = vmatpush1.msra.mxu0 %v187
    %366 = vmatprep.subr.mxu0 0.0
    %367 = vmatpush1.msra.mxu0 %v186
    %368 = vmatprep.subr.mxu0 0.0
    %369 = vmatpush1.msra.mxu0 %v185
    %370 = vmatprep.subr.mxu0 0.0
    %371 = vmatpush1.msra.mxu0 %v184
    %372 = vmatprep.subr.mxu0 0.0
    %373 = vmatpush1.msra.mxu0 %v183
    %374 = vmatprep.subr.mxu0 0.0
    %375 = vmatpush1.msra.mxu0 %v182
    %376 = vmatprep.subr.mxu0 0.0
    %377 = vmatpush1.msra.mxu0 %v181
    %378 = vmatprep.subr.mxu0 0.0
    %379 = vmatpush1.msra.mxu0 %v180
    %380 = vmatprep.subr.mxu0 0.0
    %381 = vmatpush1.msra.mxu0 %v179
    %382 = vmatprep.subr.mxu0 0.0
    %383 = vmatpush1.msra.mxu0 %v178
    %384 = vmatprep.subr.mxu0 0.0
    %385 = vmatpush1.msra.mxu0 %v177
    %386 = vmatprep.subr.mxu0 0.0
    %387 = vmatpush2.msra.mxu0 0.0
    %388 = vmatprep.subr.mxu0 0.0
    %389 = vmatpush2.msra.mxu0 0.0
    %390 = vmatprep.subr.mxu0 0.0
    %391 = vmatpush2.msra.mxu0 0.0
    %392 = vmatprep.subr.mxu0 0.0
    %393 = vmatpush2.msra.mxu0 0.0
    %394 = vmatprep.subr.mxu0 0.0
    %395 = vmatpush2.msra.mxu0 0.0
    %396 = vmatprep.subr.mxu0 0.0
    %397 = vmatpush2.msra.mxu0 0.0
    %398 = vmatprep.subr.mxu0 0.0
    %399 = vmatpush2.msra.mxu0 0.0
    %400 = vmatprep.subr.mxu0 0.0
    %401 = vmatpush2.msra.mxu0 0.0
    %402 = vmatprep.subr.mxu0 0.0
    %403 = vmatpush2.msra.mxu0 0.0
    %404 = vmatprep.subr.mxu0 0.0
    %405 = vmatpush2.msra.mxu0 0.0
    %406 = vmatprep.subr.mxu0 0.0
    %407 = vmatpush2.msra.mxu0 0.0
    %408 = vmatprep.subr.mxu0 0.0
    %409 = vmatpush2.msra.mxu0 0.0
    %410 = vmatprep.subr.mxu0 0.0
    %411 = vmatpush2.msra.mxu0 0.0
    %412 = vmatprep.subr.mxu0 0.0
    %413 = vmatpush2.msra.mxu0 0.0
    %414 = vmatprep.subr.mxu0 0.0
    %415 = vmatpush2.msra.mxu0 0.0
    %416 = vmatprep.subr.mxu0 0.0
    %417 = vmatpush2.msra.mxu0 0.0
    %418 = vmatprep.mubr.f32.mxu0 0.0
    %419 = vmatmul.mubr.f32.gmra.mxu0 %v129
    %v420 = vpop.f32.mrf.mxu0
    %v421 = vadd.f32 %v276, %v420
    %v422 = vpop.f32.mrf.mxu0
    %423 = vmatprep.mubr.f32.mxu0 0.0
    %424 = vmatmul.mubr.f32.gmra.mxu0 %v130
    %v425 = vpop.f32.mrf.mxu0
    %v426 = vadd.f32 %v281, %v425
    %v427 = vpop.f32.mrf.mxu0
    %428 = vmatprep.mubr.f32.mxu0 0.0
    %429 = vmatmul.mubr.f32.gmra.mxu0 %v131
    %v430 = vpop.f32.mrf.mxu0
    %v431 = vadd.f32 %v286, %v430
    %v432 = vpop.f32.mrf.mxu0
    %433 = vmatprep.mubr.f32.mxu0 0.0
    %434 = vmatmul.mubr.f32.gmra.mxu0 %v132
    %v435 = vpop.f32.mrf.mxu0
    %v436 = vadd.f32 %v291, %v435
    %v437 = vpop.f32.mrf.mxu0
    %438 = vmatprep.mubr.f32.mxu0 0.0
    %439 = vmatmul.mubr.f32.gmra.mxu0 %v133
    %v440 = vpop.f32.mrf.mxu0
    %v441 = vadd.f32 %v296, %v440
    %v442 = vpop.f32.mrf.mxu0
    %443 = vmatprep.mubr.f32.mxu0 0.0
    %444 = vmatmul.mubr.f32.gmra.mxu0 %v134
    %v445 = vpop.f32.mrf.mxu0
    %v446 = vadd.f32 %v301, %v445
    %v447 = vpop.f32.mrf.mxu0
    %448 = vmatprep.mubr.f32.mxu0 0.0
    %449 = vmatmul.mubr.f32.gmra.mxu0 %v135
    %v450 = vpop.f32.mrf.mxu0
    %v451 = vadd.f32 %v306, %v450
    %v452 = vpop.f32.mrf.mxu0
    %453 = vmatprep.mubr.f32.mxu0 0.0
    %454 = vmatmul.mubr.f32.gmra.mxu0 %v136
    %v455 = vpop.f32.mrf.mxu0
    %v456 = vadd.f32 %v311, %v455
    %v457 = vpop.f32.mrf.mxu0
    %458 = vmatprep.mubr.f32.mxu0 0.0
    %459 = vmatmul.mubr.f32.gmra.mxu0 %v137
    %v460 = vpop.f32.mrf.mxu0
    %v461 = vadd.f32 %v316, %v460
    %v462 = vpop.f32.mrf.mxu0
    %463 = vmatprep.mubr.f32.mxu0 0.0
    %464 = vmatmul.mubr.f32.gmra.mxu0 %v138
    %v465 = vpop.f32.mrf.mxu0
    %v466 = vadd.f32 %v321, %v465
    %v467 = vpop.f32.mrf.mxu0
    %468 = vmatprep.mubr.f32.mxu0 0.0
    %469 = vmatmul.mubr.f32.gmra.mxu0 %v139
    %v470 = vpop.f32.mrf.mxu0
    %v471 = vadd.f32 %v326, %v470
    %v472 = vpop.f32.mrf.mxu0
    %473 = vmatprep.mubr.f32.mxu0 0.0
    %474 = vmatmul.mubr.f32.gmra.mxu0 %v140
    %v475 = vpop.f32.mrf.mxu0
    %v476 = vadd.f32 %v331, %v475
    %v477 = vpop.f32.mrf.mxu0
    %478 = vmatprep.mubr.f32.mxu0 0.0
    %479 = vmatmul.mubr.f32.gmra.mxu0 %v141
    %v480 = vpop.f32.mrf.mxu0
    %v481 = vadd.f32 %v336, %v480
    %v482 = vpop.f32.mrf.mxu0
    %483 = vmatprep.mubr.f32.mxu0 0.0
    %484 = vmatmul.mubr.f32.gmra.mxu0 %v142
    %v485 = vpop.f32.mrf.mxu0
    %v486 = vadd.f32 %v341, %v485
    %v487 = vpop.f32.mrf.mxu0
    %488 = vmatprep.mubr.f32.mxu0 0.0
    %489 = vmatmul.mubr.f32.gmra.mxu0 %v143
    %v490 = vpop.f32.mrf.mxu0
    %v491 = vadd.f32 %v346, %v490
    %v492 = vpop.f32.mrf.mxu0
    %493 = vmatprep.mubr.f32.mxu0 0.0
    %494 = vmatmul.mubr.f32.gmra.mxu0 %v144
    %v495 = vpop.f32.mrf.mxu0
    %v496 = vadd.f32 %v351, %v495
    %v497 = vpop.f32.mrf.mxu0
    %498 = vdwg.mxu0
    %v499 = vld [vmem:[%s7] sm:$0x1]
    %v501 = vlaneseq
    %v502 = vshrl.u32 %v501, 7
    %v503 = vsub.s32 0, %v502
    %v504 = vrot.slane %v499, %v503
    %v506 = vadd.f32 %v421, %v504
    %v507 = vadd.f32 %v426, %v504
    %v508 = vadd.f32 %v431, %v504
    %v509 = vadd.f32 %v436, %v504
    %v510 = vadd.f32 %v441, %v504
    %v511 = vadd.f32 %v446, %v504
    %v512 = vadd.f32 %v451, %v504
    %v513 = vadd.f32 %v456, %v504
    %v514 = vadd.f32 %v461, %v504
    %v515 = vadd.f32 %v466, %v504
    %v516 = vadd.f32 %v471, %v504
    %v517 = vadd.f32 %v476, %v504
    %v518 = vadd.f32 %v481, %v504
    %v519 = vadd.f32 %v486, %v504
    %v520 = vadd.f32 %v491, %v504
    %v521 = vadd.f32 %v496, %v504
    %v522 = vxor.u32 %v506, 2147483648
    %v523 = vxor.u32 %v507, 2147483648
    %v524 = vxor.u32 %v508, 2147483648
    %v525 = vxor.u32 %v509, 2147483648
    %v526 = vxor.u32 %v510, 2147483648
    %v527 = vxor.u32 %v511, 2147483648
    %v528 = vxor.u32 %v512, 2147483648
    %v529 = vxor.u32 %v513, 2147483648
    %v530 = vxor.u32 %v514, 2147483648
    %v531 = vxor.u32 %v515, 2147483648
    %v532 = vxor.u32 %v516, 2147483648
    %v533 = vxor.u32 %v517, 2147483648
    %v534 = vxor.u32 %v518, 2147483648
    %v535 = vxor.u32 %v519, 2147483648
    %v536 = vxor.u32 %v520, 2147483648
    %v537 = vxor.u32 %v521, 2147483648
    %v538 = vmul.f32 %v522, 1.442695
    %v539 = vpow.pop %v538
    %v540 = vmul.f32 %v523, 1.442695
    %v541 = vpow.pop %v540
    %v542 = vmul.f32 %v524, 1.442695
    %v543 = vpow.pop %v542
    %v544 = vmul.f32 %v525, 1.442695
    %v545 = vpow.pop %v544
    %v546 = vmul.f32 %v526, 1.442695
    %v547 = vpow.pop %v546
    %v548 = vmul.f32 %v527, 1.442695
    %v549 = vpow.pop %v548
    %v550 = vmul.f32 %v528, 1.442695
    %v551 = vpow.pop %v550
    %v552 = vmul.f32 %v529, 1.442695
    %v553 = vpow.pop %v552
    %v554 = vmul.f32 %v530, 1.442695
    %v555 = vpow.pop %v554
    %v556 = vmul.f32 %v531, 1.442695
    %v557 = vpow.pop %v556
    %v558 = vmul.f32 %v532, 1.442695
    %v559 = vpow.pop %v558
    %v560 = vmul.f32 %v533, 1.442695
    %v561 = vpow.pop %v560
    %v562 = vmul.f32 %v534, 1.442695
    %v563 = vpow.pop %v562
    %v564 = vmul.f32 %v535, 1.442695
    %v565 = vpow.pop %v564
    %v566 = vmul.f32 %v536, 1.442695
    %v567 = vpow.pop %v566
    %v568 = vmul.f32 %v537, 1.442695
    %v569 = vpow.pop %v568
    %v570 = vadd.f32 %v539, 1.0
    %v571 = vadd.f32 %v541, 1.0
    %v572 = vadd.f32 %v543, 1.0
    %v573 = vadd.f32 %v545, 1.0
    %v574 = vadd.f32 %v547, 1.0
    %v575 = vadd.f32 %v549, 1.0
    %v576 = vadd.f32 %v551, 1.0
    %v577 = vadd.f32 %v553, 1.0
    %v578 = vadd.f32 %v555, 1.0
    %v579 = vadd.f32 %v557, 1.0
    %v580 = vadd.f32 %v559, 1.0
    %v581 = vadd.f32 %v561, 1.0
    %v582 = vadd.f32 %v563, 1.0
    %v583 = vadd.f32 %v565, 1.0
    %v584 = vadd.f32 %v567, 1.0
    %v585 = vadd.f32 %v569, 1.0
    %v586 = vrcp.pop %v570
    %v587 = vmul.f32 1.0, %v586
    %v588 = vrcp.pop %v571
    %v589 = vmul.f32 1.0, %v588
    %v590 = vrcp.pop %v572
    %v591 = vmul.f32 1.0, %v590
    %v592 = vrcp.pop %v573
    %v593 = vmul.f32 1.0, %v592
    %v594 = vrcp.pop %v574
    %v595 = vmul.f32 1.0, %v594
    %v596 = vrcp.pop %v575
    %v597 = vmul.f32 1.0, %v596
    %v598 = vrcp.pop %v576
    %v599 = vmul.f32 1.0, %v598
    %v600 = vrcp.pop %v577
    %v601 = vmul.f32 1.0, %v600
    %v602 = vrcp.pop %v578
    %v603 = vmul.f32 1.0, %v602
    %v604 = vrcp.pop %v579
    %v605 = vmul.f32 1.0, %v604
    %v606 = vrcp.pop %v580
    %v607 = vmul.f32 1.0, %v606
    %v608 = vrcp.pop %v581
    %v609 = vmul.f32 1.0, %v608
    %v610 = vrcp.pop %v582
    %v611 = vmul.f32 1.0, %v610
    %v612 = vrcp.pop %v583
    %v613 = vmul.f32 1.0, %v612
    %v614 = vrcp.pop %v584
    %v615 = vmul.f32 1.0, %v614
    %v616 = vrcp.pop %v585
    %v617 = vmul.f32 1.0, %v616
    %v618 = vld [vmem:[%s5] sm:$0xff]
    %v619 = vld [vmem:[%s5 + $0x8] sm:$0xff]
    %v620 = vld [vmem:[%s5 + $0x10] sm:$0xff]
    %v621 = vld [vmem:[%s5 + $0x18] sm:$0xff]
    %v622 = vld [vmem:[%s5 + $0x20] sm:$0xff]
    %v623 = vld [vmem:[%s5 + $0x28] sm:$0xff]
    %v624 = vld [vmem:[%s5 + $0x30] sm:$0xff]
    %v625 = vld [vmem:[%s5 + $0x38] sm:$0xff]
    %v626 = vld [vmem:[%s5 + $0x40] sm:$0xff]
    %v627 = vld [vmem:[%s5 + $0x48] sm:$0xff]
    %v628 = vld [vmem:[%s5 + $0x50] sm:$0xff]
    %v629 = vld [vmem:[%s5 + $0x58] sm:$0xff]
    %v630 = vld [vmem:[%s5 + $0x60] sm:$0xff]
    %v631 = vld [vmem:[%s5 + $0x68] sm:$0xff]
    %v632 = vld [vmem:[%s5 + $0x70] sm:$0xff]
    %v633 = vld [vmem:[%s5 + $0x78] sm:$0xff]
    %v634 = vld [vmem:[%s8] sm:$0x1]
    %v636 = vlaneseq
    %v637 = vshrl.u32 %v636, 7
    %v638 = vsub.s32 0, %v637
    %v639 = vrot.slane %v634, %v638
    %641 = vmatprep.subr.mxu0 0.0
    %642 = vmatpush1.msra.mxu0 %v633
    %643 = vmatprep.subr.mxu0 0.0
    %644 = vmatpush1.msra.mxu0 %v632
    %645 = vmatprep.subr.mxu0 0.0
    %646 = vmatpush1.msra.mxu0 %v631
    %647 = vmatprep.subr.mxu0 0.0
    %648 = vmatpush1.msra.mxu0 %v630
    %649 = vmatprep.subr.mxu0 0.0
    %650 = vmatpush1.msra.mxu0 %v629
    %651 = vmatprep.subr.mxu0 0.0
    %652 = vmatpush1.msra.mxu0 %v628
    %653 = vmatprep.subr.mxu0 0.0
    %654 = vmatpush1.msra.mxu0 %v627
    %655 = vmatprep.subr.mxu0 0.0
    %656 = vmatpush1.msra.mxu0 %v626
    %657 = vmatprep.subr.mxu0 0.0
    %658 = vmatpush1.msra.mxu0 %v625
    %659 = vmatprep.subr.mxu0 0.0
    %660 = vmatpush1.msra.mxu0 %v624
    %661 = vmatprep.subr.mxu0 0.0
    %662 = vmatpush1.msra.mxu0 %v623
    %663 = vmatprep.subr.mxu0 0.0
    %664 = vmatpush1.msra.mxu0 %v622
    %665 = vmatprep.subr.mxu0 0.0
    %666 = vmatpush1.msra.mxu0 %v621
    %667 = vmatprep.subr.mxu0 0.0
    %668 = vmatpush1.msra.mxu0 %v620
    %669 = vmatprep.subr.mxu0 0.0
    %670 = vmatpush1.msra.mxu0 %v619
    %671 = vmatprep.subr.mxu0 0.0
    %672 = vmatpush1.msra.mxu0 %v618
    %673 = vmatprep.subr.mxu0 0.0
    %674 = vmatpush2.msra.mxu0 0.0
    %675 = vmatprep.subr.mxu0 0.0
    %676 = vmatpush2.msra.mxu0 0.0
    %677 = vmatprep.subr.mxu0 0.0
    %678 = vmatpush2.msra.mxu0 0.0
    %679 = vmatprep.subr.mxu0 0.0
    %680 = vmatpush2.msra.mxu0 0.0
    %681 = vmatprep.subr.mxu0 0.0
    %682 = vmatpush2.msra.mxu0 0.0
    %683 = vmatprep.subr.mxu0 0.0
    %684 = vmatpush2.msra.mxu0 0.0
    %685 = vmatprep.subr.mxu0 0.0
    %686 = vmatpush2.msra.mxu0 0.0
    %687 = vmatprep.subr.mxu0 0.0
    %688 = vmatpush2.msra.mxu0 0.0
    %689 = vmatprep.subr.mxu0 0.0
    %690 = vmatpush2.msra.mxu0 0.0
    %691 = vmatprep.subr.mxu0 0.0
    %692 = vmatpush2.msra.mxu0 0.0
    %693 = vmatprep.subr.mxu0 0.0
    %694 = vmatpush2.msra.mxu0 0.0
    %695 = vmatprep.subr.mxu0 0.0
    %696 = vmatpush2.msra.mxu0 0.0
    %697 = vmatprep.subr.mxu0 0.0
    %698 = vmatpush2.msra.mxu0 0.0
    %699 = vmatprep.subr.mxu0 0.0
    %700 = vmatpush2.msra.mxu0 0.0
    %701 = vmatprep.subr.mxu0 0.0
    %702 = vmatpush2.msra.mxu0 0.0
    %703 = vmatprep.subr.mxu0 0.0
    %704 = vmatpush2.msra.mxu0 0.0
    %705 = vmatprep.mubr.f32.mxu0 0.0
    %706 = vmatmul.mubr.f32.gmra.mxu0 %v161
    %v707 = vpop.f32.mrf.mxu0
    %v708 = vadd.f32 %v639, %v707
    %v709 = vpop.f32.mrf.mxu0
    %710 = vmatprep.mubr.f32.mxu0 0.0
    %711 = vmatmul.mubr.f32.gmra.mxu0 %v162
    %v712 = vpop.f32.mrf.mxu0
    %v713 = vadd.f32 %v639, %v712
    %v714 = vpop.f32.mrf.mxu0
    %715 = vmatprep.mubr.f32.mxu0 0.0
    %716 = vmatmul.mubr.f32.gmra.mxu0 %v163
    %v717 = vpop.f32.mrf.mxu0
    %v718 = vadd.f32 %v639, %v717
    %v719 = vpop.f32.mrf.mxu0
    %720 = vmatprep.mubr.f32.mxu0 0.0
    %721 = vmatmul.mubr.f32.gmra.mxu0 %v164
    %v722 = vpop.f32.mrf.mxu0
    %v723 = vadd.f32 %v639, %v722
    %v724 = vpop.f32.mrf.mxu0
    %725 = vmatprep.mubr.f32.mxu0 0.0
    %726 = vmatmul.mubr.f32.gmra.mxu0 %v165
    %v727 = vpop.f32.mrf.mxu0
    %v728 = vadd.f32 %v639, %v727
    %v729 = vpop.f32.mrf.mxu0
    %730 = vmatprep.mubr.f32.mxu0 0.0
    %731 = vmatmul.mubr.f32.gmra.mxu0 %v166
    %v732 = vpop.f32.mrf.mxu0
    %v733 = vadd.f32 %v639, %v732
    %v734 = vpop.f32.mrf.mxu0
    %735 = vmatprep.mubr.f32.mxu0 0.0
    %736 = vmatmul.mubr.f32.gmra.mxu0 %v167
    %v737 = vpop.f32.mrf.mxu0
    %v738 = vadd.f32 %v639, %v737
    %v739 = vpop.f32.mrf.mxu0
    %740 = vmatprep.mubr.f32.mxu0 0.0
    %741 = vmatmul.mubr.f32.gmra.mxu0 %v168
    %v742 = vpop.f32.mrf.mxu0
    %v743 = vadd.f32 %v639, %v742
    %v744 = vpop.f32.mrf.mxu0
    %745 = vmatprep.mubr.f32.mxu0 0.0
    %746 = vmatmul.mubr.f32.gmra.mxu0 %v169
    %v747 = vpop.f32.mrf.mxu0
    %v748 = vadd.f32 %v639, %v747
    %v749 = vpop.f32.mrf.mxu0
    %750 = vmatprep.mubr.f32.mxu0 0.0
    %751 = vmatmul.mubr.f32.gmra.mxu0 %v170
    %v752 = vpop.f32.mrf.mxu0
    %v753 = vadd.f32 %v639, %v752
    %v754 = vpop.f32.mrf.mxu0
    %755 = vmatprep.mubr.f32.mxu0 0.0
    %756 = vmatmul.mubr.f32.gmra.mxu0 %v171
    %v757 = vpop.f32.mrf.mxu0
    %v758 = vadd.f32 %v639, %v757
    %v759 = vpop.f32.mrf.mxu0
    %760 = vmatprep.mubr.f32.mxu0 0.0
    %761 = vmatmul.mubr.f32.gmra.mxu0 %v172
    %v762 = vpop.f32.mrf.mxu0
    %v763 = vadd.f32 %v639, %v762
    %v764 = vpop.f32.mrf.mxu0
    %765 = vmatprep.mubr.f32.mxu0 0.0
    %766 = vmatmul.mubr.f32.gmra.mxu0 %v173
    %v767 = vpop.f32.mrf.mxu0
    %v768 = vadd.f32 %v639, %v767
    %v769 = vpop.f32.mrf.mxu0
    %770 = vmatprep.mubr.f32.mxu0 0.0
    %771 = vmatmul.mubr.f32.gmra.mxu0 %v174
    %v772 = vpop.f32.mrf.mxu0
    %v773 = vadd.f32 %v639, %v772
    %v774 = vpop.f32.mrf.mxu0
    %775 = vmatprep.mubr.f32.mxu0 0.0
    %776 = vmatmul.mubr.f32.gmra.mxu0 %v175
    %v777 = vpop.f32.mrf.mxu0
    %v778 = vadd.f32 %v639, %v777
    %v779 = vpop.f32.mrf.mxu0
    %780 = vmatprep.mubr.f32.mxu0 0.0
    %781 = vmatmul.mubr.f32.gmra.mxu0 %v176
    %v782 = vpop.f32.mrf.mxu0
    %v783 = vadd.f32 %v639, %v782
    %v784 = vpop.f32.mrf.mxu0
    %785 = vdwg.mxu0
    %v786 = vld [vmem:[%s9] sm:$0x1]
    %v788 = vlaneseq
    %v789 = vshrl.u32 %v788, 7
    %v790 = vsub.s32 0, %v789
    %v791 = vrot.slane %v786, %v790
    %v793 = vmul.f32 %v791, %v161
    %v794 = vmul.f32 %v791, %v162
    %v795 = vmul.f32 %v791, %v163
    %v796 = vmul.f32 %v791, %v164
    %v797 = vmul.f32 %v791, %v165
    %v798 = vmul.f32 %v791, %v166
    %v799 = vmul.f32 %v791, %v167
    %v800 = vmul.f32 %v791, %v168
    %v801 = vmul.f32 %v791, %v169
    %v802 = vmul.f32 %v791, %v170
    %v803 = vmul.f32 %v791, %v171
    %v804 = vmul.f32 %v791, %v172
    %v805 = vmul.f32 %v791, %v173
    %v806 = vmul.f32 %v791, %v174
    %v807 = vmul.f32 %v791, %v175
    %v808 = vmul.f32 %v791, %v176
    %v809 = vld [vmem:[%s10] sm:$0x1]
    %v811 = vlaneseq
    %v812 = vshrl.u32 %v811, 7
    %v813 = vsub.s32 0, %v812
    %v814 = vrot.slane %v809, %v813
    %v816 = vadd.f32 %v793, %v814
    %v817 = vadd.f32 %v794, %v814
    %v818 = vadd.f32 %v795, %v814
    %v819 = vadd.f32 %v796, %v814
    %v820 = vadd.f32 %v797, %v814
    %v821 = vadd.f32 %v798, %v814
    %v822 = vadd.f32 %v799, %v814
    %v823 = vadd.f32 %v800, %v814
    %v824 = vadd.f32 %v801, %v814
    %v825 = vadd.f32 %v802, %v814
    %v826 = vadd.f32 %v803, %v814
    %v827 = vadd.f32 %v804, %v814
    %v828 = vadd.f32 %v805, %v814
    %v829 = vadd.f32 %v806, %v814
    %v830 = vadd.f32 %v807, %v814
    %v831 = vadd.f32 %v808, %v814
    %v832 = vmul.f32 %v708, %v816
    %v833 = vmul.f32 %v713, %v817
    %v834 = vmul.f32 %v718, %v818
    %v835 = vmul.f32 %v723, %v819
    %v836 = vmul.f32 %v728, %v820
    %v837 = vmul.f32 %v733, %v821
    %v838 = vmul.f32 %v738, %v822
    %v839 = vmul.f32 %v743, %v823
    %v840 = vmul.f32 %v748, %v824
    %v841 = vmul.f32 %v753, %v825
    %v842 = vmul.f32 %v758, %v826
    %v843 = vmul.f32 %v763, %v827
    %v844 = vmul.f32 %v768, %v828
    %v845 = vmul.f32 %v773, %v829
    %v846 = vmul.f32 %v778, %v830
    %v847 = vmul.f32 %v783, %v831
    %v848 = vmax.f32 %v832, 0.0
    %v849 = vmax.f32 %v833, 0.0
    %v850 = vmax.f32 %v834, 0.0
    %v851 = vmax.f32 %v835, 0.0
    %v852 = vmax.f32 %v836, 0.0
    %v853 = vmax.f32 %v837, 0.0
    %v854 = vmax.f32 %v838, 0.0
    %v855 = vmax.f32 %v839, 0.0
    %v856 = vmax.f32 %v840, 0.0
    %v857 = vmax.f32 %v841, 0.0
    %v858 = vmax.f32 %v842, 0.0
    %v859 = vmax.f32 %v843, 0.0
    %v860 = vmax.f32 %v844, 0.0
    %v861 = vmax.f32 %v845, 0.0
    %v862 = vmax.f32 %v846, 0.0
    %v863 = vmax.f32 %v847, 0.0
    %v864 = vand.u32 2147483647, %v832
    %v865 = vand.u32 2147483647, %v833
    %v866 = vand.u32 2147483647, %v834
    %v867 = vand.u32 2147483647, %v835
    %v868 = vand.u32 2147483647, %v836
    %v869 = vand.u32 2147483647, %v837
    %v870 = vand.u32 2147483647, %v838
    %v871 = vand.u32 2147483647, %v839
    %v872 = vand.u32 2147483647, %v840
    %v873 = vand.u32 2147483647, %v841
    %v874 = vand.u32 2147483647, %v842
    %v875 = vand.u32 2147483647, %v843
    %v876 = vand.u32 2147483647, %v844
    %v877 = vand.u32 2147483647, %v845
    %v878 = vand.u32 2147483647, %v846
    %v879 = vand.u32 2147483647, %v847
    %v880 = vsub.f32 0.0, %v864
    %v881 = vsub.f32 0.0, %v865
    %v882 = vsub.f32 0.0, %v866
    %v883 = vsub.f32 0.0, %v867
    %v884 = vsub.f32 0.0, %v868
    %v885 = vsub.f32 0.0, %v869
    %v886 = vsub.f32 0.0, %v870
    %v887 = vsub.f32 0.0, %v871
    %v888 = vsub.f32 0.0, %v872
    %v889 = vsub.f32 0.0, %v873
    %v890 = vsub.f32 0.0, %v874
    %v891 = vsub.f32 0.0, %v875
    %v892 = vsub.f32 0.0, %v876
    %v893 = vsub.f32 0.0, %v877
    %v894 = vsub.f32 0.0, %v878
    %v895 = vsub.f32 0.0, %v879
    %v896 = vmul.f32 %v880, 1.442695
    %v897 = vpow.pop %v896
    %v898 = vmul.f32 %v881, 1.442695
    %v899 = vpow.pop %v898
    %v900 = vmul.f32 %v882, 1.442695
    %v901 = vpow.pop %v900
    %v902 = vmul.f32 %v883, 1.442695
    %v903 = vpow.pop %v902
    %v904 = vmul.f32 %v884, 1.442695
    %v905 = vpow.pop %v904
    %v906 = vmul.f32 %v885, 1.442695
    %v907 = vpow.pop %v906
    %v908 = vmul.f32 %v886, 1.442695
    %v909 = vpow.pop %v908
    %v910 = vmul.f32 %v887, 1.442695
    %v911 = vpow.pop %v910
    %v912 = vmul.f32 %v888, 1.442695
    %v913 = vpow.pop %v912
    %v914 = vmul.f32 %v889, 1.442695
    %v915 = vpow.pop %v914
    %v916 = vmul.f32 %v890, 1.442695
    %v917 = vpow.pop %v916
    %v918 = vmul.f32 %v891, 1.442695
    %v919 = vpow.pop %v918
    %v920 = vmul.f32 %v892, 1.442695
    %v921 = vpow.pop %v920
    %v922 = vmul.f32 %v893, 1.442695
    %v923 = vpow.pop %v922
    %v924 = vmul.f32 %v894, 1.442695
    %v925 = vpow.pop %v924
    %v926 = vmul.f32 %v895, 1.442695
    %v927 = vpow.pop %v926
    %v928 = vadd.f32 %v897, 1.0
    %v929 = vlog2.pop %v928
    %v930 = vmul.f32 %v929, 0.6931472
    %v931 = vmul.f32 -0.5, %v897
    %v932 = vadd.f32 %v931, 1.0
    %v933 = vmul.f32 %v932, %v897
    %v934 = vand.u32 2147483647, %v897
    %vm935 = vcmp.lt.f32.partialorder %v934, 0.0004427343
    %v936 = vsel %vm935, %v933, %v930
    %v937 = vadd.f32 %v899, 1.0
    %v938 = vlog2.pop %v937
    %v939 = vmul.f32 %v938, 0.6931472
    %v940 = vmul.f32 -0.5, %v899
    %v941 = vadd.f32 %v940, 1.0
    %v942 = vmul.f32 %v941, %v899
    %v943 = vand.u32 2147483647, %v899
    %vm944 = vcmp.lt.f32.partialorder %v943, 0.0004427343
    %v945 = vsel %vm944, %v942, %v939
    %v946 = vadd.f32 %v901, 1.0
    %v947 = vlog2.pop %v946
    %v948 = vmul.f32 %v947, 0.6931472
    %v949 = vmul.f32 -0.5, %v901
    %v950 = vadd.f32 %v949, 1.0
    %v951 = vmul.f32 %v950, %v901
    %v952 = vand.u32 2147483647, %v901
    %vm953 = vcmp.lt.f32.partialorder %v952, 0.0004427343
    %v954 = vsel %vm953, %v951, %v948
    %v955 = vadd.f32 %v903, 1.0
    %v956 = vlog2.pop %v955
    %v957 = vmul.f32 %v956, 0.6931472
    %v958 = vmul.f32 -0.5, %v903
    %v959 = vadd.f32 %v958, 1.0
    %v960 = vmul.f32 %v959, %v903
    %v961 = vand.u32 2147483647, %v903
    %vm962 = vcmp.lt.f32.partialorder %v961, 0.0004427343
    %v963 = vsel %vm962, %v960, %v957
    %v964 = vadd.f32 %v905, 1.0
    %v965 = vlog2.pop %v964
    %v966 = vmul.f32 %v965, 0.6931472
    %v967 = vmul.f32 -0.5, %v905
    %v968 = vadd.f32 %v967, 1.0
    %v969 = vmul.f32 %v968, %v905
    %v970 = vand.u32 2147483647, %v905
    %vm971 = vcmp.lt.f32.partialorder %v970, 0.0004427343
    %v972 = vsel %vm971, %v969, %v966
    %v973 = vadd.f32 %v907, 1.0
    %v974 = vlog2.pop %v973
    %v975 = vmul.f32 %v974, 0.6931472
    %v976 = vmul.f32 -0.5, %v907
    %v977 = vadd.f32 %v976, 1.0
    %v978 = vmul.f32 %v977, %v907
    %v979 = vand.u32 2147483647, %v907
    %vm980 = vcmp.lt.f32.partialorder %v979, 0.0004427343
    %v981 = vsel %vm980, %v978, %v975
    %v982 = vadd.f32 %v909, 1.0
    %v983 = vlog2.pop %v982
    %v984 = vmul.f32 %v983, 0.6931472
    %v985 = vmul.f32 -0.5, %v909
    %v986 = vadd.f32 %v985, 1.0
    %v987 = vmul.f32 %v986, %v909
    %v988 = vand.u32 2147483647, %v909
    %vm989 = vcmp.lt.f32.partialorder %v988, 0.0004427343
    %v990 = vsel %vm989, %v987, %v984
    %v991 = vadd.f32 %v911, 1.0
    %v992 = vlog2.pop %v991
    %v993 = vmul.f32 %v992, 0.6931472
    %v994 = vmul.f32 -0.5, %v911
    %v995 = vadd.f32 %v994, 1.0
    %v996 = vmul.f32 %v995, %v911
    %v997 = vand.u32 2147483647, %v911
    %vm998 = vcmp.lt.f32.partialorder %v997, 0.0004427343
    %v999 = vsel %vm998, %v996, %v993
    %v1000 = vadd.f32 %v913, 1.0
    %v1001 = vlog2.pop %v1000
    %v1002 = vmul.f32 %v1001, 0.6931472
    %v1003 = vmul.f32 -0.5, %v913
    %v1004 = vadd.f32 %v1003, 1.0
    %v1005 = vmul.f32 %v1004, %v913
    %v1006 = vand.u32 2147483647, %v913
    %vm1007 = vcmp.lt.f32.partialorder %v1006, 0.0004427343
    %v1008 = vsel %vm1007, %v1005, %v1002
    %v1009 = vadd.f32 %v915, 1.0
    %v1010 = vlog2.pop %v1009
    %v1011 = vmul.f32 %v1010, 0.6931472
    %v1012 = vmul.f32 -0.5, %v915
    %v1013 = vadd.f32 %v1012, 1.0
    %v1014 = vmul.f32 %v1013, %v915
    %v1015 = vand.u32 2147483647, %v915
    %vm1016 = vcmp.lt.f32.partialorder %v1015, 0.0004427343
    %v1017 = vsel %vm1016, %v1014, %v1011
    %v1018 = vadd.f32 %v917, 1.0
    %v1019 = vlog2.pop %v1018
    %v1020 = vmul.f32 %v1019, 0.6931472
    %v1021 = vmul.f32 -0.5, %v917
    %v1022 = vadd.f32 %v1021, 1.0
    %v1023 = vmul.f32 %v1022, %v917
    %v1024 = vand.u32 2147483647, %v917
    %vm1025 = vcmp.lt.f32.partialorder %v1024, 0.0004427343
    %v1026 = vsel %vm1025, %v1023, %v1020
    %v1027 = vadd.f32 %v919, 1.0
    %v1028 = vlog2.pop %v1027
    %v1029 = vmul.f32 %v1028, 0.6931472
    %v1030 = vmul.f32 -0.5, %v919
    %v1031 = vadd.f32 %v1030, 1.0
    %v1032 = vmul.f32 %v1031, %v919
    %v1033 = vand.u32 2147483647, %v919
    %vm1034 = vcmp.lt.f32.partialorder %v1033, 0.0004427343
    %v1035 = vsel %vm1034, %v1032, %v1029
    %v1036 = vadd.f32 %v921, 1.0
    %v1037 = vlog2.pop %v1036
    %v1038 = vmul.f32 %v1037, 0.6931472
    %v1039 = vmul.f32 -0.5, %v921
    %v1040 = vadd.f32 %v1039, 1.0
    %v1041 = vmul.f32 %v1040, %v921
    %v1042 = vand.u32 2147483647, %v921
    %vm1043 = vcmp.lt.f32.partialorder %v1042, 0.0004427343
    %v1044 = vsel %vm1043, %v1041, %v1038
    %v1045 = vadd.f32 %v923, 1.0
    %v1046 = vlog2.pop %v1045
    %v1047 = vmul.f32 %v1046, 0.6931472
    %v1048 = vmul.f32 -0.5, %v923
    %v1049 = vadd.f32 %v1048, 1.0
    %v1050 = vmul.f32 %v1049, %v923
    %v1051 = vand.u32 2147483647, %v923
    %vm1052 = vcmp.lt.f32.partialorder %v1051, 0.0004427343
    %v1053 = vsel %vm1052, %v1050, %v1047
    %v1054 = vadd.f32 %v925, 1.0
    %v1055 = vlog2.pop %v1054
    %v1056 = vmul.f32 %v1055, 0.6931472
    %v1057 = vmul.f32 -0.5, %v925
    %v1058 = vadd.f32 %v1057, 1.0
    %v1059 = vmul.f32 %v1058, %v925
    %v1060 = vand.u32 2147483647, %v925
    %vm1061 = vcmp.lt.f32.partialorder %v1060, 0.0004427343
    %v1062 = vsel %vm1061, %v1059, %v1056
    %v1063 = vadd.f32 %v927, 1.0
    %v1064 = vlog2.pop %v1063
    %v1065 = vmul.f32 %v1064, 0.6931472
    %v1066 = vmul.f32 -0.5, %v927
    %v1067 = vadd.f32 %v1066, 1.0
    %v1068 = vmul.f32 %v1067, %v927
    %v1069 = vand.u32 2147483647, %v927
    %vm1070 = vcmp.lt.f32.partialorder %v1069, 0.0004427343
    %v1071 = vsel %vm1070, %v1068, %v1065
    %v1072 = vadd.f32 %v848, %v936
    %v1073 = vadd.f32 %v849, %v945
    %v1074 = vadd.f32 %v850, %v954
    %v1075 = vadd.f32 %v851, %v963
    %v1076 = vadd.f32 %v852, %v972
    %v1077 = vadd.f32 %v853, %v981
    %v1078 = vadd.f32 %v854, %v990
    %v1079 = vadd.f32 %v855, %v999
    %v1080 = vadd.f32 %v856, %v1008
    %v1081 = vadd.f32 %v857, %v1017
    %v1082 = vadd.f32 %v858, %v1026
    %v1083 = vadd.f32 %v859, %v1035
    %v1084 = vadd.f32 %v860, %v1044
    %v1085 = vadd.f32 %v861, %v1053
    %v1086 = vadd.f32 %v862, %v1062
    %v1087 = vadd.f32 %v863, %v1071
    %v1088 = vsub.f32 1.0, %v587
    %v1089 = vsub.f32 1.0, %v589
    %v1090 = vsub.f32 1.0, %v591
    %v1091 = vsub.f32 1.0, %v593
    %v1092 = vsub.f32 1.0, %v595
    %v1093 = vsub.f32 1.0, %v597
    %v1094 = vsub.f32 1.0, %v599
    %v1095 = vsub.f32 1.0, %v601
    %v1096 = vsub.f32 1.0, %v603
    %v1097 = vsub.f32 1.0, %v605
    %v1098 = vsub.f32 1.0, %v607
    %v1099 = vsub.f32 1.0, %v609
    %v1100 = vsub.f32 1.0, %v611
    %v1101 = vsub.f32 1.0, %v613
    %v1102 = vsub.f32 1.0, %v615
    %v1103 = vsub.f32 1.0, %v617
    %v1104 = vmul.f32 %v1088, %v145
    %v1105 = vmul.f32 %v1089, %v146
    %v1106 = vmul.f32 %v1090, %v147
    %v1107 = vmul.f32 %v1091, %v148
    %v1108 = vmul.f32 %v1092, %v149
    %v1109 = vmul.f32 %v1093, %v150
    %v1110 = vmul.f32 %v1094, %v151
    %v1111 = vmul.f32 %v1095, %v152
    %v1112 = vmul.f32 %v1096, %v153
    %v1113 = vmul.f32 %v1097, %v154
    %v1114 = vmul.f32 %v1098, %v155
    %v1115 = vmul.f32 %v1099, %v156
    %v1116 = vmul.f32 %v1100, %v157
    %v1117 = vmul.f32 %v1101, %v158
    %v1118 = vmul.f32 %v1102, %v159
    %v1119 = vmul.f32 %v1103, %v160
    %v1120 = vmul.f32 %v587, %v1072
    %v1121 = vmul.f32 %v589, %v1073
    %v1122 = vmul.f32 %v591, %v1074
    %v1123 = vmul.f32 %v593, %v1075
    %v1124 = vmul.f32 %v595, %v1076
    %v1125 = vmul.f32 %v597, %v1077
    %v1126 = vmul.f32 %v599, %v1078
    %v1127 = vmul.f32 %v601, %v1079
    %v1128 = vmul.f32 %v603, %v1080
    %v1129 = vmul.f32 %v605, %v1081
    %v1130 = vmul.f32 %v607, %v1082
    %v1131 = vmul.f32 %v609, %v1083
    %v1132 = vmul.f32 %v611, %v1084
    %v1133 = vmul.f32 %v613, %v1085
    %v1134 = vmul.f32 %v615, %v1086
    %v1135 = vmul.f32 %v617, %v1087
    %v1136 = vadd.f32 %v1104, %v1120
    %v1137 = vadd.f32 %v1105, %v1121
    %v1138 = vadd.f32 %v1106, %v1122
    %v1139 = vadd.f32 %v1107, %v1123
    %v1140 = vadd.f32 %v1108, %v1124
    %v1141 = vadd.f32 %v1109, %v1125
    %v1142 = vadd.f32 %v1110, %v1126
    %v1143 = vadd.f32 %v1111, %v1127
    %v1144 = vadd.f32 %v1112, %v1128
    %v1145 = vadd.f32 %v1113, %v1129
    %v1146 = vadd.f32 %v1114, %v1130
    %v1147 = vadd.f32 %v1115, %v1131
    %v1148 = vadd.f32 %v1116, %v1132
    %v1149 = vadd.f32 %v1117, %v1133
    %v1150 = vadd.f32 %v1118, %v1134
    %v1151 = vadd.f32 %v1119, %v1135
    %1152 = vst [vmem:[%s120] sm:$0xff] %v1136
    %1153 = vst [vmem:[%s120 + $0x8] sm:$0xff] %v1137
    %1154 = vst [vmem:[%s120 + $0x10] sm:$0xff] %v1138
    %1155 = vst [vmem:[%s120 + $0x18] sm:$0xff] %v1139
    %1156 = vst [vmem:[%s120 + $0x20] sm:$0xff] %v1140
    %1157 = vst [vmem:[%s120 + $0x28] sm:$0xff] %v1141
    %1158 = vst [vmem:[%s120 + $0x30] sm:$0xff] %v1142
    %1159 = vst [vmem:[%s120 + $0x38] sm:$0xff] %v1143
    %1160 = vst [vmem:[%s120 + $0x40] sm:$0xff] %v1144
    %1161 = vst [vmem:[%s120 + $0x48] sm:$0xff] %v1145
    %1162 = vst [vmem:[%s120 + $0x50] sm:$0xff] %v1146
    %1163 = vst [vmem:[%s120 + $0x58] sm:$0xff] %v1147
    %1164 = vst [vmem:[%s120 + $0x60] sm:$0xff] %v1148
    %1165 = vst [vmem:[%s120 + $0x68] sm:$0xff] %v1149
    %1166 = vst [vmem:[%s120 + $0x70] sm:$0xff] %v1150
    %1167 = vst [vmem:[%s120 + $0x78] sm:$0xff] %v1151
    %v1168 = vld [vmem:[%s6] sm:$0xff]
    %v1169 = vld [vmem:[%s6 + $0x8] sm:$0xff]
    %v1170 = vld [vmem:[%s6 + $0x10] sm:$0xff]
    %v1171 = vld [vmem:[%s6 + $0x18] sm:$0xff]
    %v1172 = vld [vmem:[%s6 + $0x20] sm:$0xff]
    %v1173 = vld [vmem:[%s6 + $0x28] sm:$0xff]
    %v1174 = vld [vmem:[%s6 + $0x30] sm:$0xff]
    %v1175 = vld [vmem:[%s6 + $0x38] sm:$0xff]
    %v1176 = vld [vmem:[%s6 + $0x40] sm:$0xff]
    %v1177 = vld [vmem:[%s6 + $0x48] sm:$0xff]
    %v1178 = vld [vmem:[%s6 + $0x50] sm:$0xff]
    %v1179 = vld [vmem:[%s6 + $0x58] sm:$0xff]
    %v1180 = vld [vmem:[%s6 + $0x60] sm:$0xff]
    %v1181 = vld [vmem:[%s6 + $0x68] sm:$0xff]
    %v1182 = vld [vmem:[%s6 + $0x70] sm:$0xff]
    %v1183 = vld [vmem:[%s6 + $0x78] sm:$0xff]
    %1184 = vmatprep.subr.mxu0 0.0
    %1185 = vmatpush1.msra.mxu0 %v1183
    %1186 = vmatprep.subr.mxu0 0.0
    %1187 = vmatpush1.msra.mxu0 %v1182
    %1188 = vmatprep.subr.mxu0 0.0
    %1189 = vmatpush1.msra.mxu0 %v1181
    %1190 = vmatprep.subr.mxu0 0.0
    %1191 = vmatpush1.msra.mxu0 %v1180
    %1192 = vmatprep.subr.mxu0 0.0
    %1193 = vmatpush1.msra.mxu0 %v1179
    %1194 = vmatprep.subr.mxu0 0.0
    %1195 = vmatpush1.msra.mxu0 %v1178
    %1196 = vmatprep.subr.mxu0 0.0
    %1197 = vmatpush1.msra.mxu0 %v1177
    %1198 = vmatprep.subr.mxu0 0.0
    %1199 = vmatpush1.msra.mxu0 %v1176
    %1200 = vmatprep.subr.mxu0 0.0
    %1201 = vmatpush1.msra.mxu0 %v1175
    %1202 = vmatprep.subr.mxu0 0.0
    %1203 = vmatpush1.msra.mxu0 %v1174
    %1204 = vmatprep.subr.mxu0 0.0
    %1205 = vmatpush1.msra.mxu0 %v1173
    %1206 = vmatprep.subr.mxu0 0.0
    %1207 = vmatpush1.msra.mxu0 %v1172
    %1208 = vmatprep.subr.mxu0 0.0
    %1209 = vmatpush1.msra.mxu0 %v1171
    %1210 = vmatprep.subr.mxu0 0.0
    %1211 = vmatpush1.msra.mxu0 %v1170
    %1212 = vmatprep.subr.mxu0 0.0
    %1213 = vmatpush1.msra.mxu0 %v1169
    %1214 = vmatprep.subr.mxu0 0.0
    %1215 = vmatpush1.msra.mxu0 %v1168
    %1216 = vmatprep.subr.mxu0 0.0
    %1217 = vmatpush2.msra.mxu0 0.0
    %1218 = vmatprep.subr.mxu0 0.0
    %1219 = vmatpush2.msra.mxu0 0.0
    %1220 = vmatprep.subr.mxu0 0.0
    %1221 = vmatpush2.msra.mxu0 0.0
    %1222 = vmatprep.subr.mxu0 0.0
    %1223 = vmatpush2.msra.mxu0 0.0
    %1224 = vmatprep.subr.mxu0 0.0
    %1225 = vmatpush2.msra.mxu0 0.0
    %1226 = vmatprep.subr.mxu0 0.0
    %1227 = vmatpush2.msra.mxu0 0.0
    %1228 = vmatprep.subr.mxu0 0.0
    %1229 = vmatpush2.msra.mxu0 0.0
    %1230 = vmatprep.subr.mxu0 0.0
    %1231 = vmatpush2.msra.mxu0 0.0
    %1232 = vmatprep.subr.mxu0 0.0
    %1233 = vmatpush2.msra.mxu0 0.0
    %1234 = vmatprep.subr.mxu0 0.0
    %1235 = vmatpush2.msra.mxu0 0.0
    %1236 = vmatprep.subr.mxu0 0.0
    %1237 = vmatpush2.msra.mxu0 0.0
    %1238 = vmatprep.subr.mxu0 0.0
    %1239 = vmatpush2.msra.mxu0 0.0
    %1240 = vmatprep.subr.mxu0 0.0
    %1241 = vmatpush2.msra.mxu0 0.0
    %1242 = vmatprep.subr.mxu0 0.0
    %1243 = vmatpush2.msra.mxu0 0.0
    %1244 = vmatprep.subr.mxu0 0.0
    %1245 = vmatpush2.msra.mxu0 0.0
    %1246 = vmatprep.subr.mxu0 0.0
    %1247 = vmatpush2.msra.mxu0 0.0
    %1248 = vmatprep.mubr.f32.mxu0 0.0
    %1249 = vmatmul.mubr.f32.gmra.mxu0 %v1136
    %v1250 = vpop.f32.mrf.mxu0
    %v1251 = vadd.f32 0.0, %v1250
    %v1252 = vpop.f32.mrf.mxu0
    %1253 = vmatprep.mubr.f32.mxu0 0.0
    %1254 = vmatmul.mubr.f32.gmra.mxu0 %v1137
    %v1255 = vpop.f32.mrf.mxu0
    %v1256 = vadd.f32 0.0, %v1255
    %v1257 = vpop.f32.mrf.mxu0
    %1258 = vmatprep.mubr.f32.mxu0 0.0
    %1259 = vmatmul.mubr.f32.gmra.mxu0 %v1138
    %v1260 = vpop.f32.mrf.mxu0
    %v1261 = vadd.f32 0.0, %v1260
    %v1262 = vpop.f32.mrf.mxu0
    %1263 = vmatprep.mubr.f32.mxu0 0.0
    %1264 = vmatmul.mubr.f32.gmra.mxu0 %v1139
    %v1265 = vpop.f32.mrf.mxu0
    %v1266 = vadd.f32 0.0, %v1265
    %v1267 = vpop.f32.mrf.mxu0
    %1268 = vmatprep.mubr.f32.mxu0 0.0
    %1269 = vmatmul.mubr.f32.gmra.mxu0 %v1140
    %v1270 = vpop.f32.mrf.mxu0
    %v1271 = vadd.f32 0.0, %v1270
    %v1272 = vpop.f32.mrf.mxu0
    %1273 = vmatprep.mubr.f32.mxu0 0.0
    %1274 = vmatmul.mubr.f32.gmra.mxu0 %v1141
    %v1275 = vpop.f32.mrf.mxu0
    %v1276 = vadd.f32 0.0, %v1275
    %v1277 = vpop.f32.mrf.mxu0
    %1278 = vmatprep.mubr.f32.mxu0 0.0
    %1279 = vmatmul.mubr.f32.gmra.mxu0 %v1142
    %v1280 = vpop.f32.mrf.mxu0
    %v1281 = vadd.f32 0.0, %v1280
    %v1282 = vpop.f32.mrf.mxu0
    %1283 = vmatprep.mubr.f32.mxu0 0.0
    %1284 = vmatmul.mubr.f32.gmra.mxu0 %v1143
    %v1285 = vpop.f32.mrf.mxu0
    %v1286 = vadd.f32 0.0, %v1285
    %v1287 = vpop.f32.mrf.mxu0
    %1288 = vmatprep.mubr.f32.mxu0 0.0
    %1289 = vmatmul.mubr.f32.gmra.mxu0 %v1144
    %v1290 = vpop.f32.mrf.mxu0
    %v1291 = vadd.f32 0.0, %v1290
    %v1292 = vpop.f32.mrf.mxu0
    %1293 = vmatprep.mubr.f32.mxu0 0.0
    %1294 = vmatmul.mubr.f32.gmra.mxu0 %v1145
    %v1295 = vpop.f32.mrf.mxu0
    %v1296 = vadd.f32 0.0, %v1295
    %v1297 = vpop.f32.mrf.mxu0
    %1298 = vmatprep.mubr.f32.mxu0 0.0
    %1299 = vmatmul.mubr.f32.gmra.mxu0 %v1146
    %v1300 = vpop.f32.mrf.mxu0
    %v1301 = vadd.f32 0.0, %v1300
    %v1302 = vpop.f32.mrf.mxu0
    %1303 = vmatprep.mubr.f32.mxu0 0.0
    %1304 = vmatmul.mubr.f32.gmra.mxu0 %v1147
    %v1305 = vpop.f32.mrf.mxu0
    %v1306 = vadd.f32 0.0, %v1305
    %v1307 = vpop.f32.mrf.mxu0
    %1308 = vmatprep.mubr.f32.mxu0 0.0
    %1309 = vmatmul.mubr.f32.gmra.mxu0 %v1148
    %v1310 = vpop.f32.mrf.mxu0
    %v1311 = vadd.f32 0.0, %v1310
    %v1312 = vpop.f32.mrf.mxu0
    %1313 = vmatprep.mubr.f32.mxu0 0.0
    %1314 = vmatmul.mubr.f32.gmra.mxu0 %v1149
    %v1315 = vpop.f32.mrf.mxu0
    %v1316 = vadd.f32 0.0, %v1315
    %v1317 = vpop.f32.mrf.mxu0
    %1318 = vmatprep.mubr.f32.mxu0 0.0
    %1319 = vmatmul.mubr.f32.gmra.mxu0 %v1150
    %v1320 = vpop.f32.mrf.mxu0
    %v1321 = vadd.f32 0.0, %v1320
    %v1322 = vpop.f32.mrf.mxu0
    %1323 = vmatprep.mubr.f32.mxu0 0.0
    %1324 = vmatmul.mubr.f32.gmra.mxu0 %v1151
    %v1325 = vpop.f32.mrf.mxu0
    %v1326 = vadd.f32 0.0, %v1325
    %v1327 = vpop.f32.mrf.mxu0
    %1328 = vdwg.mxu0
    %v1329 = vld [vmem:[#allocation2] sm:$0x1]
    %v1330 = vadd.f32 %v1251, %v1256
    %v1331 = vadd.f32 %v1330, %v1261
    %v1332 = vadd.f32 %v1331, %v1266
    %v1333 = vadd.f32 %v1332, %v1271
    %v1334 = vadd.f32 %v1333, %v1276
    %v1335 = vadd.f32 %v1334, %v1281
    %v1336 = vadd.f32 %v1335, %v1286
    %v1337 = vadd.f32 %v1336, %v1291
    %v1338 = vadd.f32 %v1337, %v1296
    %v1339 = vadd.f32 %v1338, %v1301
    %v1340 = vadd.f32 %v1339, %v1306
    %v1341 = vadd.f32 %v1340, %v1311
    %v1342 = vadd.f32 %v1341, %v1316
    %v1343 = vadd.f32 %v1342, %v1321
    %v1344 = vadd.f32 %v1343, %v1326
    %v1345 = vrot.slane %v1344, 4
    %v1346 = vadd.f32 %v1344, %v1345
    %v1347 = vrot.slane %v1346, 2
    %v1348 = vadd.f32 %v1346, %v1347
    %v1349 = vrot.slane %v1348, 1
    %v1350 = vadd.f32 %v1348, %v1349
    %v1351 = vadd.f32 %v1329, %v1350
    %1352 = vst [vmem:[#allocation2] sm:$0x1] %v1351
    %v1353 = vld [vmem:[#allocation4] sm:$0x1]
    %v1354 = vmul.f32 %v1251, %v1251
    %v1355 = vmul.f32 %v1256, %v1256
    %v1356 = vmul.f32 %v1261, %v1261
    %v1357 = vmul.f32 %v1266, %v1266
    %v1358 = vmul.f32 %v1271, %v1271
    %v1359 = vmul.f32 %v1276, %v1276
    %v1360 = vmul.f32 %v1281, %v1281
    %v1361 = vmul.f32 %v1286, %v1286
    %v1362 = vmul.f32 %v1291, %v1291
    %v1363 = vmul.f32 %v1296, %v1296
    %v1364 = vmul.f32 %v1301, %v1301
    %v1365 = vmul.f32 %v1306, %v1306
    %v1366 = vmul.f32 %v1311, %v1311
    %v1367 = vmul.f32 %v1316, %v1316
    %v1368 = vmul.f32 %v1321, %v1321
    %v1369 = vmul.f32 %v1326, %v1326
    %v1370 = vadd.f32 %v1354, %v1355
    %v1371 = vadd.f32 %v1370, %v1356
    %v1372 = vadd.f32 %v1371, %v1357
    %v1373 = vadd.f32 %v1372, %v1358
    %v1374 = vadd.f32 %v1373, %v1359
    %v1375 = vadd.f32 %v1374, %v1360
    %v1376 = vadd.f32 %v1375, %v1361
    %v1377 = vadd.f32 %v1376, %v1362
    %v1378 = vadd.f32 %v1377, %v1363
    %v1379 = vadd.f32 %v1378, %v1364
    %v1380 = vadd.f32 %v1379, %v1365
    %v1381 = vadd.f32 %v1380, %v1366
    %v1382 = vadd.f32 %v1381, %v1367
    %v1383 = vadd.f32 %v1382, %v1368
    %v1384 = vadd.f32 %v1383, %v1369
    %v1385 = vrot.slane %v1384, 4
    %v1386 = vadd.f32 %v1384, %v1385
    %v1387 = vrot.slane %v1386, 2
    %v1388 = vadd.f32 %v1386, %v1387
    %v1389 = vrot.slane %v1388, 1
    %v1390 = vadd.f32 %v1388, %v1389
    %v1391 = vadd.f32 %v1353, %v1390
    %1392 = vst [vmem:[#allocation4] sm:$0x1] %v1391
    %s1393 = sadd.s32 0, 0
    %s1394 = smul.u32 16, %s1393
    %p1395 = scmp.lt.s32.totalorder %s1394, 15
    %s1396 = scalar_select %p1395, %s1394, 15
    %s1397 = smul.addr %s1396, 8
    %s1398 = scalar_lea.vmem %s11, %s1397
    // Predicated region
    $region50: #{rcell_forward.5} parent=1 // pred_check
      _
    $region51: #{rcell_forward.5} parent=1 // pred_check_branch
      %1400 = sbr.rel (0) target = $region53
    $region52: #{rcell_forward.5} parent=1 // pred_region
      %s1401 = sadd.s32 0, 0
      %s1402 = smul.u32 16, %s1401
    $region53: #{rcell_forward.5} parent=1 // pred_fallthru
      _
    // Predicated region
    $region54: #{rcell_forward.5} parent=1 // pred_check
      _
    $region55: #{rcell_forward.5} parent=1 // pred_check_branch
      %1404 = sbr.rel (0) target = $region57
    $region56: #{rcell_forward.5} parent=1 // pred_region
      %s1406 = ssub.s32 16, 16
      %1407 = vsyncadd [#allocation3], %s1406
      %s1409 = sshll.u32 [#allocation2], 4
      %s1410 = int_to_ptr.vmem [resolvable:$true] %s1409
      %1412 = dma.vmem_to_hbm [thread:$0]  %s1410, 16, %s12, [#allocation3]
    $region57: #{rcell_forward.5} parent=1 // pred_fallthru
      _
    // Predicated region
    $region58: #{rcell_forward.5} parent=1 // pred_check
      _
    $region59: #{rcell_forward.5} parent=1 // pred_check_branch
      %1414 = sbr.rel (0) target = $region61
    $region60: #{rcell_forward.5} parent=1 // pred_region
      %s1416 = ssub.s32 16, 16
      %1417 = vsyncadd [#allocation5], %s1416
      %s1419 = sshll.u32 [#allocation4], 4
      %s1420 = int_to_ptr.vmem [resolvable:$true] %s1419
      %1422 = dma.vmem_to_hbm [thread:$0]  %s1420, 16, %s13, [#allocation5]
    $region61: #{rcell_forward.5} parent=1 // pred_fallthru
      _
    // Predicated region
    $region62: #{rcell_forward.5} parent=1 // pred_check
      _
    $region63: #{rcell_forward.5} parent=1 // pred_check_branch
      %1424 = sbr.rel (0) target = $region65
    $region64: #{rcell_forward.5} parent=1 // pred_region
      %s1425 = sadd.s32 0, 0
      %s1426 = smul.u32 16, %s1425
      %p1427 = scmp.lt.s32.totalorder %s1426, 15
      %s1428 = scalar_select %p1427, %s1426, 15
      %s1429 = smul.addr %s1428, 8
      %s1430 = scalar_lea.vmem %s11, %s1429
    $region65: #{rcell_forward.5} parent=1 // pred_fallthru
      _
    // Predicated region
    $region66: #{rcell_forward.5} parent=1 // pred_check
      _
    $region67: #{rcell_forward.5} parent=1 // pred_check_branch
      %1432 = sbr.rel (0) target = $region69
    $region68: #{rcell_forward.5} parent=1 // pred_region
      %1433 = dma.done [#allocation3], 16
    $region69: #{rcell_forward.5} parent=1 // pred_fallthru
      _
    // Predicated region
    $region70: #{rcell_forward.5} parent=1 // pred_check
      _
    $region71: #{rcell_forward.5} parent=1 // pred_check_branch
      %1435 = sbr.rel (0) target = $region73
    $region72: #{rcell_forward.5} parent=1 // pred_region
      %1436 = dma.done [#allocation5], 16
    $region73: #{rcell_forward.5} parent=1 // pred_fallthru
      _
    %1437 = vsyncpa [#allocation3], 1
    %1438 = vsyncpa [#allocation5], 1

</llo_original>
